<compile_context>
chip_gen: v7x
topology: tpu7x:2x2x1
jax: 0.10.0
libtpu: 0.0.40
codegen_flags: <defaults>
</compile_context>

<pallas_src>
import numpy as np
import jax
import jax.numpy as jnp
from jax.experimental import pallas as pl
from jax.experimental.pallas import tpu as pltpu


# ----------------------------- layout helpers --------------------------------
# Flat per-sample layouts used between the fused stages:
#   L0 conv1-in  (432): ci*144 + i*12 + j          (plain NCHW flatten)
#   L1 conv1-out (600): (oi*10 + oj)*6 + co        (channel-minor)
#   L2 pool1-out (150): (a*5 + b)*6 + c
#   L3 conv2-out (144): (oi*3 + oj)*16 + co
#   L4 pool2-out  (16): co                          (== torch.flatten of (B,16,1,1))


def _fold_conv(w, H, W, in_idx, out_idx):
    """Fold a VALID conv (torch layout w[co, ci, kh, kw]) into one dense
    (Cin*H*W, Cout*Ho*Wo) matrix acting on flattened per-sample vectors."""
    cout, cin, kh, kw = w.shape
    Ho, Wo = H - kh + 1, W - kw + 1
    Wf = np.zeros((cin * H * W, cout * Ho * Wo), np.float32)
    for co in range(cout):
        for ci in range(cin):
            for di in range(kh):
                for dj in range(kw):
                    for oi in range(Ho):
                        for oj in range(Wo):
                            Wf[in_idx(ci, oi + di, oj + dj),
                               out_idx(co, oi, oj)] += w[co, ci, di, dj]
    return Wf


def _fold_pool(H, W, C, in_idx, out_idx):
    """(4, C*H*W, C*Ho*Wo) 0/1 lane-selection matrices for 2x2/stride-2 max-pool
    (floor mode, as nn.MaxPool2d)."""
    Ho, Wo = H // 2, W // 2
    P = np.zeros((4, C * H * W, C * Ho * Wo), np.float32)
    for u in range(2):
        for v in range(2):
            k = u * 2 + v
            for c in range(C):
                for a in range(Ho):
                    for b in range(Wo):
                        P[k, in_idx(c, 2 * a + u, 2 * b + v), out_idx(c, a, b)] = 1.0
    return P


def build_kernel_constants(params, num_classes):
    """Bake conv weights + spatial gathers into folded matmul operands (bf16)
    and biases (f32, broadcast rows). Done once at setup time in numpy."""
    c_pad = ((num_classes + 127) // 128) * 128     # lane-dense output store

    l0 = lambda c, i, j: c * 144 + i * 12 + j
    l1 = lambda c, i, j: (i * 10 + j) * 6 + c
    l2 = lambda c, i, j: (i * 5 + j) * 6 + c
    l3 = lambda c, i, j: (i * 3 + j) * 16 + c
    l4 = lambda c, i, j: c

    w1 = np.asarray(params["conv1_w"], np.float32)          # (6, 3, 3, 3)
    w2 = np.asarray(params["conv2_w"], np.float32)          # (16, 6, 3, 3)

    W1 = _fold_conv(w1, 12, 12, l0, l1)                     # (432, 600)
    P1 = _fold_pool(10, 10, 6, l1, l2)                      # (4, 600, 150)
    W2 = _fold_conv(w2, 5, 5, l2, l3)                       # (150, 144)
    P2 = _fold_pool(3, 3, 16, l3, l4)                       # (4, 144, 16)

    b1 = np.tile(np.asarray(params["conv1_b"], np.float32), 100)[None, :]   # (1, 600)
    b2 = np.tile(np.asarray(params["conv2_b"], np.float32), 9)[None, :]     # (1, 144)

    fw1 = np.asarray(params["fc1_w"], np.float32).T         # (16, 120)
    fw2 = np.asarray(params["fc2_w"], np.float32).T         # (120, 84)
    fw3 = np.zeros((84, c_pad), np.float32)                  # zero-padded lanes
    fw3[:, :num_classes] = np.asarray(params["fc3_w"], np.float32).T
    fb1 = np.asarray(params["fc1_b"], np.float32)[None, :]
    fb2 = np.asarray(params["fc2_b"], np.float32)[None, :]
    fb3 = np.zeros((1, c_pad), np.float32)
    fb3[0, :num_classes] = np.asarray(params["fc3_b"], np.float32)

    bf = jnp.bfloat16
    return dict(
        w1=jnp.asarray(W1, bf), b1=jnp.asarray(b1),
        p1=jnp.asarray(P1, bf),
        w2=jnp.asarray(W2, bf), b2=jnp.asarray(b2),
        p2=jnp.asarray(P2, bf),
        fw1=jnp.asarray(fw1, bf), fb1=jnp.asarray(fb1),
        fw2=jnp.asarray(fw2, bf), fb2=jnp.asarray(fb2),
        fw3=jnp.asarray(fw3, bf), fb3=jnp.asarray(fb3),
    )


# ------------------------------ fused Pallas kernel ---------------------------

def _backbone_kernel(x_ref, w1_ref, b1_ref, p1_ref, w2_ref, b2_ref, p2_ref,
                     fw1_ref, fb1_ref, fw2_ref, fb2_ref, fw3_ref, fb3_ref,
                     o_ref):
    bf = jnp.bfloat16
    f32 = jnp.float32

    def max_pool(act_bf, p_ref):
        # 4 lane-selection matmuls (exact 0/1 in bf16) + VPU max in f32.
        z = jnp.dot(act_bf, p_ref[0], preferred_element_type=f32)
        for k in range(1, 4):
            z = jnp.maximum(z, jnp.dot(act_bf, p_ref[k], preferred_element_type=f32))
        return z

    x = x_ref[...]                                                     # (TB, 432) bf16
    y1 = jnp.dot(x, w1_ref[...], preferred_element_type=f32)           # (TB, 600)
    y1 = jnp.maximum(y1 + b1_ref[...], 0.0)                            # conv1 + ReLU
    z1 = max_pool(y1.astype(bf), p1_ref)                               # (TB, 150)

    y2 = jnp.dot(z1.astype(bf), w2_ref[...], preferred_element_type=f32)   # (TB, 144)
    y2 = jnp.maximum(y2 + b2_ref[...], 0.0)                            # conv2 + ReLU
    feat = max_pool(y2.astype(bf), p2_ref)                             # (TB, 16) == flatten

    h = jnp.dot(feat.astype(bf), fw1_ref[...], preferred_element_type=f32) + fb1_ref[...]
    h = jnp.maximum(h, 0.0)
    # TODO(synk): nn.Dropout is identity here (inference semantics).
    h = jnp.dot(h.astype(bf), fw2_ref[...], preferred_element_type=f32) + fb2_ref[...]
    h = jnp.maximum(h, 0.0)
    out = jnp.dot(h.astype(bf), fw3_ref[...], preferred_element_type=f32) + fb3_ref[...]
    o_ref[...] = out                                                   # (TB, 128) lane-dense


# ------------------------------ wrapper ---------------------------------------

def backbone_forward(x_nchw, consts, *, num_classes):
    B = x_nchw.shape[0]
    assert x_nchw.shape[1:] == (3, 12, 12), (
        "Backbone.forward is shape-specialized to 12x12 inputs "
        "(post-pool spatial 1x1 so flatten == 16 features); got "
        f"{x_nchw.shape}")
    c_pad = consts["fb3"].shape[1]

    # TB samples per grid step: multiple of 8 (sublane tile), capped at 128 so
    # large batches keep grid length >= 2 (megacore sharding on v7x).
    tb = min(128, ((B + 7) // 8) * 8)
    b_pad = ((B + tb - 1) // tb) * tb

    # NCHW flatten (layout L0) + bf16 cast: halves the per-step input DMA.
    x = x_nchw.astype(jnp.float32).reshape(B, 432).astype(jnp.bfloat16)
    if b_pad != B:
        x = jnp.pad(x, ((0, b_pad - B), (0, 0)))

    fixed = (consts["w1"], consts["b1"], consts["p1"],
             consts["w2"], consts["b2"], consts["p2"],
             consts["fw1"], consts["fb1"], consts["fw2"], consts["fb2"],
             consts["fw3"], consts["fb3"])

    in_specs = [pl.BlockSpec((tb, 432), lambda b: (b, 0))]
    # Constants/weights: full-array blocks, constant index_map -> fetched once
    # and kept VMEM-resident across the batch-tile loop (~1.4 MiB bf16 total).
    in_specs += [pl.BlockSpec(a.shape, lambda b, nd=a.ndim: (0,) * nd) for a in fixed]

    out = pl.pallas_call(
        _backbone_kernel,
        out_shape=jax.ShapeDtypeStruct((b_pad, c_pad), jnp.float32),
        grid=(b_pad // tb,),
        in_specs=in_specs,
        out_specs=pl.BlockSpec((tb, c_pad), lambda b: (b, 0)),
        compiler_params=pltpu.CompilerParams(
            dimension_semantics=("parallel",),     # megacore-shardable on v7x
            vmem_limit_bytes=32 * 1024 * 1024,     # footprint is a few MiB at TB=128
        ),
    )(x, *fixed)
    return out[:B, :num_classes]


# ------------------------------ parameters (torch layouts) --------------------

def init_params(key, num_classes=3):
    ks = jax.random.split(key, 10)

    def u(k, shape, fan_in):
        bound = 1.0 / float(np.sqrt(fan_in))
        return jax.random.uniform(k, shape, jnp.float32, -bound, bound)

    return dict(
        conv1_w=u(ks[0], (6, 3, 3, 3), 27),     conv1_b=u(ks[1], (6,), 27),
        conv2_w=u(ks[2], (16, 6, 3, 3), 54),    conv2_b=u(ks[3], (16,), 54),
        fc1_w=u(ks[4], (120, 16), 16),          fc1_b=u(ks[5], (120,), 16),
        fc2_w=u(ks[6], (84, 120), 120),         fc2_b=u(ks[7], (84,), 120),
        fc3_w=u(ks[8], (num_classes, 84), 84),  fc3_b=u(ks[9], (num_classes,), 84),
    )


# ------------------------------ pure-JAX reference (f32) ----------------------

def reference_forward(x_nchw, p):
    x = jnp.transpose(x_nchw, (0, 2, 3, 1)).astype(jnp.float32)          # NHWC
    w1 = jnp.transpose(p["conv1_w"], (2, 3, 1, 0))                       # HWIO
    y = jax.lax.conv_general_dilated(
        x, w1, (1, 1), "VALID", dimension_numbers=("NHWC", "HWIO", "NHWC"))
    y = jnp.maximum(y + p["conv1_b"][None, None, None, :], 0.0)
    y = jax.lax.reduce_window(y, -jnp.inf, jax.lax.max,
                              (1, 2, 2, 1), (1, 2, 2, 1), "VALID")
    w2 = jnp.transpose(p["conv2_w"], (2, 3, 1, 0))
    y = jax.lax.conv_general_dilated(
        y, w2, (1, 1), "VALID", dimension_numbers=("NHWC", "HWIO", "NHWC"))
    y = jnp.maximum(y + p["conv2_b"][None, None, None, :], 0.0)
    y = jax.lax.reduce_window(y, -jnp.inf, jax.lax.max,
                              (1, 2, 2, 1), (1, 2, 2, 1), "VALID")
    f = y.reshape(y.shape[0], -1)          # spatial is 1x1 -> matches torch.flatten
    h = jnp.maximum(f @ p["fc1_w"].T + p["fc1_b"], 0.0)
    h = jnp.maximum(h @ p["fc2_w"].T + p["fc2_b"], 0.0)
    return h @ p["fc3_w"].T + p["fc3_b"]


# ------------------------------ main -------------------------------------------

if __name__ == "__main__":
    key = jax.random.PRNGKey(0)
    pkey, xkey = jax.random.split(key)
    num_classes = 3
    params = init_params(pkey, num_classes=num_classes)
    consts = build_kernel_constants(params, num_classes)

    # 12x12 spatial: conv1->10, pool->5, conv2->3, pool->1  => flatten == 16 features.
    x = jax.random.normal(xkey, (2, 3, 12, 12), jnp.float32)

    fwd = jax.jit(backbone_forward, static_argnames=("num_classes",))
    out = jax.block_until_ready(fwd(x, consts, num_classes=num_classes))
    assert out.shape == (2, num_classes), out.shape

    ref = reference_forward(x, params)
    # bf16 matmul operands (f32 accumulation) -> loosened tolerance vs f32 reference.
    np.testing.assert_allclose(np.asarray(out), np.asarray(ref), rtol=3e-2, atol=3e-2)

    print("KERNEL_OK")
</pallas_src>

<mosaic_0001>
module attributes {stable_mosaic.version = 11 : i64} {
  func.func @_backbone_kernel(%arg0: i32, %arg1: memref<8x432xbf16, #tpu.memory_space<vmem>>, %arg2: memref<432x600xbf16, #tpu.memory_space<vmem>>, %arg3: memref<1x600xf32, #tpu.memory_space<vmem>>, %arg4: memref<4x600x150xbf16, #tpu.memory_space<vmem>>, %arg5: memref<150x144xbf16, #tpu.memory_space<vmem>>, %arg6: memref<1x144xf32, #tpu.memory_space<vmem>>, %arg7: memref<4x144x16xbf16, #tpu.memory_space<vmem>>, %arg8: memref<16x120xbf16, #tpu.memory_space<vmem>>, %arg9: memref<1x120xf32, #tpu.memory_space<vmem>>, %arg10: memref<120x84xbf16, #tpu.memory_space<vmem>>, %arg11: memref<1x84xf32, #tpu.memory_space<vmem>>, %arg12: memref<84x128xbf16, #tpu.memory_space<vmem>>, %arg13: memref<1x128xf32, #tpu.memory_space<vmem>>, %arg14: memref<8x128xf32, #tpu.memory_space<vmem>>) attributes {dimension_semantics = [#tpu.dimension_semantics<parallel>], iteration_bounds = array<i64: 1>, scalar_prefetch = 0 : i64, scratch_operands = 0 : i64, tpu.core_type = #tpu.core_type<tc>, window_params = [{transform_indices = @transform_0, window_bounds = array<i64: 8, 432>}, {pipeline_mode = #tpu.pipeline_mode<synchronous>, transform_indices = @transform_1, window_bounds = array<i64: 432, 600>}, {pipeline_mode = #tpu.pipeline_mode<synchronous>, transform_indices = @transform_2, window_bounds = array<i64: 1, 600>}, {pipeline_mode = #tpu.pipeline_mode<synchronous>, transform_indices = @transform_3, window_bounds = array<i64: 4, 600, 150>}, {pipeline_mode = #tpu.pipeline_mode<synchronous>, transform_indices = @transform_4, window_bounds = array<i64: 150, 144>}, {pipeline_mode = #tpu.pipeline_mode<synchronous>, transform_indices = @transform_5, window_bounds = array<i64: 1, 144>}, {pipeline_mode = #tpu.pipeline_mode<synchronous>, transform_indices = @transform_6, window_bounds = array<i64: 4, 144, 16>}, {pipeline_mode = #tpu.pipeline_mode<synchronous>, transform_indices = @transform_7, window_bounds = array<i64: 16, 120>}, {pipeline_mode = #tpu.pipeline_mode<synchronous>, transform_indices = @transform_8, window_bounds = array<i64: 1, 120>}, {pipeline_mode = #tpu.pipeline_mode<synchronous>, transform_indices = @transform_9, window_bounds = array<i64: 120, 84>}, {pipeline_mode = #tpu.pipeline_mode<synchronous>, transform_indices = @transform_10, window_bounds = array<i64: 1, 84>}, {pipeline_mode = #tpu.pipeline_mode<synchronous>, transform_indices = @transform_11, window_bounds = array<i64: 84, 128>}, {pipeline_mode = #tpu.pipeline_mode<synchronous>, transform_indices = @transform_12, window_bounds = array<i64: 1, 128>}, {transform_indices = @transform_13, window_bounds = array<i64: 8, 128>}]} {
    %c0 = arith.constant 0 : index
    %c0_0 = arith.constant 0 : index
    %0 = vector.load %arg1[%c0, %c0_0] : memref<8x432xbf16, #tpu.memory_space<vmem>>, vector<8x432xbf16>
    %c0_1 = arith.constant 0 : index
    %c0_2 = arith.constant 0 : index
    %1 = vector.load %arg2[%c0_1, %c0_2] : memref<432x600xbf16, #tpu.memory_space<vmem>>, vector<432x600xbf16>
    %cst = arith.constant dense<0.000000e+00> : vector<8x600xf32>
    %2 = tpu.matmul %0, %1, %cst {dimension_numbers = #tpu.dot_dimension_numbers<[1], [0], [0], [1], [0, 0, 1, 1], [], []>} : vector<8x432xbf16>, vector<432x600xbf16>, vector<8x600xf32> -> vector<8x600xf32>
    %c0_3 = arith.constant 0 : index
    %c0_4 = arith.constant 0 : index
    %3 = vector.load %arg3[%c0_3, %c0_4] : memref<1x600xf32, #tpu.memory_space<vmem>>, vector<1x600xf32>
    %4 = vector.broadcast %3 : vector<1x600xf32> to vector<8x600xf32>
    %5 = arith.addf %2, %4 : vector<8x600xf32>
    %cst_5 = arith.constant 0.000000e+00 : f32
    %6 = vector.broadcast %cst_5 : f32 to vector<8x600xf32>
    %7 = arith.maximumf %5, %6 : vector<8x600xf32>
    %8 = arith.truncf %7 : vector<8x600xf32> to vector<8x600xbf16>
    %c0_6 = arith.constant 0 : index
    %c0_7 = arith.constant 0 : index
    %c0_8 = arith.constant 0 : index
    %9 = vector.load %arg4[%c0_6, %c0_7, %c0_8] : memref<4x600x150xbf16, #tpu.memory_space<vmem>>, vector<1x600x150xbf16>
    %10 = vector.shape_cast %9 : vector<1x600x150xbf16> to vector<600x150xbf16>
    %cst_9 = arith.constant dense<0.000000e+00> : vector<8x150xf32>
    %11 = tpu.matmul %8, %10, %cst_9 {dimension_numbers = #tpu.dot_dimension_numbers<[1], [0], [0], [1], [0, 0, 1, 1], [], []>} : vector<8x600xbf16>, vector<600x150xbf16>, vector<8x150xf32> -> vector<8x150xf32>
    %c1 = arith.constant 1 : index
    %c0_10 = arith.constant 0 : index
    %c0_11 = arith.constant 0 : index
    %12 = vector.load %arg4[%c1, %c0_10, %c0_11] : memref<4x600x150xbf16, #tpu.memory_space<vmem>>, vector<1x600x150xbf16>
    %13 = vector.shape_cast %12 : vector<1x600x150xbf16> to vector<600x150xbf16>
    %cst_12 = arith.constant dense<0.000000e+00> : vector<8x150xf32>
    %14 = tpu.matmul %8, %13, %cst_12 {dimension_numbers = #tpu.dot_dimension_numbers<[1], [0], [0], [1], [0, 0, 1, 1], [], []>} : vector<8x600xbf16>, vector<600x150xbf16>, vector<8x150xf32> -> vector<8x150xf32>
    %15 = arith.maximumf %11, %14 : vector<8x150xf32>
    %c2 = arith.constant 2 : index
    %c0_13 = arith.constant 0 : index
    %c0_14 = arith.constant 0 : index
    %16 = vector.load %arg4[%c2, %c0_13, %c0_14] : memref<4x600x150xbf16, #tpu.memory_space<vmem>>, vector<1x600x150xbf16>
    %17 = vector.shape_cast %16 : vector<1x600x150xbf16> to vector<600x150xbf16>
    %cst_15 = arith.constant dense<0.000000e+00> : vector<8x150xf32>
    %18 = tpu.matmul %8, %17, %cst_15 {dimension_numbers = #tpu.dot_dimension_numbers<[1], [0], [0], [1], [0, 0, 1, 1], [], []>} : vector<8x600xbf16>, vector<600x150xbf16>, vector<8x150xf32> -> vector<8x150xf32>
    %19 = arith.maximumf %15, %18 : vector<8x150xf32>
    %c3 = arith.constant 3 : index
    %c0_16 = arith.constant 0 : index
    %c0_17 = arith.constant 0 : index
    %20 = vector.load %arg4[%c3, %c0_16, %c0_17] : memref<4x600x150xbf16, #tpu.memory_space<vmem>>, vector<1x600x150xbf16>
    %21 = vector.shape_cast %20 : vector<1x600x150xbf16> to vector<600x150xbf16>
    %cst_18 = arith.constant dense<0.000000e+00> : vector<8x150xf32>
    %22 = tpu.matmul %8, %21, %cst_18 {dimension_numbers = #tpu.dot_dimension_numbers<[1], [0], [0], [1], [0, 0, 1, 1], [], []>} : vector<8x600xbf16>, vector<600x150xbf16>, vector<8x150xf32> -> vector<8x150xf32>
    %23 = arith.maximumf %19, %22 : vector<8x150xf32>
    %24 = arith.truncf %23 : vector<8x150xf32> to vector<8x150xbf16>
    %c0_19 = arith.constant 0 : index
    %c0_20 = arith.constant 0 : index
    %25 = vector.load %arg5[%c0_19, %c0_20] : memref<150x144xbf16, #tpu.memory_space<vmem>>, vector<150x144xbf16>
    %cst_21 = arith.constant dense<0.000000e+00> : vector<8x144xf32>
    %26 = tpu.matmul %24, %25, %cst_21 {dimension_numbers = #tpu.dot_dimension_numbers<[1], [0], [0], [1], [0, 0, 1, 1], [], []>} : vector<8x150xbf16>, vector<150x144xbf16>, vector<8x144xf32> -> vector<8x144xf32>
    %c0_22 = arith.constant 0 : index
    %c0_23 = arith.constant 0 : index
    %27 = vector.load %arg6[%c0_22, %c0_23] : memref<1x144xf32, #tpu.memory_space<vmem>>, vector<1x144xf32>
    %28 = vector.broadcast %27 : vector<1x144xf32> to vector<8x144xf32>
    %29 = arith.addf %26, %28 : vector<8x144xf32>
    %cst_24 = arith.constant 0.000000e+00 : f32
    %30 = vector.broadcast %cst_24 : f32 to vector<8x144xf32>
    %31 = arith.maximumf %29, %30 : vector<8x144xf32>
    %32 = arith.truncf %31 : vector<8x144xf32> to vector<8x144xbf16>
    %c0_25 = arith.constant 0 : index
    %c0_26 = arith.constant 0 : index
    %c0_27 = arith.constant 0 : index
    %33 = vector.load %arg7[%c0_25, %c0_26, %c0_27] : memref<4x144x16xbf16, #tpu.memory_space<vmem>>, vector<1x144x16xbf16>
    %34 = vector.shape_cast %33 : vector<1x144x16xbf16> to vector<144x16xbf16>
    %cst_28 = arith.constant dense<0.000000e+00> : vector<8x16xf32>
    %35 = tpu.matmul %32, %34, %cst_28 {dimension_numbers = #tpu.dot_dimension_numbers<[1], [0], [0], [1], [0, 0, 1, 1], [], []>} : vector<8x144xbf16>, vector<144x16xbf16>, vector<8x16xf32> -> vector<8x16xf32>
    %c1_29 = arith.constant 1 : index
    %c0_30 = arith.constant 0 : index
    %c0_31 = arith.constant 0 : index
    %36 = vector.load %arg7[%c1_29, %c0_30, %c0_31] : memref<4x144x16xbf16, #tpu.memory_space<vmem>>, vector<1x144x16xbf16>
    %37 = vector.shape_cast %36 : vector<1x144x16xbf16> to vector<144x16xbf16>
    %cst_32 = arith.constant dense<0.000000e+00> : vector<8x16xf32>
    %38 = tpu.matmul %32, %37, %cst_32 {dimension_numbers = #tpu.dot_dimension_numbers<[1], [0], [0], [1], [0, 0, 1, 1], [], []>} : vector<8x144xbf16>, vector<144x16xbf16>, vector<8x16xf32> -> vector<8x16xf32>
    %39 = arith.maximumf %35, %38 : vector<8x16xf32>
    %c2_33 = arith.constant 2 : index
    %c0_34 = arith.constant 0 : index
    %c0_35 = arith.constant 0 : index
    %40 = vector.load %arg7[%c2_33, %c0_34, %c0_35] : memref<4x144x16xbf16, #tpu.memory_space<vmem>>, vector<1x144x16xbf16>
    %41 = vector.shape_cast %40 : vector<1x144x16xbf16> to vector<144x16xbf16>
    %cst_36 = arith.constant dense<0.000000e+00> : vector<8x16xf32>
    %42 = tpu.matmul %32, %41, %cst_36 {dimension_numbers = #tpu.dot_dimension_numbers<[1], [0], [0], [1], [0, 0, 1, 1], [], []>} : vector<8x144xbf16>, vector<144x16xbf16>, vector<8x16xf32> -> vector<8x16xf32>
    %43 = arith.maximumf %39, %42 : vector<8x16xf32>
    %c3_37 = arith.constant 3 : index
    %c0_38 = arith.constant 0 : index
    %c0_39 = arith.constant 0 : index
    %44 = vector.load %arg7[%c3_37, %c0_38, %c0_39] : memref<4x144x16xbf16, #tpu.memory_space<vmem>>, vector<1x144x16xbf16>
    %45 = vector.shape_cast %44 : vector<1x144x16xbf16> to vector<144x16xbf16>
    %cst_40 = arith.constant dense<0.000000e+00> : vector<8x16xf32>
    %46 = tpu.matmul %32, %45, %cst_40 {dimension_numbers = #tpu.dot_dimension_numbers<[1], [0], [0], [1], [0, 0, 1, 1], [], []>} : vector<8x144xbf16>, vector<144x16xbf16>, vector<8x16xf32> -> vector<8x16xf32>
    %47 = arith.maximumf %43, %46 : vector<8x16xf32>
    %48 = arith.truncf %47 : vector<8x16xf32> to vector<8x16xbf16>
    %c0_41 = arith.constant 0 : index
    %c0_42 = arith.constant 0 : index
    %49 = vector.load %arg8[%c0_41, %c0_42] : memref<16x120xbf16, #tpu.memory_space<vmem>>, vector<16x120xbf16>
    %cst_43 = arith.constant dense<0.000000e+00> : vector<8x120xf32>
    %50 = tpu.matmul %48, %49, %cst_43 {dimension_numbers = #tpu.dot_dimension_numbers<[1], [0], [0], [1], [0, 0, 1, 1], [], []>} : vector<8x16xbf16>, vector<16x120xbf16>, vector<8x120xf32> -> vector<8x120xf32>
    %c0_44 = arith.constant 0 : index
    %c0_45 = arith.constant 0 : index
    %51 = vector.load %arg9[%c0_44, %c0_45] : memref<1x120xf32, #tpu.memory_space<vmem>>, vector<1x120xf32>
    %52 = vector.broadcast %51 : vector<1x120xf32> to vector<8x120xf32>
    %53 = arith.addf %50, %52 : vector<8x120xf32>
    %cst_46 = arith.constant 0.000000e+00 : f32
    %54 = vector.broadcast %cst_46 : f32 to vector<8x120xf32>
    %55 = arith.maximumf %53, %54 : vector<8x120xf32>
    %56 = arith.truncf %55 : vector<8x120xf32> to vector<8x120xbf16>
    %c0_47 = arith.constant 0 : index
    %c0_48 = arith.constant 0 : index
    %57 = vector.load %arg10[%c0_47, %c0_48] : memref<120x84xbf16, #tpu.memory_space<vmem>>, vector<120x84xbf16>
    %cst_49 = arith.constant dense<0.000000e+00> : vector<8x84xf32>
    %58 = tpu.matmul %56, %57, %cst_49 {dimension_numbers = #tpu.dot_dimension_numbers<[1], [0], [0], [1], [0, 0, 1, 1], [], []>} : vector<8x120xbf16>, vector<120x84xbf16>, vector<8x84xf32> -> vector<8x84xf32>
    %c0_50 = arith.constant 0 : index
    %c0_51 = arith.constant 0 : index
    %59 = vector.load %arg11[%c0_50, %c0_51] : memref<1x84xf32, #tpu.memory_space<vmem>>, vector<1x84xf32>
    %60 = vector.broadcast %59 : vector<1x84xf32> to vector<8x84xf32>
    %61 = arith.addf %58, %60 : vector<8x84xf32>
    %cst_52 = arith.constant 0.000000e+00 : f32
    %62 = vector.broadcast %cst_52 : f32 to vector<8x84xf32>
    %63 = arith.maximumf %61, %62 : vector<8x84xf32>
    %64 = arith.truncf %63 : vector<8x84xf32> to vector<8x84xbf16>
    %c0_53 = arith.constant 0 : index
    %c0_54 = arith.constant 0 : index
    %65 = vector.load %arg12[%c0_53, %c0_54] : memref<84x128xbf16, #tpu.memory_space<vmem>>, vector<84x128xbf16>
    %cst_55 = arith.constant dense<0.000000e+00> : vector<8x128xf32>
    %66 = tpu.matmul %64, %65, %cst_55 {dimension_numbers = #tpu.dot_dimension_numbers<[1], [0], [0], [1], [0, 0, 1, 1], [], []>} : vector<8x84xbf16>, vector<84x128xbf16>, vector<8x128xf32> -> vector<8x128xf32>
    %c0_56 = arith.constant 0 : index
    %c0_57 = arith.constant 0 : index
    %67 = vector.load %arg13[%c0_56, %c0_57] : memref<1x128xf32, #tpu.memory_space<vmem>>, vector<1x128xf32>
    %68 = vector.broadcast %67 : vector<1x128xf32> to vector<8x128xf32>
    %69 = arith.addf %66, %68 : vector<8x128xf32>
    %c0_58 = arith.constant 0 : index
    %c0_59 = arith.constant 0 : index
    %70 = vector.load %arg14[%c0_58, %c0_59] : memref<8x128xf32, #tpu.memory_space<vmem>>, vector<8x128xf32>
    tpu.vector_store %arg14[%c0_58, %c0_59], %69 {strides = array<i32>} : memref<8x128xf32, #tpu.memory_space<vmem>>, vector<8x128xf32>,
    return
  }
  func.func @transform_0(%arg0: i32) -> (i32, i32) {
    %c0_i32 = arith.constant 0 : i32
    %c0_i32_0 = arith.constant 0 : i32
    return %arg0, %c0_i32 : i32, i32
  }
  func.func @transform_1(%arg0: i32) -> (i32, i32) {
    %c0_i32 = arith.constant 0 : i32
    %c0_i32_0 = arith.constant 0 : i32
    %c0_i32_1 = arith.constant 0 : i32
    return %c0_i32, %c0_i32_0 : i32, i32
  }
  func.func @transform_2(%arg0: i32) -> (i32, i32) {
    %c0_i32 = arith.constant 0 : i32
    %c0_i32_0 = arith.constant 0 : i32
    %c0_i32_1 = arith.constant 0 : i32
    return %c0_i32, %c0_i32_0 : i32, i32
  }
  func.func @transform_3(%arg0: i32) -> (i32, i32, i32) {
    %c0_i32 = arith.constant 0 : i32
    %c0_i32_0 = arith.constant 0 : i32
    %c0_i32_1 = arith.constant 0 : i32
    %c0_i32_2 = arith.constant 0 : i32
    return %c0_i32, %c0_i32_0, %c0_i32_1 : i32, i32, i32
  }
  func.func @transform_4(%arg0: i32) -> (i32, i32) {
    %c0_i32 = arith.constant 0 : i32
    %c0_i32_0 = arith.constant 0 : i32
    %c0_i32_1 = arith.constant 0 : i32
    return %c0_i32, %c0_i32_0 : i32, i32
  }
  func.func @transform_5(%arg0: i32) -> (i32, i32) {
    %c0_i32 = arith.constant 0 : i32
    %c0_i32_0 = arith.constant 0 : i32
    %c0_i32_1 = arith.constant 0 : i32
    return %c0_i32, %c0_i32_0 : i32, i32
  }
  func.func @transform_6(%arg0: i32) -> (i32, i32, i32) {
    %c0_i32 = arith.constant 0 : i32
    %c0_i32_0 = arith.constant 0 : i32
    %c0_i32_1 = arith.constant 0 : i32
    %c0_i32_2 = arith.constant 0 : i32
    return %c0_i32, %c0_i32_0, %c0_i32_1 : i32, i32, i32
  }
  func.func @transform_7(%arg0: i32) -> (i32, i32) {
    %c0_i32 = arith.constant 0 : i32
    %c0_i32_0 = arith.constant 0 : i32
    %c0_i32_1 = arith.constant 0 : i32
    return %c0_i32, %c0_i32_0 : i32, i32
  }
  func.func @transform_8(%arg0: i32) -> (i32, i32) {
    %c0_i32 = arith.constant 0 : i32
    %c0_i32_0 = arith.constant 0 : i32
    %c0_i32_1 = arith.constant 0 : i32
    return %c0_i32, %c0_i32_0 : i32, i32
  }
  func.func @transform_9(%arg0: i32) -> (i32, i32) {
    %c0_i32 = arith.constant 0 : i32
    %c0_i32_0 = arith.constant 0 : i32
    %c0_i32_1 = arith.constant 0 : i32
    return %c0_i32, %c0_i32_0 : i32, i32
  }
  func.func @transform_10(%arg0: i32) -> (i32, i32) {
    %c0_i32 = arith.constant 0 : i32
    %c0_i32_0 = arith.constant 0 : i32
    %c0_i32_1 = arith.constant 0 : i32
    return %c0_i32, %c0_i32_0 : i32, i32
  }
  func.func @transform_11(%arg0: i32) -> (i32, i32) {
    %c0_i32 = arith.constant 0 : i32
    %c0_i32_0 = arith.constant 0 : i32
    %c0_i32_1 = arith.constant 0 : i32
    return %c0_i32, %c0_i32_0 : i32, i32
  }
  func.func @transform_12(%arg0: i32) -> (i32, i32) {
    %c0_i32 = arith.constant 0 : i32
    %c0_i32_0 = arith.constant 0 : i32
    %c0_i32_1 = arith.constant 0 : i32
    return %c0_i32, %c0_i32_0 : i32, i32
  }
  func.func @transform_13(%arg0: i32) -> (i32, i32) {
    %c0_i32 = arith.constant 0 : i32
    %c0_i32_0 = arith.constant 0 : i32
    return %arg0, %c0_i32 : i32, i32
  }
}

</mosaic_0001>

<llo_original>
// kernel: backbone_forward.1
$region0: #{backbone_forward.1}
  #allocation0 [shape = 'u32[]', space=smem, size = 0x4, offset = 0x4, fixed_abs, tag = 'smem constant byte address 0x4 - core index']
  #allocation1 [shape = 'u32[144,128]{1,0:T(1,128)}', space=vmem, size = 0x12000, scoped, tag = 'internal scratch']
  %s0 = inlined_call_operand.vmem [shape: bf16[8,432], index: 0, kind: input, shape index: {}]
  %s1 = inlined_call_operand.vmem [shape: bf16[432,600], index: 1, kind: input, shape index: {}]
  %s2 = inlined_call_operand.vmem [shape: f32[1,600], index: 2, kind: input, shape index: {}]
  %s3 = inlined_call_operand.vmem [shape: bf16[4,600,150], index: 3, kind: input, shape index: {}]
  %s4 = inlined_call_operand.vmem [shape: bf16[150,144], index: 4, kind: input, shape index: {}]
  %s5 = inlined_call_operand.vmem [shape: f32[1,144], index: 5, kind: input, shape index: {}]
  %s6 = inlined_call_operand.vmem [shape: bf16[4,144,16], index: 6, kind: input, shape index: {}]
  %s7 = inlined_call_operand.vmem [shape: bf16[16,120], index: 7, kind: input, shape index: {}]
  %s8 = inlined_call_operand.vmem [shape: f32[1,120], index: 8, kind: input, shape index: {}]
  %s9 = inlined_call_operand.vmem [shape: bf16[120,84], index: 9, kind: input, shape index: {}]
  %s10 = inlined_call_operand.vmem [shape: f32[1,84], index: 10, kind: input, shape index: {}]
  %s11 = inlined_call_operand.vmem [shape: bf16[84,128], index: 11, kind: input, shape index: {}]
  %s12 = inlined_call_operand.vmem [shape: f32[1,128], index: 12, kind: input, shape index: {}]
  %s13 = inlined_call_operand.vmem [shape: f32[8,128], index: 13, kind: output, shape index: {}]
  %s14 = sld [smem:[#allocation0]]
  $region62: #{backbone_forward.1} parent=0
    _
  %s16 = ssub.s32 1, %s14
  %s17 = scalar_select 0, %s16, %s14
  // Predicated region
  $region2: #{backbone_forward.1} parent=0 // pred_check
    _
  $region3: #{backbone_forward.1} parent=0 // pred_check_branch
    %19 = sbr.rel (0) target = $region5
  $region4: #{backbone_forward.1} parent=0 // pred_region
    _
  $region5: #{backbone_forward.1} parent=0 // pred_fallthru
    _
  // Predicated region
  $region6: #{backbone_forward.1} parent=0 // pred_check
    _
  $region7: #{backbone_forward.1} parent=0 // pred_check_branch
    %21 = sbr.rel (0) target = $region9
  $region8: #{backbone_forward.1} parent=0 // pred_region
    _
  $region9: #{backbone_forward.1} parent=0 // pred_fallthru
    _
  // Predicated region
  $region10: #{backbone_forward.1} parent=0 // pred_check
    _
  $region11: #{backbone_forward.1} parent=0 // pred_check_branch
    %23 = sbr.rel (0) target = $region13
  $region12: #{backbone_forward.1} parent=0 // pred_region
    _
  $region13: #{backbone_forward.1} parent=0 // pred_fallthru
    _
  // Predicated region
  $region14: #{backbone_forward.1} parent=0 // pred_check
    _
  $region15: #{backbone_forward.1} parent=0 // pred_check_branch
    %25 = sbr.rel (0) target = $region17
  $region16: #{backbone_forward.1} parent=0 // pred_region
    _
  $region17: #{backbone_forward.1} parent=0 // pred_fallthru
    _
  // Predicated region
  $region18: #{backbone_forward.1} parent=0 // pred_check
    _
  $region19: #{backbone_forward.1} parent=0 // pred_check_branch
    %27 = sbr.rel (0) target = $region21
  $region20: #{backbone_forward.1} parent=0 // pred_region
    _
  $region21: #{backbone_forward.1} parent=0 // pred_fallthru
    _
  // Predicated region
  $region22: #{backbone_forward.1} parent=0 // pred_check
    _
  $region23: #{backbone_forward.1} parent=0 // pred_check_branch
    %29 = sbr.rel (0) target = $region25
  $region24: #{backbone_forward.1} parent=0 // pred_region
    _
  $region25: #{backbone_forward.1} parent=0 // pred_fallthru
    _
  // Predicated region
  $region26: #{backbone_forward.1} parent=0 // pred_check
    _
  $region27: #{backbone_forward.1} parent=0 // pred_check_branch
    %31 = sbr.rel (0) target = $region29
  $region28: #{backbone_forward.1} parent=0 // pred_region
    _
  $region29: #{backbone_forward.1} parent=0 // pred_fallthru
    _
  // Predicated region
  $region30: #{backbone_forward.1} parent=0 // pred_check
    _
  $region31: #{backbone_forward.1} parent=0 // pred_check_branch
    %33 = sbr.rel (0) target = $region33
  $region32: #{backbone_forward.1} parent=0 // pred_region
    _
  $region33: #{backbone_forward.1} parent=0 // pred_fallthru
    _
  // Predicated region
  $region34: #{backbone_forward.1} parent=0 // pred_check
    _
  $region35: #{backbone_forward.1} parent=0 // pred_check_branch
    %35 = sbr.rel (0) target = $region37
  $region36: #{backbone_forward.1} parent=0 // pred_region
    _
  $region37: #{backbone_forward.1} parent=0 // pred_fallthru
    _
  // Predicated region
  $region38: #{backbone_forward.1} parent=0 // pred_check
    _
  $region39: #{backbone_forward.1} parent=0 // pred_check_branch
    %37 = sbr.rel (0) target = $region41
  $region40: #{backbone_forward.1} parent=0 // pred_region
    _
  $region41: #{backbone_forward.1} parent=0 // pred_fallthru
    _
  // Predicated region
  $region42: #{backbone_forward.1} parent=0 // pred_check
    _
  $region43: #{backbone_forward.1} parent=0 // pred_check_branch
    %39 = sbr.rel (0) target = $region45
  $region44: #{backbone_forward.1} parent=0 // pred_region
    _
  $region45: #{backbone_forward.1} parent=0 // pred_fallthru
    _
  // Predicated region
  $region46: #{backbone_forward.1} parent=0 // pred_check
    _
  $region47: #{backbone_forward.1} parent=0 // pred_check_branch
    %41 = sbr.rel (0) target = $region49
  $region48: #{backbone_forward.1} parent=0 // pred_region
    _
  $region49: #{backbone_forward.1} parent=0 // pred_fallthru
    _
  // Predicated region
  $region50: #{backbone_forward.1} parent=0 // pred_check
    _
  $region51: #{backbone_forward.1} parent=0 // pred_check_branch
    %43 = sbr.rel (0) target = $region53
  $region52: #{backbone_forward.1} parent=0 // pred_region
    _
  $region53: #{backbone_forward.1} parent=0 // pred_fallthru
    _
  %v45 = vld [vmem:[%s0] sm:$0xff]
  %v46 = vld [vmem:[%s0 + $0x8] sm:$0xff]
  %v47 = vld [vmem:[%s1] sm:$0xff]
  %v48 = vld [vmem:[%s1 + $0x8] sm:$0xff]
  %v49 = vld [vmem:[%s1 + $0x10] sm:$0xf]
  %v50 = vld [vmem:[%s1 + $0x14] sm:$0xff]
  %v51 = vld [vmem:[%s1 + $0x1c] sm:$0xff]
  %v52 = vld [vmem:[%s1 + $0x24] sm:$0xf]
  %v53 = vld [vmem:[%s1 + $0x28] sm:$0xff]
  %v54 = vld [vmem:[%s1 + $0x30] sm:$0xff]
  %v55 = vld [vmem:[%s1 + $0x38] sm:$0xf]
  %v56 = vld [vmem:[%s1 + $0x3c] sm:$0xff]
  %v57 = vld [vmem:[%s1 + $0x44] sm:$0xff]
  %v58 = vld [vmem:[%s1 + $0x4c] sm:$0xf]
  %v59 = vld [vmem:[%s1 + $0x50] sm:$0xff]
  %v60 = vld [vmem:[%s1 + $0x58] sm:$0xff]
  %v61 = vld [vmem:[%s1 + $0x60] sm:$0xf]
  %v62 = vld [vmem:[%s1 + $0x64] sm:$0xff]
  %v63 = vld [vmem:[%s1 + $0x6c] sm:$0xff]
  %v64 = vld [vmem:[%s1 + $0x74] sm:$0xf]
  %v65 = vld [vmem:[%s1 + $0x78] sm:$0xff]
  %v66 = vld [vmem:[%s1 + $0x80] sm:$0xff]
  %v67 = vld [vmem:[%s1 + $0x88] sm:$0xf]
  %v68 = vld [vmem:[%s1 + $0x8c] sm:$0xff]
  %v69 = vld [vmem:[%s1 + $0x94] sm:$0xff]
  %v70 = vld [vmem:[%s1 + $0x9c] sm:$0xf]
  %v71 = vld [vmem:[%s1 + $0xa0] sm:$0xff]
  %v72 = vld [vmem:[%s1 + $0xa8] sm:$0xff]
  %v73 = vld [vmem:[%s1 + $0xb0] sm:$0xf]
  %v74 = vld [vmem:[%s1 + $0xb4] sm:$0xff]
  %v75 = vld [vmem:[%s1 + $0xbc] sm:$0xff]
  %v76 = vld [vmem:[%s1 + $0xc4] sm:$0xf]
  %v77 = vld [vmem:[%s1 + $0xc8] sm:$0xff]
  %v78 = vld [vmem:[%s1 + $0xd0] sm:$0xff]
  %v79 = vld [vmem:[%s1 + $0xd8] sm:$0xf]
  %v80 = vld [vmem:[%s1 + $0xdc] sm:$0xff]
  %v81 = vld [vmem:[%s1 + $0xe4] sm:$0xff]
  %v82 = vld [vmem:[%s1 + $0xec] sm:$0xf]
  %v83 = vld [vmem:[%s1 + $0xf0] sm:$0xff]
  %v84 = vld [vmem:[%s1 + $0xf8] sm:$0xff]
  %v85 = vld [vmem:[%s1 + $0x100] sm:$0xf]
  %v86 = vld [vmem:[%s1 + $0x104] sm:$0xff]
  %v87 = vld [vmem:[%s1 + $0x10c] sm:$0xff]
  %v88 = vld [vmem:[%s1 + $0x114] sm:$0xf]
  %v89 = vld [vmem:[%s1 + $0x118] sm:$0xff]
  %v90 = vld [vmem:[%s1 + $0x120] sm:$0xff]
  %v91 = vld [vmem:[%s1 + $0x128] sm:$0xf]
  %v92 = vld [vmem:[%s1 + $0x12c] sm:$0xff]
  %v93 = vld [vmem:[%s1 + $0x134] sm:$0xff]
  %v94 = vld [vmem:[%s1 + $0x13c] sm:$0xf]
  %v95 = vld [vmem:[%s1 + $0x140] sm:$0xff]
  %v96 = vld [vmem:[%s1 + $0x148] sm:$0xff]
  %v97 = vld [vmem:[%s1 + $0x150] sm:$0xf]
  %v98 = vld [vmem:[%s1 + $0x154] sm:$0xff]
  %v99 = vld [vmem:[%s1 + $0x15c] sm:$0xff]
  %v100 = vld [vmem:[%s1 + $0x164] sm:$0xf]
  %v101 = vld [vmem:[%s1 + $0x168] sm:$0xff]
  %v102 = vld [vmem:[%s1 + $0x170] sm:$0xff]
  %v103 = vld [vmem:[%s1 + $0x178] sm:$0xf]
  %v104 = vld [vmem:[%s1 + $0x17c] sm:$0xff]
  %v105 = vld [vmem:[%s1 + $0x184] sm:$0xff]
  %v106 = vld [vmem:[%s1 + $0x18c] sm:$0xf]
  %v107 = vld [vmem:[%s1 + $0x190] sm:$0xff]
  %v108 = vld [vmem:[%s1 + $0x198] sm:$0xff]
  %v109 = vld [vmem:[%s1 + $0x1a0] sm:$0xf]
  %v110 = vld [vmem:[%s1 + $0x1a4] sm:$0xff]
  %v111 = vld [vmem:[%s1 + $0x1ac] sm:$0xff]
  %v112 = vld [vmem:[%s1 + $0x1b4] sm:$0xf]
  %v113 = vld [vmem:[%s1 + $0x1b8] sm:$0xff]
  %v114 = vld [vmem:[%s1 + $0x1c0] sm:$0xff]
  %v115 = vld [vmem:[%s1 + $0x1c8] sm:$0xf]
  %v116 = vld [vmem:[%s1 + $0x1cc] sm:$0xff]
  %v117 = vld [vmem:[%s1 + $0x1d4] sm:$0xff]
  %v118 = vld [vmem:[%s1 + $0x1dc] sm:$0xf]
  %v119 = vld [vmem:[%s1 + $0x1e0] sm:$0xff]
  %v120 = vld [vmem:[%s1 + $0x1e8] sm:$0xff]
  %v121 = vld [vmem:[%s1 + $0x1f0] sm:$0xf]
  %v122 = vld [vmem:[%s1 + $0x1f4] sm:$0xff]
  %v123 = vld [vmem:[%s1 + $0x1fc] sm:$0xff]
  %v124 = vld [vmem:[%s1 + $0x204] sm:$0xf]
  %v125 = vld [vmem:[%s1 + $0x208] sm:$0xff]
  %v126 = vld [vmem:[%s1 + $0x210] sm:$0xff]
  %v127 = vld [vmem:[%s1 + $0x218] sm:$0xf]
  %v128 = vld [vmem:[%s1 + $0x21c] sm:$0xff]
  %v129 = vld [vmem:[%s1 + $0x224] sm:$0xff]
  %v130 = vld [vmem:[%s1 + $0x22c] sm:$0xf]
  %v131 = vld [vmem:[%s1 + $0x230] sm:$0xff]
  %v132 = vld [vmem:[%s1 + $0x238] sm:$0xff]
  %v133 = vld [vmem:[%s1 + $0x240] sm:$0xf]
  %v134 = vld [vmem:[%s1 + $0x244] sm:$0xff]
  %v135 = vld [vmem:[%s1 + $0x24c] sm:$0xff]
  %v136 = vld [vmem:[%s1 + $0x254] sm:$0xf]
  %v137 = vld [vmem:[%s1 + $0x258] sm:$0xff]
  %v138 = vld [vmem:[%s1 + $0x260] sm:$0xff]
  %v139 = vld [vmem:[%s1 + $0x268] sm:$0xf]
  %v140 = vld [vmem:[%s1 + $0x26c] sm:$0xff]
  %v141 = vld [vmem:[%s1 + $0x274] sm:$0xff]
  %v142 = vld [vmem:[%s1 + $0x27c] sm:$0xf]
  %v143 = vld [vmem:[%s1 + $0x280] sm:$0xff]
  %v144 = vld [vmem:[%s1 + $0x288] sm:$0xff]
  %v145 = vld [vmem:[%s1 + $0x290] sm:$0xf]
  %v146 = vld [vmem:[%s1 + $0x294] sm:$0xff]
  %v147 = vld [vmem:[%s1 + $0x29c] sm:$0xff]
  %v148 = vld [vmem:[%s1 + $0x2a4] sm:$0xf]
  %v149 = vld [vmem:[%s1 + $0x2a8] sm:$0xff]
  %v150 = vld [vmem:[%s1 + $0x2b0] sm:$0xff]
  %v151 = vld [vmem:[%s1 + $0x2b8] sm:$0xf]
  %v152 = vld [vmem:[%s1 + $0x2bc] sm:$0xff]
  %v153 = vld [vmem:[%s1 + $0x2c4] sm:$0xff]
  %v154 = vld [vmem:[%s1 + $0x2cc] sm:$0xf]
  %v155 = vld [vmem:[%s1 + $0x2d0] sm:$0xff]
  %v156 = vld [vmem:[%s1 + $0x2d8] sm:$0xff]
  %v157 = vld [vmem:[%s1 + $0x2e0] sm:$0xf]
  %v158 = vld [vmem:[%s1 + $0x2e4] sm:$0xff]
  %v159 = vld [vmem:[%s1 + $0x2ec] sm:$0xff]
  %v160 = vld [vmem:[%s1 + $0x2f4] sm:$0xf]
  %v161 = vld [vmem:[%s1 + $0x2f8] sm:$0xff]
  %v162 = vld [vmem:[%s1 + $0x300] sm:$0xff]
  %v163 = vld [vmem:[%s1 + $0x308] sm:$0xf]
  %v164 = vld [vmem:[%s1 + $0x30c] sm:$0xff]
  %v165 = vld [vmem:[%s1 + $0x314] sm:$0xff]
  %v166 = vld [vmem:[%s1 + $0x31c] sm:$0xf]
  %v167 = vld [vmem:[%s1 + $0x320] sm:$0xff]
  %v168 = vld [vmem:[%s1 + $0x328] sm:$0xff]
  %v169 = vld [vmem:[%s1 + $0x330] sm:$0xf]
  %v170 = vld [vmem:[%s1 + $0x334] sm:$0xff]
  %v171 = vld [vmem:[%s1 + $0x33c] sm:$0xff]
  %v172 = vld [vmem:[%s1 + $0x344] sm:$0xf]
  %v173 = vld [vmem:[%s1 + $0x348] sm:$0xff]
  %v174 = vld [vmem:[%s1 + $0x350] sm:$0xff]
  %v175 = vld [vmem:[%s1 + $0x358] sm:$0xf]
  %v176 = vld [vmem:[%s1 + $0x35c] sm:$0xff]
  %v177 = vld [vmem:[%s1 + $0x364] sm:$0xff]
  %v178 = vld [vmem:[%s1 + $0x36c] sm:$0xf]
  %v179 = vld [vmem:[%s1 + $0x370] sm:$0xff]
  %v180 = vld [vmem:[%s1 + $0x378] sm:$0xff]
  %v181 = vld [vmem:[%s1 + $0x380] sm:$0xf]
  %v182 = vld [vmem:[%s1 + $0x384] sm:$0xff]
  %v183 = vld [vmem:[%s1 + $0x38c] sm:$0xff]
  %v184 = vld [vmem:[%s1 + $0x394] sm:$0xf]
  %v185 = vld [vmem:[%s1 + $0x398] sm:$0xff]
  %v186 = vld [vmem:[%s1 + $0x3a0] sm:$0xff]
  %v187 = vld [vmem:[%s1 + $0x3a8] sm:$0xf]
  %v188 = vld [vmem:[%s1 + $0x3ac] sm:$0xff]
  %v189 = vld [vmem:[%s1 + $0x3b4] sm:$0xff]
  %v190 = vld [vmem:[%s1 + $0x3bc] sm:$0xf]
  %v191 = vld [vmem:[%s1 + $0x3c0] sm:$0xff]
  %v192 = vld [vmem:[%s1 + $0x3c8] sm:$0xff]
  %v193 = vld [vmem:[%s1 + $0x3d0] sm:$0xf]
  %v194 = vld [vmem:[%s1 + $0x3d4] sm:$0xff]
  %v195 = vld [vmem:[%s1 + $0x3dc] sm:$0xff]
  %v196 = vld [vmem:[%s1 + $0x3e4] sm:$0xf]
  %v197 = vld [vmem:[%s1 + $0x3e8] sm:$0xff]
  %v198 = vld [vmem:[%s1 + $0x3f0] sm:$0xff]
  %v199 = vld [vmem:[%s1 + $0x3f8] sm:$0xf]
  %v200 = vld [vmem:[%s1 + $0x3fc] sm:$0xff]
  %v201 = vld [vmem:[%s1 + $0x404] sm:$0xff]
  %v202 = vld [vmem:[%s1 + $0x40c] sm:$0xf]
  %v203 = vld [vmem:[%s1 + $0x410] sm:$0xff]
  %v204 = vld [vmem:[%s1 + $0x418] sm:$0xff]
  %v205 = vld [vmem:[%s1 + $0x420] sm:$0xf]
  %v206 = vld [vmem:[%s1 + $0x424] sm:$0xff]
  %v207 = vld [vmem:[%s1 + $0x42c] sm:$0xff]
  %v208 = vld [vmem:[%s1 + $0x434] sm:$0xf]
  %v209 = vld [vmem:[%s2] sm:$0x1f]
  %v211 = vlaneseq
  %v212 = vshrl.u32 %v211, 7
  %v213 = vsub.s32 0, %v212
  %v214 = vrot.slane %v209, %v213
  %v215 = vlaneseq
  %v216 = vshrl.u32 %v215, 7
  %v217 = vsub.s32 1, %v216
  %v218 = vrot.slane %v209, %v217
  %v219 = vlaneseq
  %v220 = vshrl.u32 %v219, 7
  %v221 = vsub.s32 2, %v220
  %v222 = vrot.slane %v209, %v221
  %v223 = vlaneseq
  %v224 = vshrl.u32 %v223, 7
  %v225 = vsub.s32 3, %v224
  %v226 = vrot.slane %v209, %v225
  %v227 = vlaneseq
  %v228 = vshrl.u32 %v227, 7
  %v229 = vsub.s32 4, %v228
  %v230 = vrot.slane %v209, %v229
  %v238 = vunpack.c.l.b16 %v45
  %v239 = vunpack.c.h.b16 %v45
  %v240 = vunpack.c.l.b16 %v46
  %v241 = vunpack.c.h.b16 %v46
  %v242 = vpack.c.b16 %v238, %v238
  %v243 = vpack.c.b16 %v239, %v239
  %v244 = vpack.c.b16 %v240, %v240
  %v245 = vpack.c.b16 %v241, %v241
  %v411 = vunpack.c.l.b16 %v47
  %v412 = vunpack.c.h.b16 %v47
  %v413 = vunpack.c.l.b16 %v48
  %v414 = vunpack.c.h.b16 %v48
  %v415 = vunpack.c.l.b16 %v49
  %v416 = vunpack.c.l.b16 %v50
  %v417 = vunpack.c.h.b16 %v50
  %v418 = vunpack.c.l.b16 %v51
  %v419 = vunpack.c.h.b16 %v51
  %v420 = vunpack.c.l.b16 %v52
  %v421 = vunpack.c.l.b16 %v53
  %v422 = vunpack.c.h.b16 %v53
  %v423 = vunpack.c.l.b16 %v54
  %v424 = vunpack.c.h.b16 %v54
  %v425 = vunpack.c.l.b16 %v55
  %v426 = vunpack.c.l.b16 %v56
  %v427 = vunpack.c.h.b16 %v56
  %v428 = vunpack.c.l.b16 %v57
  %v429 = vunpack.c.h.b16 %v57
  %v430 = vunpack.c.l.b16 %v58
  %v431 = vunpack.c.l.b16 %v59
  %v432 = vunpack.c.h.b16 %v59
  %v433 = vunpack.c.l.b16 %v60
  %v434 = vunpack.c.h.b16 %v60
  %v435 = vunpack.c.l.b16 %v61
  %v436 = vunpack.c.l.b16 %v62
  %v437 = vunpack.c.h.b16 %v62
  %v438 = vunpack.c.l.b16 %v63
  %v439 = vunpack.c.h.b16 %v63
  %v440 = vunpack.c.l.b16 %v64
  %v441 = vunpack.c.l.b16 %v65
  %v442 = vunpack.c.h.b16 %v65
  %v443 = vunpack.c.l.b16 %v66
  %v444 = vunpack.c.h.b16 %v66
  %v445 = vunpack.c.l.b16 %v67
  %v446 = vunpack.c.l.b16 %v68
  %v447 = vunpack.c.h.b16 %v68
  %v448 = vunpack.c.l.b16 %v69
  %v449 = vunpack.c.h.b16 %v69
  %v450 = vunpack.c.l.b16 %v70
  %v451 = vunpack.c.l.b16 %v71
  %v452 = vunpack.c.h.b16 %v71
  %v453 = vunpack.c.l.b16 %v72
  %v454 = vunpack.c.h.b16 %v72
  %v455 = vunpack.c.l.b16 %v73
  %v456 = vunpack.c.l.b16 %v74
  %v457 = vunpack.c.h.b16 %v74
  %v458 = vunpack.c.l.b16 %v75
  %v459 = vunpack.c.h.b16 %v75
  %v460 = vunpack.c.l.b16 %v76
  %v461 = vunpack.c.l.b16 %v77
  %v462 = vunpack.c.h.b16 %v77
  %v463 = vunpack.c.l.b16 %v78
  %v464 = vunpack.c.h.b16 %v78
  %v465 = vunpack.c.l.b16 %v79
  %v466 = vunpack.c.l.b16 %v80
  %v467 = vunpack.c.h.b16 %v80
  %v468 = vunpack.c.l.b16 %v81
  %v469 = vunpack.c.h.b16 %v81
  %v470 = vunpack.c.l.b16 %v82
  %v471 = vunpack.c.l.b16 %v83
  %v472 = vunpack.c.h.b16 %v83
  %v473 = vunpack.c.l.b16 %v84
  %v474 = vunpack.c.h.b16 %v84
  %v475 = vunpack.c.l.b16 %v85
  %v476 = vunpack.c.l.b16 %v86
  %v477 = vunpack.c.h.b16 %v86
  %v478 = vunpack.c.l.b16 %v87
  %v479 = vunpack.c.h.b16 %v87
  %v480 = vunpack.c.l.b16 %v88
  %v481 = vunpack.c.l.b16 %v89
  %v482 = vunpack.c.h.b16 %v89
  %v483 = vunpack.c.l.b16 %v90
  %v484 = vunpack.c.h.b16 %v90
  %v485 = vunpack.c.l.b16 %v91
  %v486 = vunpack.c.l.b16 %v92
  %v487 = vunpack.c.h.b16 %v92
  %v488 = vunpack.c.l.b16 %v93
  %v489 = vunpack.c.h.b16 %v93
  %v490 = vunpack.c.l.b16 %v94
  %v491 = vunpack.c.l.b16 %v95
  %v492 = vunpack.c.h.b16 %v95
  %v493 = vunpack.c.l.b16 %v96
  %v494 = vunpack.c.h.b16 %v96
  %v495 = vunpack.c.l.b16 %v97
  %v496 = vunpack.c.l.b16 %v98
  %v497 = vunpack.c.h.b16 %v98
  %v498 = vunpack.c.l.b16 %v99
  %v499 = vunpack.c.h.b16 %v99
  %v500 = vunpack.c.l.b16 %v100
  %v501 = vunpack.c.l.b16 %v101
  %v502 = vunpack.c.h.b16 %v101
  %v503 = vunpack.c.l.b16 %v102
  %v504 = vunpack.c.h.b16 %v102
  %v505 = vunpack.c.l.b16 %v103
  %v506 = vunpack.c.l.b16 %v104
  %v507 = vunpack.c.h.b16 %v104
  %v508 = vunpack.c.l.b16 %v105
  %v509 = vunpack.c.h.b16 %v105
  %v510 = vunpack.c.l.b16 %v106
  %v511 = vunpack.c.l.b16 %v107
  %v512 = vunpack.c.h.b16 %v107
  %v513 = vunpack.c.l.b16 %v108
  %v514 = vunpack.c.h.b16 %v108
  %v515 = vunpack.c.l.b16 %v109
  %v516 = vunpack.c.l.b16 %v110
  %v517 = vunpack.c.h.b16 %v110
  %v518 = vunpack.c.l.b16 %v111
  %v519 = vunpack.c.h.b16 %v111
  %v520 = vunpack.c.l.b16 %v112
  %v521 = vunpack.c.l.b16 %v113
  %v522 = vunpack.c.h.b16 %v113
  %v523 = vunpack.c.l.b16 %v114
  %v524 = vunpack.c.h.b16 %v114
  %v525 = vunpack.c.l.b16 %v115
  %v526 = vunpack.c.l.b16 %v116
  %v527 = vunpack.c.h.b16 %v116
  %v528 = vunpack.c.l.b16 %v117
  %v529 = vunpack.c.h.b16 %v117
  %v530 = vunpack.c.l.b16 %v118
  %v531 = vunpack.c.l.b16 %v119
  %v532 = vunpack.c.h.b16 %v119
  %v533 = vunpack.c.l.b16 %v120
  %v534 = vunpack.c.h.b16 %v120
  %v535 = vunpack.c.l.b16 %v121
  %v536 = vunpack.c.l.b16 %v122
  %v537 = vunpack.c.h.b16 %v122
  %v538 = vunpack.c.l.b16 %v123
  %v539 = vunpack.c.h.b16 %v123
  %v540 = vunpack.c.l.b16 %v124
  %v541 = vunpack.c.l.b16 %v125
  %v542 = vunpack.c.h.b16 %v125
  %v543 = vunpack.c.l.b16 %v126
  %v544 = vunpack.c.h.b16 %v126
  %v545 = vunpack.c.l.b16 %v127
  %v546 = vunpack.c.l.b16 %v128
  %v547 = vunpack.c.h.b16 %v128
  %v548 = vunpack.c.l.b16 %v129
  %v549 = vunpack.c.h.b16 %v129
  %v550 = vunpack.c.l.b16 %v130
  %v551 = vunpack.c.l.b16 %v131
  %v552 = vunpack.c.h.b16 %v131
  %v553 = vunpack.c.l.b16 %v132
  %v554 = vunpack.c.h.b16 %v132
  %v555 = vunpack.c.l.b16 %v133
  %v556 = vunpack.c.l.b16 %v134
  %v557 = vunpack.c.h.b16 %v134
  %v558 = vunpack.c.l.b16 %v135
  %v559 = vunpack.c.h.b16 %v135
  %v560 = vunpack.c.l.b16 %v136
  %v561 = vunpack.c.l.b16 %v137
  %v562 = vunpack.c.h.b16 %v137
  %v563 = vunpack.c.l.b16 %v138
  %v564 = vunpack.c.h.b16 %v138
  %v565 = vunpack.c.l.b16 %v139
  %v566 = vunpack.c.l.b16 %v140
  %v567 = vunpack.c.h.b16 %v140
  %v568 = vunpack.c.l.b16 %v141
  %v569 = vunpack.c.h.b16 %v141
  %v570 = vunpack.c.l.b16 %v142
  %v571 = vunpack.c.l.b16 %v143
  %v572 = vunpack.c.h.b16 %v143
  %v573 = vunpack.c.l.b16 %v144
  %v574 = vunpack.c.h.b16 %v144
  %v575 = vunpack.c.l.b16 %v145
  %v576 = vunpack.c.l.b16 %v146
  %v577 = vunpack.c.h.b16 %v146
  %v578 = vunpack.c.l.b16 %v147
  %v579 = vunpack.c.h.b16 %v147
  %v580 = vunpack.c.l.b16 %v148
  %v581 = vunpack.c.l.b16 %v149
  %v582 = vunpack.c.h.b16 %v149
  %v583 = vunpack.c.l.b16 %v150
  %v584 = vunpack.c.h.b16 %v150
  %v585 = vunpack.c.l.b16 %v151
  %v586 = vunpack.c.l.b16 %v152
  %v587 = vunpack.c.h.b16 %v152
  %v588 = vunpack.c.l.b16 %v153
  %v589 = vunpack.c.h.b16 %v153
  %v590 = vunpack.c.l.b16 %v154
  %v591 = vunpack.c.l.b16 %v155
  %v592 = vunpack.c.h.b16 %v155
  %v593 = vunpack.c.l.b16 %v156
  %v594 = vunpack.c.h.b16 %v156
  %v595 = vunpack.c.l.b16 %v157
  %v596 = vunpack.c.l.b16 %v158
  %v597 = vunpack.c.h.b16 %v158
  %v598 = vunpack.c.l.b16 %v159
  %v599 = vunpack.c.h.b16 %v159
  %v600 = vunpack.c.l.b16 %v160
  %v601 = vunpack.c.l.b16 %v161
  %v602 = vunpack.c.h.b16 %v161
  %v603 = vunpack.c.l.b16 %v162
  %v604 = vunpack.c.h.b16 %v162
  %v605 = vunpack.c.l.b16 %v163
  %v606 = vunpack.c.l.b16 %v164
  %v607 = vunpack.c.h.b16 %v164
  %v608 = vunpack.c.l.b16 %v165
  %v609 = vunpack.c.h.b16 %v165
  %v610 = vunpack.c.l.b16 %v166
  %v611 = vunpack.c.l.b16 %v167
  %v612 = vunpack.c.h.b16 %v167
  %v613 = vunpack.c.l.b16 %v168
  %v614 = vunpack.c.h.b16 %v168
  %v615 = vunpack.c.l.b16 %v169
  %v616 = vunpack.c.l.b16 %v170
  %v617 = vunpack.c.h.b16 %v170
  %v618 = vunpack.c.l.b16 %v171
  %v619 = vunpack.c.h.b16 %v171
  %v620 = vunpack.c.l.b16 %v172
  %v621 = vunpack.c.l.b16 %v173
  %v622 = vunpack.c.h.b16 %v173
  %v623 = vunpack.c.l.b16 %v174
  %v624 = vunpack.c.h.b16 %v174
  %v625 = vunpack.c.l.b16 %v175
  %v626 = vunpack.c.l.b16 %v176
  %v627 = vunpack.c.h.b16 %v176
  %v628 = vunpack.c.l.b16 %v177
  %v629 = vunpack.c.h.b16 %v177
  %v630 = vunpack.c.l.b16 %v178
  %v631 = vunpack.c.l.b16 %v179
  %v632 = vunpack.c.h.b16 %v179
  %v633 = vunpack.c.l.b16 %v180
  %v634 = vunpack.c.h.b16 %v180
  %v635 = vunpack.c.l.b16 %v181
  %v636 = vunpack.c.l.b16 %v182
  %v637 = vunpack.c.h.b16 %v182
  %v638 = vunpack.c.l.b16 %v183
  %v639 = vunpack.c.h.b16 %v183
  %v640 = vunpack.c.l.b16 %v184
  %v641 = vunpack.c.l.b16 %v185
  %v642 = vunpack.c.h.b16 %v185
  %v643 = vunpack.c.l.b16 %v186
  %v644 = vunpack.c.h.b16 %v186
  %v645 = vunpack.c.l.b16 %v187
  %v646 = vunpack.c.l.b16 %v188
  %v647 = vunpack.c.h.b16 %v188
  %v648 = vunpack.c.l.b16 %v189
  %v649 = vunpack.c.h.b16 %v189
  %v650 = vunpack.c.l.b16 %v190
  %v651 = vunpack.c.l.b16 %v191
  %v652 = vunpack.c.h.b16 %v191
  %v653 = vunpack.c.l.b16 %v192
  %v654 = vunpack.c.h.b16 %v192
  %v655 = vunpack.c.l.b16 %v193
  %v656 = vunpack.c.l.b16 %v194
  %v657 = vunpack.c.h.b16 %v194
  %v658 = vunpack.c.l.b16 %v195
  %v659 = vunpack.c.h.b16 %v195
  %v660 = vunpack.c.l.b16 %v196
  %v661 = vunpack.c.l.b16 %v197
  %v662 = vunpack.c.h.b16 %v197
  %v663 = vunpack.c.l.b16 %v198
  %v664 = vunpack.c.h.b16 %v198
  %v665 = vunpack.c.l.b16 %v199
  %v666 = vunpack.c.l.b16 %v200
  %v667 = vunpack.c.h.b16 %v200
  %v668 = vunpack.c.l.b16 %v201
  %v669 = vunpack.c.h.b16 %v201
  %v670 = vunpack.c.l.b16 %v202
  %v671 = vunpack.c.l.b16 %v203
  %v672 = vunpack.c.h.b16 %v203
  %v673 = vunpack.c.l.b16 %v204
  %v674 = vunpack.c.h.b16 %v204
  %v675 = vunpack.c.l.b16 %v205
  %v676 = vunpack.c.l.b16 %v206
  %v677 = vunpack.c.h.b16 %v206
  %v678 = vunpack.c.l.b16 %v207
  %v679 = vunpack.c.h.b16 %v207
  %v680 = vunpack.c.l.b16 %v208
  %v681 = vpack.c.b16 %v416, %v411
  %v682 = vpack.c.b16 %v417, %v412
  %v683 = vpack.c.b16 %v418, %v413
  %v684 = vpack.c.b16 %v419, %v414
  %v685 = vpack.c.b16 %v420, %v415
  %v686 = vpack.c.b16 %v426, %v421
  %v687 = vpack.c.b16 %v427, %v422
  %v688 = vpack.c.b16 %v428, %v423
  %v689 = vpack.c.b16 %v429, %v424
  %v690 = vpack.c.b16 %v430, %v425
  %v691 = vpack.c.b16 %v436, %v431
  %v692 = vpack.c.b16 %v437, %v432
  %v693 = vpack.c.b16 %v438, %v433
  %v694 = vpack.c.b16 %v439, %v434
  %v695 = vpack.c.b16 %v440, %v435
  %v696 = vpack.c.b16 %v446, %v441
  %v697 = vpack.c.b16 %v447, %v442
  %v698 = vpack.c.b16 %v448, %v443
  %v699 = vpack.c.b16 %v449, %v444
  %v700 = vpack.c.b16 %v450, %v445
  %v701 = vpack.c.b16 %v456, %v451
  %v702 = vpack.c.b16 %v457, %v452
  %v703 = vpack.c.b16 %v458, %v453
  %v704 = vpack.c.b16 %v459, %v454
  %v705 = vpack.c.b16 %v460, %v455
  %v706 = vpack.c.b16 %v466, %v461
  %v707 = vpack.c.b16 %v467, %v462
  %v708 = vpack.c.b16 %v468, %v463
  %v709 = vpack.c.b16 %v469, %v464
  %v710 = vpack.c.b16 %v470, %v465
  %v711 = vpack.c.b16 %v476, %v471
  %v712 = vpack.c.b16 %v477, %v472
  %v713 = vpack.c.b16 %v478, %v473
  %v714 = vpack.c.b16 %v479, %v474
  %v715 = vpack.c.b16 %v480, %v475
  %v716 = vpack.c.b16 %v486, %v481
  %v717 = vpack.c.b16 %v487, %v482
  %v718 = vpack.c.b16 %v488, %v483
  %v719 = vpack.c.b16 %v489, %v484
  %v720 = vpack.c.b16 %v490, %v485
  %v721 = vpack.c.b16 %v496, %v491
  %v722 = vpack.c.b16 %v497, %v492
  %v723 = vpack.c.b16 %v498, %v493
  %v724 = vpack.c.b16 %v499, %v494
  %v725 = vpack.c.b16 %v500, %v495
  %v726 = vpack.c.b16 %v506, %v501
  %v727 = vpack.c.b16 %v507, %v502
  %v728 = vpack.c.b16 %v508, %v503
  %v729 = vpack.c.b16 %v509, %v504
  %v730 = vpack.c.b16 %v510, %v505
  %v731 = vpack.c.b16 %v516, %v511
  %v732 = vpack.c.b16 %v517, %v512
  %v733 = vpack.c.b16 %v518, %v513
  %v734 = vpack.c.b16 %v519, %v514
  %v735 = vpack.c.b16 %v520, %v515
  %v736 = vpack.c.b16 %v526, %v521
  %v737 = vpack.c.b16 %v527, %v522
  %v738 = vpack.c.b16 %v528, %v523
  %v739 = vpack.c.b16 %v529, %v524
  %v740 = vpack.c.b16 %v530, %v525
  %v741 = vpack.c.b16 %v536, %v531
  %v742 = vpack.c.b16 %v537, %v532
  %v743 = vpack.c.b16 %v538, %v533
  %v744 = vpack.c.b16 %v539, %v534
  %v745 = vpack.c.b16 %v540, %v535
  %v746 = vpack.c.b16 %v546, %v541
  %v747 = vpack.c.b16 %v547, %v542
  %v748 = vpack.c.b16 %v548, %v543
  %v749 = vpack.c.b16 %v549, %v544
  %v750 = vpack.c.b16 %v550, %v545
  %v751 = vpack.c.b16 %v556, %v551
  %v752 = vpack.c.b16 %v557, %v552
  %v753 = vpack.c.b16 %v558, %v553
  %v754 = vpack.c.b16 %v559, %v554
  %v755 = vpack.c.b16 %v560, %v555
  %v756 = vpack.c.b16 %v566, %v561
  %v757 = vpack.c.b16 %v567, %v562
  %v758 = vpack.c.b16 %v568, %v563
  %v759 = vpack.c.b16 %v569, %v564
  %v760 = vpack.c.b16 %v570, %v565
  %v761 = vpack.c.b16 %v576, %v571
  %v762 = vpack.c.b16 %v577, %v572
  %v763 = vpack.c.b16 %v578, %v573
  %v764 = vpack.c.b16 %v579, %v574
  %v765 = vpack.c.b16 %v580, %v575
  %v766 = vpack.c.b16 %v586, %v581
  %v767 = vpack.c.b16 %v587, %v582
  %v768 = vpack.c.b16 %v588, %v583
  %v769 = vpack.c.b16 %v589, %v584
  %v770 = vpack.c.b16 %v590, %v585
  %v771 = vpack.c.b16 %v596, %v591
  %v772 = vpack.c.b16 %v597, %v592
  %v773 = vpack.c.b16 %v598, %v593
  %v774 = vpack.c.b16 %v599, %v594
  %v775 = vpack.c.b16 %v600, %v595
  %v776 = vpack.c.b16 %v606, %v601
  %v777 = vpack.c.b16 %v607, %v602
  %v778 = vpack.c.b16 %v608, %v603
  %v779 = vpack.c.b16 %v609, %v604
  %v780 = vpack.c.b16 %v610, %v605
  %v781 = vpack.c.b16 %v616, %v611
  %v782 = vpack.c.b16 %v617, %v612
  %v783 = vpack.c.b16 %v618, %v613
  %v784 = vpack.c.b16 %v619, %v614
  %v785 = vpack.c.b16 %v620, %v615
  %v786 = vpack.c.b16 %v626, %v621
  %v787 = vpack.c.b16 %v627, %v622
  %v788 = vpack.c.b16 %v628, %v623
  %v789 = vpack.c.b16 %v629, %v624
  %v790 = vpack.c.b16 %v630, %v625
  %v791 = vpack.c.b16 %v636, %v631
  %v792 = vpack.c.b16 %v637, %v632
  %v793 = vpack.c.b16 %v638, %v633
  %v794 = vpack.c.b16 %v639, %v634
  %v795 = vpack.c.b16 %v640, %v635
  %v796 = vpack.c.b16 %v646, %v641
  %v797 = vpack.c.b16 %v647, %v642
  %v798 = vpack.c.b16 %v648, %v643
  %v799 = vpack.c.b16 %v649, %v644
  %v800 = vpack.c.b16 %v650, %v645
  %v801 = vpack.c.b16 %v656, %v651
  %v802 = vpack.c.b16 %v657, %v652
  %v803 = vpack.c.b16 %v658, %v653
  %v804 = vpack.c.b16 %v659, %v654
  %v805 = vpack.c.b16 %v660, %v655
  %v806 = vpack.c.b16 %v666, %v661
  %v807 = vpack.c.b16 %v667, %v662
  %v808 = vpack.c.b16 %v668, %v663
  %v809 = vpack.c.b16 %v669, %v664
  %v810 = vpack.c.b16 %v670, %v665
  %v811 = vpack.c.b16 %v676, %v671
  %v812 = vpack.c.b16 %v677, %v672
  %v813 = vpack.c.b16 %v678, %v673
  %v814 = vpack.c.b16 %v679, %v674
  %v815 = vpack.c.b16 %v680, %v675
  %vm951 = vcmask 392192
  %v953 = vsel %vm951, %v245, 0
  %955 = vmatprep.subr.bf16.mxu0 %v682
  %956 = vmatpush1.bf16.msra.mxu0 %v681
  %957 = vmatprep.subr.bf16.mxu0 %v687
  %958 = vmatpush1.bf16.msra.mxu0 %v686
  %959 = vmatprep.subr.bf16.mxu0 %v692
  %960 = vmatpush1.bf16.msra.mxu0 %v691
  %961 = vmatprep.subr.bf16.mxu0 %v697
  %962 = vmatpush1.bf16.msra.mxu0 %v696
  %963 = vmatprep.subr.bf16.mxu0 %v702
  %964 = vmatpush1.bf16.msra.mxu0 %v701
  %965 = vmatprep.subr.bf16.mxu0 %v707
  %966 = vmatpush1.bf16.msra.mxu0 %v706
  %967 = vmatprep.subr.bf16.mxu0 %v712
  %968 = vmatpush1.bf16.msra.mxu0 %v711
  %969 = vmatprep.subr.bf16.mxu0 %v717
  %970 = vmatpush1.bf16.msra.mxu0 %v716
  %971 = vmatprep.subr.bf16.mxu0 %v722
  %972 = vmatpush1.bf16.msra.mxu0 %v721
  %973 = vmatprep.subr.bf16.mxu0 %v727
  %974 = vmatpush1.bf16.msra.mxu0 %v726
  %975 = vmatprep.subr.bf16.mxu0 %v732
  %976 = vmatpush1.bf16.msra.mxu0 %v731
  %977 = vmatprep.subr.bf16.mxu0 %v737
  %978 = vmatpush1.bf16.msra.mxu0 %v736
  %979 = vmatprep.subr.bf16.mxu0 %v742
  %980 = vmatpush1.bf16.msra.mxu0 %v741
  %981 = vmatprep.subr.bf16.mxu0 %v747
  %982 = vmatpush1.bf16.msra.mxu0 %v746
  %983 = vmatprep.subr.bf16.mxu0 %v752
  %984 = vmatpush1.bf16.msra.mxu0 %v751
  %985 = vmatprep.subr.bf16.mxu0 %v757
  %986 = vmatpush1.bf16.msra.mxu0 %v756
  %987 = vmatprep.mubr.bf16.mxu0 %v243
  %988 = vmatmul.mubr.bf16.gmra.mrb[0].mxu0 %v242
  %v989 = vpop.f32.mrb[0].mxu0
  %v990 = vadd.f32 %v214, %v989
  %v991 = vpop.f32.mrb[0].mxu0
  %v992 = vadd.f32 %v218, %v991
  %v993 = vpop.f32.mrb[0].mxu0
  %v994 = vpop.f32.mrb[0].mxu0
  %995 = vdwg.mxu0
  %996 = vmatprep.subr.bf16.mxu0 %v762
  %997 = vmatpush1.bf16.msra.mxu0 %v761
  %998 = vmatprep.subr.bf16.mxu0 %v767
  %999 = vmatpush1.bf16.msra.mxu0 %v766
  %1000 = vmatprep.subr.bf16.mxu0 %v772
  %1001 = vmatpush1.bf16.msra.mxu0 %v771
  %1002 = vmatprep.subr.bf16.mxu0 %v777
  %1003 = vmatpush1.bf16.msra.mxu0 %v776
  %1004 = vmatprep.subr.bf16.mxu0 %v782
  %1005 = vmatpush1.bf16.msra.mxu0 %v781
  %1006 = vmatprep.subr.bf16.mxu0 %v787
  %1007 = vmatpush1.bf16.msra.mxu0 %v786
  %1008 = vmatprep.subr.bf16.mxu0 %v792
  %1009 = vmatpush1.bf16.msra.mxu0 %v791
  %1010 = vmatprep.subr.bf16.mxu0 %v797
  %1011 = vmatpush1.bf16.msra.mxu0 %v796
  %1012 = vmatprep.subr.bf16.mxu0 %v802
  %1013 = vmatpush1.bf16.msra.mxu0 %v801
  %1014 = vmatprep.subr.bf16.mxu0 %v807
  %1015 = vmatpush1.bf16.msra.mxu0 %v806
  %1016 = vmatprep.subr.bf16.mxu0 %v812
  %1017 = vmatpush1.bf16.msra.mxu0 %v811
  %1018 = vmatprep.subr.bf16.mxu0 0
  %1019 = vmatpush1.bf16.msra.mxu0 0
  %1020 = vmatprep.subr.bf16.mxu0 0
  %1021 = vmatpush1.bf16.msra.mxu0 0
  %1022 = vmatprep.subr.bf16.mxu0 0
  %1023 = vmatpush1.bf16.msra.mxu0 0
  %1024 = vmatprep.subr.bf16.mxu0 0
  %1025 = vmatpush1.bf16.msra.mxu0 0
  %1026 = vmatprep.subr.bf16.mxu0 0
  %1027 = vmatpush1.bf16.msra.mxu0 0
  %1028 = vmatprep.mubr.bf16.mxu0 %v953
  %1029 = vmatmul.mubr.bf16.gmra.mrb[0].mxu0 %v244
  %v1030 = vpop.f32.mrb[0].mxu0
  %v1031 = vadd.f32 %v990, %v1030
  %v1032 = vpop.f32.mrb[0].mxu0
  %v1033 = vadd.f32 %v992, %v1032
  %v1034 = vpop.f32.mrb[0].mxu0
  %v1035 = vpop.f32.mrb[0].mxu0
  %1036 = vdwg.mxu0
  %1037 = vmatprep.subr.bf16.mxu0 %v684
  %1038 = vmatpush1.bf16.msra.mxu0 %v683
  %1039 = vmatprep.subr.bf16.mxu0 %v689
  %1040 = vmatpush1.bf16.msra.mxu0 %v688
  %1041 = vmatprep.subr.bf16.mxu0 %v694
  %1042 = vmatpush1.bf16.msra.mxu0 %v693
  %1043 = vmatprep.subr.bf16.mxu0 %v699
  %1044 = vmatpush1.bf16.msra.mxu0 %v698
  %1045 = vmatprep.subr.bf16.mxu0 %v704
  %1046 = vmatpush1.bf16.msra.mxu0 %v703
  %1047 = vmatprep.subr.bf16.mxu0 %v709
  %1048 = vmatpush1.bf16.msra.mxu0 %v708
  %1049 = vmatprep.subr.bf16.mxu0 %v714
  %1050 = vmatpush1.bf16.msra.mxu0 %v713
  %1051 = vmatprep.subr.bf16.mxu0 %v719
  %1052 = vmatpush1.bf16.msra.mxu0 %v718
  %1053 = vmatprep.subr.bf16.mxu0 %v724
  %1054 = vmatpush1.bf16.msra.mxu0 %v723
  %1055 = vmatprep.subr.bf16.mxu0 %v729
  %1056 = vmatpush1.bf16.msra.mxu0 %v728
  %1057 = vmatprep.subr.bf16.mxu0 %v734
  %1058 = vmatpush1.bf16.msra.mxu0 %v733
  %1059 = vmatprep.subr.bf16.mxu0 %v739
  %1060 = vmatpush1.bf16.msra.mxu0 %v738
  %1061 = vmatprep.subr.bf16.mxu0 %v744
  %1062 = vmatpush1.bf16.msra.mxu0 %v743
  %1063 = vmatprep.subr.bf16.mxu0 %v749
  %1064 = vmatpush1.bf16.msra.mxu0 %v748
  %1065 = vmatprep.subr.bf16.mxu0 %v754
  %1066 = vmatpush1.bf16.msra.mxu0 %v753
  %1067 = vmatprep.subr.bf16.mxu0 %v759
  %1068 = vmatpush1.bf16.msra.mxu0 %v758
  %1069 = vmatprep.mubr.bf16.mxu0 %v243
  %1070 = vmatmul.mubr.bf16.gmra.mrb[0].mxu0 %v242
  %v1071 = vpop.f32.mrb[0].mxu0
  %v1072 = vadd.f32 %v222, %v1071
  %v1073 = vpop.f32.mrb[0].mxu0
  %v1074 = vadd.f32 %v226, %v1073
  %v1075 = vpop.f32.mrb[0].mxu0
  %v1076 = vpop.f32.mrb[0].mxu0
  %1077 = vdwg.mxu0
  %1078 = vmatprep.subr.bf16.mxu0 %v764
  %1079 = vmatpush1.bf16.msra.mxu0 %v763
  %1080 = vmatprep.subr.bf16.mxu0 %v769
  %1081 = vmatpush1.bf16.msra.mxu0 %v768
  %1082 = vmatprep.subr.bf16.mxu0 %v774
  %1083 = vmatpush1.bf16.msra.mxu0 %v773
  %1084 = vmatprep.subr.bf16.mxu0 %v779
  %1085 = vmatpush1.bf16.msra.mxu0 %v778
  %1086 = vmatprep.subr.bf16.mxu0 %v784
  %1087 = vmatpush1.bf16.msra.mxu0 %v783
  %1088 = vmatprep.subr.bf16.mxu0 %v789
  %1089 = vmatpush1.bf16.msra.mxu0 %v788
  %1090 = vmatprep.subr.bf16.mxu0 %v794
  %1091 = vmatpush1.bf16.msra.mxu0 %v793
  %1092 = vmatprep.subr.bf16.mxu0 %v799
  %1093 = vmatpush1.bf16.msra.mxu0 %v798
  %1094 = vmatprep.subr.bf16.mxu0 %v804
  %1095 = vmatpush1.bf16.msra.mxu0 %v803
  %1096 = vmatprep.subr.bf16.mxu0 %v809
  %1097 = vmatpush1.bf16.msra.mxu0 %v808
  %1098 = vmatprep.subr.bf16.mxu0 %v814
  %1099 = vmatpush1.bf16.msra.mxu0 %v813
  %1100 = vmatprep.subr.bf16.mxu0 0
  %1101 = vmatpush1.bf16.msra.mxu0 0
  %1102 = vmatprep.subr.bf16.mxu0 0
  %1103 = vmatpush1.bf16.msra.mxu0 0
  %1104 = vmatprep.subr.bf16.mxu0 0
  %1105 = vmatpush1.bf16.msra.mxu0 0
  %1106 = vmatprep.subr.bf16.mxu0 0
  %1107 = vmatpush1.bf16.msra.mxu0 0
  %1108 = vmatprep.subr.bf16.mxu0 0
  %1109 = vmatpush1.bf16.msra.mxu0 0
  %1110 = vmatprep.mubr.bf16.mxu0 %v953
  %1111 = vmatmul.mubr.bf16.gmra.mrb[0].mxu0 %v244
  %v1112 = vpop.f32.mrb[0].mxu0
  %v1113 = vadd.f32 %v1072, %v1112
  %v1114 = vpop.f32.mrb[0].mxu0
  %v1115 = vadd.f32 %v1074, %v1114
  %v1116 = vpop.f32.mrb[0].mxu0
  %v1117 = vpop.f32.mrb[0].mxu0
  %1118 = vdwg.mxu0
  %1119 = vmatprep.subr.bf16.mxu0 0
  %1120 = vmatpush1.bf16.msra.mxu0 %v685
  %1121 = vmatprep.subr.bf16.mxu0 0
  %1122 = vmatpush1.bf16.msra.mxu0 %v690
  %1123 = vmatprep.subr.bf16.mxu0 0
  %1124 = vmatpush1.bf16.msra.mxu0 %v695
  %1125 = vmatprep.subr.bf16.mxu0 0
  %1126 = vmatpush1.bf16.msra.mxu0 %v700
  %1127 = vmatprep.subr.bf16.mxu0 0
  %1128 = vmatpush1.bf16.msra.mxu0 %v705
  %1129 = vmatprep.subr.bf16.mxu0 0
  %1130 = vmatpush1.bf16.msra.mxu0 %v710
  %1131 = vmatprep.subr.bf16.mxu0 0
  %1132 = vmatpush1.bf16.msra.mxu0 %v715
  %1133 = vmatprep.subr.bf16.mxu0 0
  %1134 = vmatpush1.bf16.msra.mxu0 %v720
  %1135 = vmatprep.subr.bf16.mxu0 0
  %1136 = vmatpush1.bf16.msra.mxu0 %v725
  %1137 = vmatprep.subr.bf16.mxu0 0
  %1138 = vmatpush1.bf16.msra.mxu0 %v730
  %1139 = vmatprep.subr.bf16.mxu0 0
  %1140 = vmatpush1.bf16.msra.mxu0 %v735
  %1141 = vmatprep.subr.bf16.mxu0 0
  %1142 = vmatpush1.bf16.msra.mxu0 %v740
  %1143 = vmatprep.subr.bf16.mxu0 0
  %1144 = vmatpush1.bf16.msra.mxu0 %v745
  %1145 = vmatprep.subr.bf16.mxu0 0
  %1146 = vmatpush1.bf16.msra.mxu0 %v750
  %1147 = vmatprep.subr.bf16.mxu0 0
  %1148 = vmatpush1.bf16.msra.mxu0 %v755
  %1149 = vmatprep.subr.bf16.mxu0 0
  %1150 = vmatpush1.bf16.msra.mxu0 %v760
  %1151 = vmatprep.mubr.bf16.mxu0 %v243
  %1152 = vmatmul.mubr.bf16.gmra.mrb[0].mxu0 %v242
  %v1153 = vpop.f32.mrb[0].mxu0
  %v1154 = vadd.f32 %v230, %v1153
  %v1155 = vpop.f32.mrb[0].mxu0
  %v1156 = vpop.f32.mrb[0].mxu0
  %v1157 = vpop.f32.mrb[0].mxu0
  %1158 = vdwg.mxu0
  %1159 = vmatprep.subr.bf16.mxu0 0
  %1160 = vmatpush1.bf16.msra.mxu0 %v765
  %1161 = vmatprep.subr.bf16.mxu0 0
  %1162 = vmatpush1.bf16.msra.mxu0 %v770
  %1163 = vmatprep.subr.bf16.mxu0 0
  %1164 = vmatpush1.bf16.msra.mxu0 %v775
  %1165 = vmatprep.subr.bf16.mxu0 0
  %1166 = vmatpush1.bf16.msra.mxu0 %v780
  %1167 = vmatprep.subr.bf16.mxu0 0
  %1168 = vmatpush1.bf16.msra.mxu0 %v785
  %1169 = vmatprep.subr.bf16.mxu0 0
  %1170 = vmatpush1.bf16.msra.mxu0 %v790
  %1171 = vmatprep.subr.bf16.mxu0 0
  %1172 = vmatpush1.bf16.msra.mxu0 %v795
  %1173 = vmatprep.subr.bf16.mxu0 0
  %1174 = vmatpush1.bf16.msra.mxu0 %v800
  %1175 = vmatprep.subr.bf16.mxu0 0
  %1176 = vmatpush1.bf16.msra.mxu0 %v805
  %1177 = vmatprep.subr.bf16.mxu0 0
  %1178 = vmatpush1.bf16.msra.mxu0 %v810
  %1179 = vmatprep.subr.bf16.mxu0 0
  %1180 = vmatpush1.bf16.msra.mxu0 %v815
  %1181 = vmatprep.subr.bf16.mxu0 0
  %1182 = vmatpush1.bf16.msra.mxu0 0
  %1183 = vmatprep.subr.bf16.mxu0 0
  %1184 = vmatpush1.bf16.msra.mxu0 0
  %1185 = vmatprep.subr.bf16.mxu0 0
  %1186 = vmatpush1.bf16.msra.mxu0 0
  %1187 = vmatprep.subr.bf16.mxu0 0
  %1188 = vmatpush1.bf16.msra.mxu0 0
  %1189 = vmatprep.subr.bf16.mxu0 0
  %1190 = vmatpush1.bf16.msra.mxu0 0
  %1191 = vmatprep.mubr.bf16.mxu0 %v953
  %1192 = vmatmul.mubr.bf16.gmra.mrb[0].mxu0 %v244
  %v1193 = vpop.f32.mrb[0].mxu0
  %v1194 = vadd.f32 %v1154, %v1193
  %v1195 = vpop.f32.mrb[0].mxu0
  %v1196 = vpop.f32.mrb[0].mxu0
  %v1197 = vpop.f32.mrb[0].mxu0
  %1198 = vdwg.mxu0
  %v1199 = vmax.f32 %v1031, 0.0
  %v1200 = vmax.f32 %v1033, 0.0
  %v1201 = vmax.f32 %v1113, 0.0
  %v1202 = vmax.f32 %v1115, 0.0
  %v1203 = vmax.f32 %v1194, 0.0
  %v1204 = vpack.c.bf16 %v1199, %v1199
  %v1205 = vpack.c.bf16 %v1200, %v1200
  %v1206 = vpack.c.bf16 %v1201, %v1201
  %v1207 = vpack.c.bf16 %v1202, %v1202
  %v1208 = vpack.c.bf16 %v1203, %v1203
  %v1209 = vld [vmem:[%s3] sm:$0xff]
  %v1210 = vld [vmem:[%s3 + $0x8] sm:$0xff]
  %v1211 = vld [vmem:[%s3 + $0x10] sm:$0xff]
  %v1212 = vld [vmem:[%s3 + $0x18] sm:$0xff]
  %v1213 = vld [vmem:[%s3 + $0x20] sm:$0xff]
  %v1214 = vld [vmem:[%s3 + $0x28] sm:$0xff]
  %v1215 = vld [vmem:[%s3 + $0x30] sm:$0xff]
  %v1216 = vld [vmem:[%s3 + $0x38] sm:$0xff]
  %v1217 = vld [vmem:[%s3 + $0x40] sm:$0xff]
  %v1218 = vld [vmem:[%s3 + $0x48] sm:$0xff]
  %v1219 = vld [vmem:[%s3 + $0x50] sm:$0xff]
  %v1220 = vld [vmem:[%s3 + $0x58] sm:$0xff]
  %v1221 = vld [vmem:[%s3 + $0x60] sm:$0xff]
  %v1222 = vld [vmem:[%s3 + $0x68] sm:$0xff]
  %v1223 = vld [vmem:[%s3 + $0x70] sm:$0xff]
  %v1224 = vld [vmem:[%s3 + $0x78] sm:$0xff]
  %v1225 = vld [vmem:[%s3 + $0x80] sm:$0xff]
  %v1226 = vld [vmem:[%s3 + $0x88] sm:$0xff]
  %v1227 = vld [vmem:[%s3 + $0x90] sm:$0xff]
  %v1228 = vld [vmem:[%s3 + $0x98] sm:$0xff]
  %v1229 = vld [vmem:[%s3 + $0xa0] sm:$0xff]
  %v1230 = vld [vmem:[%s3 + $0xa8] sm:$0xff]
  %v1231 = vld [vmem:[%s3 + $0xb0] sm:$0xff]
  %v1232 = vld [vmem:[%s3 + $0xb8] sm:$0xff]
  %v1233 = vld [vmem:[%s3 + $0xc0] sm:$0xff]
  %v1234 = vld [vmem:[%s3 + $0xc8] sm:$0xff]
  %v1235 = vld [vmem:[%s3 + $0xd0] sm:$0xff]
  %v1236 = vld [vmem:[%s3 + $0xd8] sm:$0xff]
  %v1237 = vld [vmem:[%s3 + $0xe0] sm:$0xff]
  %v1238 = vld [vmem:[%s3 + $0xe8] sm:$0xff]
  %v1239 = vld [vmem:[%s3 + $0xf0] sm:$0xff]
  %v1240 = vld [vmem:[%s3 + $0xf8] sm:$0xff]
  %v1241 = vld [vmem:[%s3 + $0x100] sm:$0xff]
  %v1242 = vld [vmem:[%s3 + $0x108] sm:$0xff]
  %v1243 = vld [vmem:[%s3 + $0x110] sm:$0xff]
  %v1244 = vld [vmem:[%s3 + $0x118] sm:$0xff]
  %v1245 = vld [vmem:[%s3 + $0x120] sm:$0xff]
  %v1246 = vld [vmem:[%s3 + $0x128] sm:$0xff]
  %v1247 = vld [vmem:[%s3 + $0x130] sm:$0xff]
  %v1248 = vld [vmem:[%s3 + $0x138] sm:$0xff]
  %v1249 = vld [vmem:[%s3 + $0x140] sm:$0xff]
  %v1250 = vld [vmem:[%s3 + $0x148] sm:$0xff]
  %v1251 = vld [vmem:[%s3 + $0x150] sm:$0xff]
  %v1252 = vld [vmem:[%s3 + $0x158] sm:$0xff]
  %v1253 = vld [vmem:[%s3 + $0x160] sm:$0xff]
  %v1254 = vld [vmem:[%s3 + $0x168] sm:$0xff]
  %v1255 = vld [vmem:[%s3 + $0x170] sm:$0xff]
  %v1256 = vld [vmem:[%s3 + $0x178] sm:$0xff]
  %v1257 = vld [vmem:[%s3 + $0x180] sm:$0xff]
  %v1258 = vld [vmem:[%s3 + $0x188] sm:$0xff]
  %v1259 = vld [vmem:[%s3 + $0x190] sm:$0xff]
  %v1260 = vld [vmem:[%s3 + $0x198] sm:$0xff]
  %v1261 = vld [vmem:[%s3 + $0x1a0] sm:$0xff]
  %v1262 = vld [vmem:[%s3 + $0x1a8] sm:$0xff]
  %v1263 = vld [vmem:[%s3 + $0x1b0] sm:$0xff]
  %v1264 = vld [vmem:[%s3 + $0x1b8] sm:$0xff]
  %v1265 = vld [vmem:[%s3 + $0x1c0] sm:$0xff]
  %v1266 = vld [vmem:[%s3 + $0x1c8] sm:$0xff]
  %v1267 = vld [vmem:[%s3 + $0x1d0] sm:$0xff]
  %v1268 = vld [vmem:[%s3 + $0x1d8] sm:$0xff]
  %v1269 = vld [vmem:[%s3 + $0x1e0] sm:$0xff]
  %v1270 = vld [vmem:[%s3 + $0x1e8] sm:$0xff]
  %v1271 = vld [vmem:[%s3 + $0x1f0] sm:$0xff]
  %v1272 = vld [vmem:[%s3 + $0x1f8] sm:$0xff]
  %v1273 = vld [vmem:[%s3 + $0x200] sm:$0xff]
  %v1274 = vld [vmem:[%s3 + $0x208] sm:$0xff]
  %v1275 = vld [vmem:[%s3 + $0x210] sm:$0xff]
  %v1276 = vld [vmem:[%s3 + $0x218] sm:$0xff]
  %v1277 = vld [vmem:[%s3 + $0x220] sm:$0xff]
  %v1278 = vld [vmem:[%s3 + $0x228] sm:$0xff]
  %v1279 = vld [vmem:[%s3 + $0x230] sm:$0xff]
  %v1280 = vld [vmem:[%s3 + $0x238] sm:$0xff]
  %v1281 = vld [vmem:[%s3 + $0x240] sm:$0xff]
  %v1282 = vld [vmem:[%s3 + $0x248] sm:$0xff]
  %v1283 = vld [vmem:[%s3 + $0x250] sm:$0xff]
  %v1359 = vunpack.c.l.b16 %v1209
  %v1360 = vunpack.c.h.b16 %v1209
  %v1361 = vunpack.c.l.b16 %v1210
  %v1362 = vunpack.c.h.b16 %v1210
  %v1363 = vunpack.c.l.b16 %v1211
  %v1364 = vunpack.c.h.b16 %v1211
  %v1365 = vunpack.c.l.b16 %v1212
  %v1366 = vunpack.c.h.b16 %v1212
  %v1367 = vunpack.c.l.b16 %v1213
  %v1368 = vunpack.c.h.b16 %v1213
  %v1369 = vunpack.c.l.b16 %v1214
  %v1370 = vunpack.c.h.b16 %v1214
  %v1371 = vunpack.c.l.b16 %v1215
  %v1372 = vunpack.c.h.b16 %v1215
  %v1373 = vunpack.c.l.b16 %v1216
  %v1374 = vunpack.c.h.b16 %v1216
  %v1375 = vunpack.c.l.b16 %v1217
  %v1376 = vunpack.c.h.b16 %v1217
  %v1377 = vunpack.c.l.b16 %v1218
  %v1378 = vunpack.c.h.b16 %v1218
  %v1379 = vunpack.c.l.b16 %v1219
  %v1380 = vunpack.c.h.b16 %v1219
  %v1381 = vunpack.c.l.b16 %v1220
  %v1382 = vunpack.c.h.b16 %v1220
  %v1383 = vunpack.c.l.b16 %v1221
  %v1384 = vunpack.c.h.b16 %v1221
  %v1385 = vunpack.c.l.b16 %v1222
  %v1386 = vunpack.c.h.b16 %v1222
  %v1387 = vunpack.c.l.b16 %v1223
  %v1388 = vunpack.c.h.b16 %v1223
  %v1389 = vunpack.c.l.b16 %v1224
  %v1390 = vunpack.c.h.b16 %v1224
  %v1391 = vunpack.c.l.b16 %v1225
  %v1392 = vunpack.c.h.b16 %v1225
  %v1393 = vunpack.c.l.b16 %v1226
  %v1394 = vunpack.c.h.b16 %v1226
  %v1395 = vunpack.c.l.b16 %v1227
  %v1396 = vunpack.c.h.b16 %v1227
  %v1397 = vunpack.c.l.b16 %v1228
  %v1398 = vunpack.c.h.b16 %v1228
  %v1399 = vunpack.c.l.b16 %v1229
  %v1400 = vunpack.c.h.b16 %v1229
  %v1401 = vunpack.c.l.b16 %v1230
  %v1402 = vunpack.c.h.b16 %v1230
  %v1403 = vunpack.c.l.b16 %v1231
  %v1404 = vunpack.c.h.b16 %v1231
  %v1405 = vunpack.c.l.b16 %v1232
  %v1406 = vunpack.c.h.b16 %v1232
  %v1407 = vunpack.c.l.b16 %v1233
  %v1408 = vunpack.c.h.b16 %v1233
  %v1409 = vunpack.c.l.b16 %v1234
  %v1410 = vunpack.c.h.b16 %v1234
  %v1411 = vunpack.c.l.b16 %v1235
  %v1412 = vunpack.c.h.b16 %v1235
  %v1413 = vunpack.c.l.b16 %v1236
  %v1414 = vunpack.c.h.b16 %v1236
  %v1415 = vunpack.c.l.b16 %v1237
  %v1416 = vunpack.c.h.b16 %v1237
  %v1417 = vunpack.c.l.b16 %v1238
  %v1418 = vunpack.c.h.b16 %v1238
  %v1419 = vunpack.c.l.b16 %v1239
  %v1420 = vunpack.c.h.b16 %v1239
  %v1421 = vunpack.c.l.b16 %v1240
  %v1422 = vunpack.c.h.b16 %v1240
  %v1423 = vunpack.c.l.b16 %v1241
  %v1424 = vunpack.c.h.b16 %v1241
  %v1425 = vunpack.c.l.b16 %v1242
  %v1426 = vunpack.c.h.b16 %v1242
  %v1427 = vunpack.c.l.b16 %v1243
  %v1428 = vunpack.c.h.b16 %v1243
  %v1429 = vunpack.c.l.b16 %v1244
  %v1430 = vunpack.c.h.b16 %v1244
  %v1431 = vunpack.c.l.b16 %v1245
  %v1432 = vunpack.c.h.b16 %v1245
  %v1433 = vunpack.c.l.b16 %v1246
  %v1434 = vunpack.c.h.b16 %v1246
  %v1435 = vunpack.c.l.b16 %v1247
  %v1436 = vunpack.c.h.b16 %v1247
  %v1437 = vunpack.c.l.b16 %v1248
  %v1438 = vunpack.c.h.b16 %v1248
  %v1439 = vunpack.c.l.b16 %v1249
  %v1440 = vunpack.c.h.b16 %v1249
  %v1441 = vunpack.c.l.b16 %v1250
  %v1442 = vunpack.c.h.b16 %v1250
  %v1443 = vunpack.c.l.b16 %v1251
  %v1444 = vunpack.c.h.b16 %v1251
  %v1445 = vunpack.c.l.b16 %v1252
  %v1446 = vunpack.c.h.b16 %v1252
  %v1447 = vunpack.c.l.b16 %v1253
  %v1448 = vunpack.c.h.b16 %v1253
  %v1449 = vunpack.c.l.b16 %v1254
  %v1450 = vunpack.c.h.b16 %v1254
  %v1451 = vunpack.c.l.b16 %v1255
  %v1452 = vunpack.c.h.b16 %v1255
  %v1453 = vunpack.c.l.b16 %v1256
  %v1454 = vunpack.c.h.b16 %v1256
  %v1455 = vunpack.c.l.b16 %v1257
  %v1456 = vunpack.c.h.b16 %v1257
  %v1457 = vunpack.c.l.b16 %v1258
  %v1458 = vunpack.c.h.b16 %v1258
  %v1459 = vunpack.c.l.b16 %v1259
  %v1460 = vunpack.c.h.b16 %v1259
  %v1461 = vunpack.c.l.b16 %v1260
  %v1462 = vunpack.c.h.b16 %v1260
  %v1463 = vunpack.c.l.b16 %v1261
  %v1464 = vunpack.c.h.b16 %v1261
  %v1465 = vunpack.c.l.b16 %v1262
  %v1466 = vunpack.c.h.b16 %v1262
  %v1467 = vunpack.c.l.b16 %v1263
  %v1468 = vunpack.c.h.b16 %v1263
  %v1469 = vunpack.c.l.b16 %v1264
  %v1470 = vunpack.c.h.b16 %v1264
  %v1471 = vunpack.c.l.b16 %v1265
  %v1472 = vunpack.c.h.b16 %v1265
  %v1473 = vunpack.c.l.b16 %v1266
  %v1474 = vunpack.c.h.b16 %v1266
  %v1475 = vunpack.c.l.b16 %v1267
  %v1476 = vunpack.c.h.b16 %v1267
  %v1477 = vunpack.c.l.b16 %v1268
  %v1478 = vunpack.c.h.b16 %v1268
  %v1479 = vunpack.c.l.b16 %v1269
  %v1480 = vunpack.c.h.b16 %v1269
  %v1481 = vunpack.c.l.b16 %v1270
  %v1482 = vunpack.c.h.b16 %v1270
  %v1483 = vunpack.c.l.b16 %v1271
  %v1484 = vunpack.c.h.b16 %v1271
  %v1485 = vunpack.c.l.b16 %v1272
  %v1486 = vunpack.c.h.b16 %v1272
  %v1487 = vunpack.c.l.b16 %v1273
  %v1488 = vunpack.c.h.b16 %v1273
  %v1489 = vunpack.c.l.b16 %v1274
  %v1490 = vunpack.c.h.b16 %v1274
  %v1491 = vunpack.c.l.b16 %v1275
  %v1492 = vunpack.c.h.b16 %v1275
  %v1493 = vunpack.c.l.b16 %v1276
  %v1494 = vunpack.c.h.b16 %v1276
  %v1495 = vunpack.c.l.b16 %v1277
  %v1496 = vunpack.c.h.b16 %v1277
  %v1497 = vunpack.c.l.b16 %v1278
  %v1498 = vunpack.c.h.b16 %v1278
  %v1499 = vunpack.c.l.b16 %v1279
  %v1500 = vunpack.c.h.b16 %v1279
  %v1501 = vunpack.c.l.b16 %v1280
  %v1502 = vunpack.c.h.b16 %v1280
  %v1503 = vunpack.c.l.b16 %v1281
  %v1504 = vunpack.c.h.b16 %v1281
  %v1505 = vunpack.c.l.b16 %v1282
  %v1506 = vunpack.c.h.b16 %v1282
  %v1507 = vunpack.c.l.b16 %v1283
  %v1508 = vunpack.c.h.b16 %v1283
  %v1509 = vpack.c.b16 %v1361, %v1359
  %v1510 = vpack.c.b16 %v1362, %v1360
  %v1511 = vpack.c.b16 %v1365, %v1363
  %v1512 = vpack.c.b16 %v1366, %v1364
  %v1513 = vpack.c.b16 %v1369, %v1367
  %v1514 = vpack.c.b16 %v1370, %v1368
  %v1515 = vpack.c.b16 %v1373, %v1371
  %v1516 = vpack.c.b16 %v1374, %v1372
  %v1517 = vpack.c.b16 %v1377, %v1375
  %v1518 = vpack.c.b16 %v1378, %v1376
  %v1519 = vpack.c.b16 %v1381, %v1379
  %v1520 = vpack.c.b16 %v1382, %v1380
  %v1521 = vpack.c.b16 %v1385, %v1383
  %v1522 = vpack.c.b16 %v1386, %v1384
  %v1523 = vpack.c.b16 %v1389, %v1387
  %v1524 = vpack.c.b16 %v1390, %v1388
  %v1525 = vpack.c.b16 %v1393, %v1391
  %v1526 = vpack.c.b16 %v1394, %v1392
  %v1527 = vpack.c.b16 %v1397, %v1395
  %v1528 = vpack.c.b16 %v1398, %v1396
  %v1529 = vpack.c.b16 %v1401, %v1399
  %v1530 = vpack.c.b16 %v1402, %v1400
  %v1531 = vpack.c.b16 %v1405, %v1403
  %v1532 = vpack.c.b16 %v1406, %v1404
  %v1533 = vpack.c.b16 %v1409, %v1407
  %v1534 = vpack.c.b16 %v1410, %v1408
  %v1535 = vpack.c.b16 %v1413, %v1411
  %v1536 = vpack.c.b16 %v1414, %v1412
  %v1537 = vpack.c.b16 %v1417, %v1415
  %v1538 = vpack.c.b16 %v1418, %v1416
  %v1539 = vpack.c.b16 %v1421, %v1419
  %v1540 = vpack.c.b16 %v1422, %v1420
  %v1541 = vpack.c.b16 %v1425, %v1423
  %v1542 = vpack.c.b16 %v1426, %v1424
  %v1543 = vpack.c.b16 %v1429, %v1427
  %v1544 = vpack.c.b16 %v1430, %v1428
  %v1545 = vpack.c.b16 %v1433, %v1431
  %v1546 = vpack.c.b16 %v1434, %v1432
  %v1547 = vpack.c.b16 %v1437, %v1435
  %v1548 = vpack.c.b16 %v1438, %v1436
  %v1549 = vpack.c.b16 %v1441, %v1439
  %v1550 = vpack.c.b16 %v1442, %v1440
  %v1551 = vpack.c.b16 %v1445, %v1443
  %v1552 = vpack.c.b16 %v1446, %v1444
  %v1553 = vpack.c.b16 %v1449, %v1447
  %v1554 = vpack.c.b16 %v1450, %v1448
  %v1555 = vpack.c.b16 %v1453, %v1451
  %v1556 = vpack.c.b16 %v1454, %v1452
  %v1557 = vpack.c.b16 %v1457, %v1455
  %v1558 = vpack.c.b16 %v1458, %v1456
  %v1559 = vpack.c.b16 %v1461, %v1459
  %v1560 = vpack.c.b16 %v1462, %v1460
  %v1561 = vpack.c.b16 %v1465, %v1463
  %v1562 = vpack.c.b16 %v1466, %v1464
  %v1563 = vpack.c.b16 %v1469, %v1467
  %v1564 = vpack.c.b16 %v1470, %v1468
  %v1565 = vpack.c.b16 %v1473, %v1471
  %v1566 = vpack.c.b16 %v1474, %v1472
  %v1567 = vpack.c.b16 %v1477, %v1475
  %v1568 = vpack.c.b16 %v1478, %v1476
  %v1569 = vpack.c.b16 %v1481, %v1479
  %v1570 = vpack.c.b16 %v1482, %v1480
  %v1571 = vpack.c.b16 %v1485, %v1483
  %v1572 = vpack.c.b16 %v1486, %v1484
  %v1573 = vpack.c.b16 %v1489, %v1487
  %v1574 = vpack.c.b16 %v1490, %v1488
  %v1575 = vpack.c.b16 %v1493, %v1491
  %v1576 = vpack.c.b16 %v1494, %v1492
  %v1577 = vpack.c.b16 %v1497, %v1495
  %v1578 = vpack.c.b16 %v1498, %v1496
  %v1579 = vpack.c.b16 %v1501, %v1499
  %v1580 = vpack.c.b16 %v1502, %v1500
  %v1581 = vpack.c.b16 %v1505, %v1503
  %v1582 = vpack.c.b16 %v1506, %v1504
  %v1583 = vpack.c.b16 %v1507, %v1507
  %v1584 = vpack.c.b16 %v1508, %v1508
  %vm1659 = vcmask 719872
  %v1661 = vsel %vm1659, %v1208, 0
  %vm1663 = vcmask 1043456
  %v1665 = vsel %vm1663, %v1583, 0
  %v1668 = vsel %vm1663, %v1584, 0
  %1670 = vmatprep.subr.bf16.mxu0 %v1510
  %1671 = vmatpush1.bf16.msra.mxu0 %v1509
  %1672 = vmatprep.subr.bf16.mxu0 %v1512
  %1673 = vmatpush1.bf16.msra.mxu0 %v1511
  %1674 = vmatprep.subr.bf16.mxu0 %v1514
  %1675 = vmatpush1.bf16.msra.mxu0 %v1513
  %1676 = vmatprep.subr.bf16.mxu0 %v1516
  %1677 = vmatpush1.bf16.msra.mxu0 %v1515
  %1678 = vmatprep.subr.bf16.mxu0 %v1518
  %1679 = vmatpush1.bf16.msra.mxu0 %v1517
  %1680 = vmatprep.subr.bf16.mxu0 %v1520
  %1681 = vmatpush1.bf16.msra.mxu0 %v1519
  %1682 = vmatprep.subr.bf16.mxu0 %v1522
  %1683 = vmatpush1.bf16.msra.mxu0 %v1521
  %1684 = vmatprep.subr.bf16.mxu0 %v1524
  %1685 = vmatpush1.bf16.msra.mxu0 %v1523
  %1686 = vmatprep.subr.bf16.mxu0 %v1526
  %1687 = vmatpush1.bf16.msra.mxu0 %v1525
  %1688 = vmatprep.subr.bf16.mxu0 %v1528
  %1689 = vmatpush1.bf16.msra.mxu0 %v1527
  %1690 = vmatprep.subr.bf16.mxu0 %v1530
  %1691 = vmatpush1.bf16.msra.mxu0 %v1529
  %1692 = vmatprep.subr.bf16.mxu0 %v1532
  %1693 = vmatpush1.bf16.msra.mxu0 %v1531
  %1694 = vmatprep.subr.bf16.mxu0 %v1534
  %1695 = vmatpush1.bf16.msra.mxu0 %v1533
  %1696 = vmatprep.subr.bf16.mxu0 %v1536
  %1697 = vmatpush1.bf16.msra.mxu0 %v1535
  %1698 = vmatprep.subr.bf16.mxu0 %v1538
  %1699 = vmatpush1.bf16.msra.mxu0 %v1537
  %1700 = vmatprep.subr.bf16.mxu0 %v1540
  %1701 = vmatpush1.bf16.msra.mxu0 %v1539
  %1702 = vmatprep.mubr.bf16.mxu0 %v1205
  %1703 = vmatmul.mubr.bf16.gmra.mrb[0].mxu0 %v1204
  %v1704 = vpop.f32.mrb[0].mxu0
  %v1705 = vadd.f32 0.0, %v1704
  %v1706 = vpop.f32.mrb[0].mxu0
  %v1707 = vadd.f32 0.0, %v1706
  %v1708 = vpop.f32.mrb[0].mxu0
  %v1709 = vpop.f32.mrb[0].mxu0
  %1710 = vdwg.mxu0
  %1711 = vmatprep.subr.bf16.mxu0 %v1542
  %1712 = vmatpush1.bf16.msra.mxu0 %v1541
  %1713 = vmatprep.subr.bf16.mxu0 %v1544
  %1714 = vmatpush1.bf16.msra.mxu0 %v1543
  %1715 = vmatprep.subr.bf16.mxu0 %v1546
  %1716 = vmatpush1.bf16.msra.mxu0 %v1545
  %1717 = vmatprep.subr.bf16.mxu0 %v1548
  %1718 = vmatpush1.bf16.msra.mxu0 %v1547
  %1719 = vmatprep.subr.bf16.mxu0 %v1550
  %1720 = vmatpush1.bf16.msra.mxu0 %v1549
  %1721 = vmatprep.subr.bf16.mxu0 %v1552
  %1722 = vmatpush1.bf16.msra.mxu0 %v1551
  %1723 = vmatprep.subr.bf16.mxu0 %v1554
  %1724 = vmatpush1.bf16.msra.mxu0 %v1553
  %1725 = vmatprep.subr.bf16.mxu0 %v1556
  %1726 = vmatpush1.bf16.msra.mxu0 %v1555
  %1727 = vmatprep.subr.bf16.mxu0 %v1558
  %1728 = vmatpush1.bf16.msra.mxu0 %v1557
  %1729 = vmatprep.subr.bf16.mxu0 %v1560
  %1730 = vmatpush1.bf16.msra.mxu0 %v1559
  %1731 = vmatprep.subr.bf16.mxu0 %v1562
  %1732 = vmatpush1.bf16.msra.mxu0 %v1561
  %1733 = vmatprep.subr.bf16.mxu0 %v1564
  %1734 = vmatpush1.bf16.msra.mxu0 %v1563
  %1735 = vmatprep.subr.bf16.mxu0 %v1566
  %1736 = vmatpush1.bf16.msra.mxu0 %v1565
  %1737 = vmatprep.subr.bf16.mxu0 %v1568
  %1738 = vmatpush1.bf16.msra.mxu0 %v1567
  %1739 = vmatprep.subr.bf16.mxu0 %v1570
  %1740 = vmatpush1.bf16.msra.mxu0 %v1569
  %1741 = vmatprep.subr.bf16.mxu0 %v1572
  %1742 = vmatpush1.bf16.msra.mxu0 %v1571
  %1743 = vmatprep.mubr.bf16.mxu0 %v1207
  %1744 = vmatmul.mubr.bf16.gmra.mrb[0].mxu0 %v1206
  %v1745 = vpop.f32.mrb[0].mxu0
  %v1746 = vadd.f32 %v1705, %v1745
  %v1747 = vpop.f32.mrb[0].mxu0
  %v1748 = vadd.f32 %v1707, %v1747
  %v1749 = vpop.f32.mrb[0].mxu0
  %v1750 = vpop.f32.mrb[0].mxu0
  %1751 = vdwg.mxu0
  %1752 = vmatprep.subr.bf16.mxu0 %v1574
  %1753 = vmatpush1.bf16.msra.mxu0 %v1573
  %1754 = vmatprep.subr.bf16.mxu0 %v1576
  %1755 = vmatpush1.bf16.msra.mxu0 %v1575
  %1756 = vmatprep.subr.bf16.mxu0 %v1578
  %1757 = vmatpush1.bf16.msra.mxu0 %v1577
  %1758 = vmatprep.subr.bf16.mxu0 %v1580
  %1759 = vmatpush1.bf16.msra.mxu0 %v1579
  %1760 = vmatprep.subr.bf16.mxu0 %v1582
  %1761 = vmatpush1.bf16.msra.mxu0 %v1581
  %1762 = vmatprep.subr.bf16.mxu0 %v1668
  %1763 = vmatpush1.bf16.msra.mxu0 %v1665
  %1764 = vmatprep.subr.bf16.mxu0 0
  %1765 = vmatpush1.bf16.msra.mxu0 0
  %1766 = vmatprep.subr.bf16.mxu0 0
  %1767 = vmatpush1.bf16.msra.mxu0 0
  %1768 = vmatprep.subr.bf16.mxu0 0
  %1769 = vmatpush1.bf16.msra.mxu0 0
  %1770 = vmatprep.subr.bf16.mxu0 0
  %1771 = vmatpush1.bf16.msra.mxu0 0
  %1772 = vmatprep.subr.bf16.mxu0 0
  %1773 = vmatpush1.bf16.msra.mxu0 0
  %1774 = vmatprep.subr.bf16.mxu0 0
  %1775 = vmatpush1.bf16.msra.mxu0 0
  %1776 = vmatprep.subr.bf16.mxu0 0
  %1777 = vmatpush1.bf16.msra.mxu0 0
  %1778 = vmatprep.subr.bf16.mxu0 0
  %1779 = vmatpush1.bf16.msra.mxu0 0
  %1780 = vmatprep.subr.bf16.mxu0 0
  %1781 = vmatpush1.bf16.msra.mxu0 0
  %1782 = vmatprep.subr.bf16.mxu0 0
  %1783 = vmatpush1.bf16.msra.mxu0 0
  %1784 = vmatprep.mubr.bf16.mxu0 0
  %1785 = vmatmul.mubr.bf16.gmra.mrb[0].mxu0 %v1661
  %v1786 = vpop.f32.mrb[0].mxu0
  %v1787 = vadd.f32 %v1746, %v1786
  %v1788 = vpop.f32.mrb[0].mxu0
  %v1789 = vadd.f32 %v1748, %v1788
  %v1790 = vpop.f32.mrb[0].mxu0
  %v1791 = vpop.f32.mrb[0].mxu0
  %1792 = vdwg.mxu0
  %s1793 = scalar_lea.vmem %s3, 600
  %v1794 = vld [vmem:[%s1793] sm:$0xff]
  %v1795 = vld [vmem:[%s1793 + $0x8] sm:$0xff]
  %v1796 = vld [vmem:[%s1793 + $0x10] sm:$0xff]
  %v1797 = vld [vmem:[%s1793 + $0x18] sm:$0xff]
  %v1798 = vld [vmem:[%s1793 + $0x20] sm:$0xff]
  %v1799 = vld [vmem:[%s1793 + $0x28] sm:$0xff]
  %v1800 = vld [vmem:[%s1793 + $0x30] sm:$0xff]
  %v1801 = vld [vmem:[%s1793 + $0x38] sm:$0xff]
  %v1802 = vld [vmem:[%s1793 + $0x40] sm:$0xff]
  %v1803 = vld [vmem:[%s1793 + $0x48] sm:$0xff]
  %v1804 = vld [vmem:[%s1793 + $0x50] sm:$0xff]
  %v1805 = vld [vmem:[%s1793 + $0x58] sm:$0xff]
  %v1806 = vld [vmem:[%s1793 + $0x60] sm:$0xff]
  %v1807 = vld [vmem:[%s1793 + $0x68] sm:$0xff]
  %v1808 = vld [vmem:[%s1793 + $0x70] sm:$0xff]
  %v1809 = vld [vmem:[%s1793 + $0x78] sm:$0xff]
  %v1810 = vld [vmem:[%s1793 + $0x80] sm:$0xff]
  %v1811 = vld [vmem:[%s1793 + $0x88] sm:$0xff]
  %v1812 = vld [vmem:[%s1793 + $0x90] sm:$0xff]
  %v1813 = vld [vmem:[%s1793 + $0x98] sm:$0xff]
  %v1814 = vld [vmem:[%s1793 + $0xa0] sm:$0xff]
  %v1815 = vld [vmem:[%s1793 + $0xa8] sm:$0xff]
  %v1816 = vld [vmem:[%s1793 + $0xb0] sm:$0xff]
  %v1817 = vld [vmem:[%s1793 + $0xb8] sm:$0xff]
  %v1818 = vld [vmem:[%s1793 + $0xc0] sm:$0xff]
  %v1819 = vld [vmem:[%s1793 + $0xc8] sm:$0xff]
  %v1820 = vld [vmem:[%s1793 + $0xd0] sm:$0xff]
  %v1821 = vld [vmem:[%s1793 + $0xd8] sm:$0xff]
  %v1822 = vld [vmem:[%s1793 + $0xe0] sm:$0xff]
  %v1823 = vld [vmem:[%s1793 + $0xe8] sm:$0xff]
  %v1824 = vld [vmem:[%s1793 + $0xf0] sm:$0xff]
  %v1825 = vld [vmem:[%s1793 + $0xf8] sm:$0xff]
  %v1826 = vld [vmem:[%s1793 + $0x100] sm:$0xff]
  %v1827 = vld [vmem:[%s1793 + $0x108] sm:$0xff]
  %v1828 = vld [vmem:[%s1793 + $0x110] sm:$0xff]
  %v1829 = vld [vmem:[%s1793 + $0x118] sm:$0xff]
  %v1830 = vld [vmem:[%s1793 + $0x120] sm:$0xff]
  %v1831 = vld [vmem:[%s1793 + $0x128] sm:$0xff]
  %v1832 = vld [vmem:[%s1793 + $0x130] sm:$0xff]
  %v1833 = vld [vmem:[%s1793 + $0x138] sm:$0xff]
  %v1834 = vld [vmem:[%s1793 + $0x140] sm:$0xff]
  %v1835 = vld [vmem:[%s1793 + $0x148] sm:$0xff]
  %v1836 = vld [vmem:[%s1793 + $0x150] sm:$0xff]
  %v1837 = vld [vmem:[%s1793 + $0x158] sm:$0xff]
  %v1838 = vld [vmem:[%s1793 + $0x160] sm:$0xff]
  %v1839 = vld [vmem:[%s1793 + $0x168] sm:$0xff]
  %v1840 = vld [vmem:[%s1793 + $0x170] sm:$0xff]
  %v1841 = vld [vmem:[%s1793 + $0x178] sm:$0xff]
  %v1842 = vld [vmem:[%s1793 + $0x180] sm:$0xff]
  %v1843 = vld [vmem:[%s1793 + $0x188] sm:$0xff]
  %v1844 = vld [vmem:[%s1793 + $0x190] sm:$0xff]
  %v1845 = vld [vmem:[%s1793 + $0x198] sm:$0xff]
  %v1846 = vld [vmem:[%s1793 + $0x1a0] sm:$0xff]
  %v1847 = vld [vmem:[%s1793 + $0x1a8] sm:$0xff]
  %v1848 = vld [vmem:[%s1793 + $0x1b0] sm:$0xff]
  %v1849 = vld [vmem:[%s1793 + $0x1b8] sm:$0xff]
  %v1850 = vld [vmem:[%s1793 + $0x1c0] sm:$0xff]
  %v1851 = vld [vmem:[%s1793 + $0x1c8] sm:$0xff]
  %v1852 = vld [vmem:[%s1793 + $0x1d0] sm:$0xff]
  %v1853 = vld [vmem:[%s1793 + $0x1d8] sm:$0xff]
  %v1854 = vld [vmem:[%s1793 + $0x1e0] sm:$0xff]
  %v1855 = vld [vmem:[%s1793 + $0x1e8] sm:$0xff]
  %v1856 = vld [vmem:[%s1793 + $0x1f0] sm:$0xff]
  %v1857 = vld [vmem:[%s1793 + $0x1f8] sm:$0xff]
  %v1858 = vld [vmem:[%s1793 + $0x200] sm:$0xff]
  %v1859 = vld [vmem:[%s1793 + $0x208] sm:$0xff]
  %v1860 = vld [vmem:[%s1793 + $0x210] sm:$0xff]
  %v1861 = vld [vmem:[%s1793 + $0x218] sm:$0xff]
  %v1862 = vld [vmem:[%s1793 + $0x220] sm:$0xff]
  %v1863 = vld [vmem:[%s1793 + $0x228] sm:$0xff]
  %v1864 = vld [vmem:[%s1793 + $0x230] sm:$0xff]
  %v1865 = vld [vmem:[%s1793 + $0x238] sm:$0xff]
  %v1866 = vld [vmem:[%s1793 + $0x240] sm:$0xff]
  %v1867 = vld [vmem:[%s1793 + $0x248] sm:$0xff]
  %v1868 = vld [vmem:[%s1793 + $0x250] sm:$0xff]
  %v1944 = vunpack.c.l.b16 %v1794
  %v1945 = vunpack.c.h.b16 %v1794
  %v1946 = vunpack.c.l.b16 %v1795
  %v1947 = vunpack.c.h.b16 %v1795
  %v1948 = vunpack.c.l.b16 %v1796
  %v1949 = vunpack.c.h.b16 %v1796
  %v1950 = vunpack.c.l.b16 %v1797
  %v1951 = vunpack.c.h.b16 %v1797
  %v1952 = vunpack.c.l.b16 %v1798
  %v1953 = vunpack.c.h.b16 %v1798
  %v1954 = vunpack.c.l.b16 %v1799
  %v1955 = vunpack.c.h.b16 %v1799
  %v1956 = vunpack.c.l.b16 %v1800
  %v1957 = vunpack.c.h.b16 %v1800
  %v1958 = vunpack.c.l.b16 %v1801
  %v1959 = vunpack.c.h.b16 %v1801
  %v1960 = vunpack.c.l.b16 %v1802
  %v1961 = vunpack.c.h.b16 %v1802
  %v1962 = vunpack.c.l.b16 %v1803
  %v1963 = vunpack.c.h.b16 %v1803
  %v1964 = vunpack.c.l.b16 %v1804
  %v1965 = vunpack.c.h.b16 %v1804
  %v1966 = vunpack.c.l.b16 %v1805
  %v1967 = vunpack.c.h.b16 %v1805
  %v1968 = vunpack.c.l.b16 %v1806
  %v1969 = vunpack.c.h.b16 %v1806
  %v1970 = vunpack.c.l.b16 %v1807
  %v1971 = vunpack.c.h.b16 %v1807
  %v1972 = vunpack.c.l.b16 %v1808
  %v1973 = vunpack.c.h.b16 %v1808
  %v1974 = vunpack.c.l.b16 %v1809
  %v1975 = vunpack.c.h.b16 %v1809
  %v1976 = vunpack.c.l.b16 %v1810
  %v1977 = vunpack.c.h.b16 %v1810
  %v1978 = vunpack.c.l.b16 %v1811
  %v1979 = vunpack.c.h.b16 %v1811
  %v1980 = vunpack.c.l.b16 %v1812
  %v1981 = vunpack.c.h.b16 %v1812
  %v1982 = vunpack.c.l.b16 %v1813
  %v1983 = vunpack.c.h.b16 %v1813
  %v1984 = vunpack.c.l.b16 %v1814
  %v1985 = vunpack.c.h.b16 %v1814
  %v1986 = vunpack.c.l.b16 %v1815
  %v1987 = vunpack.c.h.b16 %v1815
  %v1988 = vunpack.c.l.b16 %v1816
  %v1989 = vunpack.c.h.b16 %v1816
  %v1990 = vunpack.c.l.b16 %v1817
  %v1991 = vunpack.c.h.b16 %v1817
  %v1992 = vunpack.c.l.b16 %v1818
  %v1993 = vunpack.c.h.b16 %v1818
  %v1994 = vunpack.c.l.b16 %v1819
  %v1995 = vunpack.c.h.b16 %v1819
  %v1996 = vunpack.c.l.b16 %v1820
  %v1997 = vunpack.c.h.b16 %v1820
  %v1998 = vunpack.c.l.b16 %v1821
  %v1999 = vunpack.c.h.b16 %v1821
  %v2000 = vunpack.c.l.b16 %v1822
  %v2001 = vunpack.c.h.b16 %v1822
  %v2002 = vunpack.c.l.b16 %v1823
  %v2003 = vunpack.c.h.b16 %v1823
  %v2004 = vunpack.c.l.b16 %v1824
  %v2005 = vunpack.c.h.b16 %v1824
  %v2006 = vunpack.c.l.b16 %v1825
  %v2007 = vunpack.c.h.b16 %v1825
  %v2008 = vunpack.c.l.b16 %v1826
  %v2009 = vunpack.c.h.b16 %v1826
  %v2010 = vunpack.c.l.b16 %v1827
  %v2011 = vunpack.c.h.b16 %v1827
  %v2012 = vunpack.c.l.b16 %v1828
  %v2013 = vunpack.c.h.b16 %v1828
  %v2014 = vunpack.c.l.b16 %v1829
  %v2015 = vunpack.c.h.b16 %v1829
  %v2016 = vunpack.c.l.b16 %v1830
  %v2017 = vunpack.c.h.b16 %v1830
  %v2018 = vunpack.c.l.b16 %v1831
  %v2019 = vunpack.c.h.b16 %v1831
  %v2020 = vunpack.c.l.b16 %v1832
  %v2021 = vunpack.c.h.b16 %v1832
  %v2022 = vunpack.c.l.b16 %v1833
  %v2023 = vunpack.c.h.b16 %v1833
  %v2024 = vunpack.c.l.b16 %v1834
  %v2025 = vunpack.c.h.b16 %v1834
  %v2026 = vunpack.c.l.b16 %v1835
  %v2027 = vunpack.c.h.b16 %v1835
  %v2028 = vunpack.c.l.b16 %v1836
  %v2029 = vunpack.c.h.b16 %v1836
  %v2030 = vunpack.c.l.b16 %v1837
  %v2031 = vunpack.c.h.b16 %v1837
  %v2032 = vunpack.c.l.b16 %v1838
  %v2033 = vunpack.c.h.b16 %v1838
  %v2034 = vunpack.c.l.b16 %v1839
  %v2035 = vunpack.c.h.b16 %v1839
  %v2036 = vunpack.c.l.b16 %v1840
  %v2037 = vunpack.c.h.b16 %v1840
  %v2038 = vunpack.c.l.b16 %v1841
  %v2039 = vunpack.c.h.b16 %v1841
  %v2040 = vunpack.c.l.b16 %v1842
  %v2041 = vunpack.c.h.b16 %v1842
  %v2042 = vunpack.c.l.b16 %v1843
  %v2043 = vunpack.c.h.b16 %v1843
  %v2044 = vunpack.c.l.b16 %v1844
  %v2045 = vunpack.c.h.b16 %v1844
  %v2046 = vunpack.c.l.b16 %v1845
  %v2047 = vunpack.c.h.b16 %v1845
  %v2048 = vunpack.c.l.b16 %v1846
  %v2049 = vunpack.c.h.b16 %v1846
  %v2050 = vunpack.c.l.b16 %v1847
  %v2051 = vunpack.c.h.b16 %v1847
  %v2052 = vunpack.c.l.b16 %v1848
  %v2053 = vunpack.c.h.b16 %v1848
  %v2054 = vunpack.c.l.b16 %v1849
  %v2055 = vunpack.c.h.b16 %v1849
  %v2056 = vunpack.c.l.b16 %v1850
  %v2057 = vunpack.c.h.b16 %v1850
  %v2058 = vunpack.c.l.b16 %v1851
  %v2059 = vunpack.c.h.b16 %v1851
  %v2060 = vunpack.c.l.b16 %v1852
  %v2061 = vunpack.c.h.b16 %v1852
  %v2062 = vunpack.c.l.b16 %v1853
  %v2063 = vunpack.c.h.b16 %v1853
  %v2064 = vunpack.c.l.b16 %v1854
  %v2065 = vunpack.c.h.b16 %v1854
  %v2066 = vunpack.c.l.b16 %v1855
  %v2067 = vunpack.c.h.b16 %v1855
  %v2068 = vunpack.c.l.b16 %v1856
  %v2069 = vunpack.c.h.b16 %v1856
  %v2070 = vunpack.c.l.b16 %v1857
  %v2071 = vunpack.c.h.b16 %v1857
  %v2072 = vunpack.c.l.b16 %v1858
  %v2073 = vunpack.c.h.b16 %v1858
  %v2074 = vunpack.c.l.b16 %v1859
  %v2075 = vunpack.c.h.b16 %v1859
  %v2076 = vunpack.c.l.b16 %v1860
  %v2077 = vunpack.c.h.b16 %v1860
  %v2078 = vunpack.c.l.b16 %v1861
  %v2079 = vunpack.c.h.b16 %v1861
  %v2080 = vunpack.c.l.b16 %v1862
  %v2081 = vunpack.c.h.b16 %v1862
  %v2082 = vunpack.c.l.b16 %v1863
  %v2083 = vunpack.c.h.b16 %v1863
  %v2084 = vunpack.c.l.b16 %v1864
  %v2085 = vunpack.c.h.b16 %v1864
  %v2086 = vunpack.c.l.b16 %v1865
  %v2087 = vunpack.c.h.b16 %v1865
  %v2088 = vunpack.c.l.b16 %v1866
  %v2089 = vunpack.c.h.b16 %v1866
  %v2090 = vunpack.c.l.b16 %v1867
  %v2091 = vunpack.c.h.b16 %v1867
  %v2092 = vunpack.c.l.b16 %v1868
  %v2093 = vunpack.c.h.b16 %v1868
  %v2094 = vpack.c.b16 %v1946, %v1944
  %v2095 = vpack.c.b16 %v1947, %v1945
  %v2096 = vpack.c.b16 %v1950, %v1948
  %v2097 = vpack.c.b16 %v1951, %v1949
  %v2098 = vpack.c.b16 %v1954, %v1952
  %v2099 = vpack.c.b16 %v1955, %v1953
  %v2100 = vpack.c.b16 %v1958, %v1956
  %v2101 = vpack.c.b16 %v1959, %v1957
  %v2102 = vpack.c.b16 %v1962, %v1960
  %v2103 = vpack.c.b16 %v1963, %v1961
  %v2104 = vpack.c.b16 %v1966, %v1964
  %v2105 = vpack.c.b16 %v1967, %v1965
  %v2106 = vpack.c.b16 %v1970, %v1968
  %v2107 = vpack.c.b16 %v1971, %v1969
  %v2108 = vpack.c.b16 %v1974, %v1972
  %v2109 = vpack.c.b16 %v1975, %v1973
  %v2110 = vpack.c.b16 %v1978, %v1976
  %v2111 = vpack.c.b16 %v1979, %v1977
  %v2112 = vpack.c.b16 %v1982, %v1980
  %v2113 = vpack.c.b16 %v1983, %v1981
  %v2114 = vpack.c.b16 %v1986, %v1984
  %v2115 = vpack.c.b16 %v1987, %v1985
  %v2116 = vpack.c.b16 %v1990, %v1988
  %v2117 = vpack.c.b16 %v1991, %v1989
  %v2118 = vpack.c.b16 %v1994, %v1992
  %v2119 = vpack.c.b16 %v1995, %v1993
  %v2120 = vpack.c.b16 %v1998, %v1996
  %v2121 = vpack.c.b16 %v1999, %v1997
  %v2122 = vpack.c.b16 %v2002, %v2000
  %v2123 = vpack.c.b16 %v2003, %v2001
  %v2124 = vpack.c.b16 %v2006, %v2004
  %v2125 = vpack.c.b16 %v2007, %v2005
  %v2126 = vpack.c.b16 %v2010, %v2008
  %v2127 = vpack.c.b16 %v2011, %v2009
  %v2128 = vpack.c.b16 %v2014, %v2012
  %v2129 = vpack.c.b16 %v2015, %v2013
  %v2130 = vpack.c.b16 %v2018, %v2016
  %v2131 = vpack.c.b16 %v2019, %v2017
  %v2132 = vpack.c.b16 %v2022, %v2020
  %v2133 = vpack.c.b16 %v2023, %v2021
  %v2134 = vpack.c.b16 %v2026, %v2024
  %v2135 = vpack.c.b16 %v2027, %v2025
  %v2136 = vpack.c.b16 %v2030, %v2028
  %v2137 = vpack.c.b16 %v2031, %v2029
  %v2138 = vpack.c.b16 %v2034, %v2032
  %v2139 = vpack.c.b16 %v2035, %v2033
  %v2140 = vpack.c.b16 %v2038, %v2036
  %v2141 = vpack.c.b16 %v2039, %v2037
  %v2142 = vpack.c.b16 %v2042, %v2040
  %v2143 = vpack.c.b16 %v2043, %v2041
  %v2144 = vpack.c.b16 %v2046, %v2044
  %v2145 = vpack.c.b16 %v2047, %v2045
  %v2146 = vpack.c.b16 %v2050, %v2048
  %v2147 = vpack.c.b16 %v2051, %v2049
  %v2148 = vpack.c.b16 %v2054, %v2052
  %v2149 = vpack.c.b16 %v2055, %v2053
  %v2150 = vpack.c.b16 %v2058, %v2056
  %v2151 = vpack.c.b16 %v2059, %v2057
  %v2152 = vpack.c.b16 %v2062, %v2060
  %v2153 = vpack.c.b16 %v2063, %v2061
  %v2154 = vpack.c.b16 %v2066, %v2064
  %v2155 = vpack.c.b16 %v2067, %v2065
  %v2156 = vpack.c.b16 %v2070, %v2068
  %v2157 = vpack.c.b16 %v2071, %v2069
  %v2158 = vpack.c.b16 %v2074, %v2072
  %v2159 = vpack.c.b16 %v2075, %v2073
  %v2160 = vpack.c.b16 %v2078, %v2076
  %v2161 = vpack.c.b16 %v2079, %v2077
  %v2162 = vpack.c.b16 %v2082, %v2080
  %v2163 = vpack.c.b16 %v2083, %v2081
  %v2164 = vpack.c.b16 %v2086, %v2084
  %v2165 = vpack.c.b16 %v2087, %v2085
  %v2166 = vpack.c.b16 %v2090, %v2088
  %v2167 = vpack.c.b16 %v2091, %v2089
  %v2168 = vpack.c.b16 %v2092, %v2092
  %v2169 = vpack.c.b16 %v2093, %v2093
  %v2245 = vsel %vm1663, %v2168, 0
  %v2248 = vsel %vm1663, %v2169, 0
  %2250 = vmatprep.subr.bf16.mxu0 %v2095
  %2251 = vmatpush1.bf16.msra.mxu0 %v2094
  %2252 = vmatprep.subr.bf16.mxu0 %v2097
  %2253 = vmatpush1.bf16.msra.mxu0 %v2096
  %2254 = vmatprep.subr.bf16.mxu0 %v2099
  %2255 = vmatpush1.bf16.msra.mxu0 %v2098
  %2256 = vmatprep.subr.bf16.mxu0 %v2101
  %2257 = vmatpush1.bf16.msra.mxu0 %v2100
  %2258 = vmatprep.subr.bf16.mxu0 %v2103
  %2259 = vmatpush1.bf16.msra.mxu0 %v2102
  %2260 = vmatprep.subr.bf16.mxu0 %v2105
  %2261 = vmatpush1.bf16.msra.mxu0 %v2104
  %2262 = vmatprep.subr.bf16.mxu0 %v2107
  %2263 = vmatpush1.bf16.msra.mxu0 %v2106
  %2264 = vmatprep.subr.bf16.mxu0 %v2109
  %2265 = vmatpush1.bf16.msra.mxu0 %v2108
  %2266 = vmatprep.subr.bf16.mxu0 %v2111
  %2267 = vmatpush1.bf16.msra.mxu0 %v2110
  %2268 = vmatprep.subr.bf16.mxu0 %v2113
  %2269 = vmatpush1.bf16.msra.mxu0 %v2112
  %2270 = vmatprep.subr.bf16.mxu0 %v2115
  %2271 = vmatpush1.bf16.msra.mxu0 %v2114
  %2272 = vmatprep.subr.bf16.mxu0 %v2117
  %2273 = vmatpush1.bf16.msra.mxu0 %v2116
  %2274 = vmatprep.subr.bf16.mxu0 %v2119
  %2275 = vmatpush1.bf16.msra.mxu0 %v2118
  %2276 = vmatprep.subr.bf16.mxu0 %v2121
  %2277 = vmatpush1.bf16.msra.mxu0 %v2120
  %2278 = vmatprep.subr.bf16.mxu0 %v2123
  %2279 = vmatpush1.bf16.msra.mxu0 %v2122
  %2280 = vmatprep.subr.bf16.mxu0 %v2125
  %2281 = vmatpush1.bf16.msra.mxu0 %v2124
  %2282 = vmatprep.mubr.bf16.mxu0 %v1205
  %2283 = vmatmul.mubr.bf16.gmra.mrb[0].mxu0 %v1204
  %v2284 = vpop.f32.mrb[0].mxu0
  %v2285 = vadd.f32 0.0, %v2284
  %v2286 = vpop.f32.mrb[0].mxu0
  %v2287 = vadd.f32 0.0, %v2286
  %v2288 = vpop.f32.mrb[0].mxu0
  %v2289 = vpop.f32.mrb[0].mxu0
  %2290 = vdwg.mxu0
  %2291 = vmatprep.subr.bf16.mxu0 %v2127
  %2292 = vmatpush1.bf16.msra.mxu0 %v2126
  %2293 = vmatprep.subr.bf16.mxu0 %v2129
  %2294 = vmatpush1.bf16.msra.mxu0 %v2128
  %2295 = vmatprep.subr.bf16.mxu0 %v2131
  %2296 = vmatpush1.bf16.msra.mxu0 %v2130
  %2297 = vmatprep.subr.bf16.mxu0 %v2133
  %2298 = vmatpush1.bf16.msra.mxu0 %v2132
  %2299 = vmatprep.subr.bf16.mxu0 %v2135
  %2300 = vmatpush1.bf16.msra.mxu0 %v2134
  %2301 = vmatprep.subr.bf16.mxu0 %v2137
  %2302 = vmatpush1.bf16.msra.mxu0 %v2136
  %2303 = vmatprep.subr.bf16.mxu0 %v2139
  %2304 = vmatpush1.bf16.msra.mxu0 %v2138
  %2305 = vmatprep.subr.bf16.mxu0 %v2141
  %2306 = vmatpush1.bf16.msra.mxu0 %v2140
  %2307 = vmatprep.subr.bf16.mxu0 %v2143
  %2308 = vmatpush1.bf16.msra.mxu0 %v2142
  %2309 = vmatprep.subr.bf16.mxu0 %v2145
  %2310 = vmatpush1.bf16.msra.mxu0 %v2144
  %2311 = vmatprep.subr.bf16.mxu0 %v2147
  %2312 = vmatpush1.bf16.msra.mxu0 %v2146
  %2313 = vmatprep.subr.bf16.mxu0 %v2149
  %2314 = vmatpush1.bf16.msra.mxu0 %v2148
  %2315 = vmatprep.subr.bf16.mxu0 %v2151
  %2316 = vmatpush1.bf16.msra.mxu0 %v2150
  %2317 = vmatprep.subr.bf16.mxu0 %v2153
  %2318 = vmatpush1.bf16.msra.mxu0 %v2152
  %2319 = vmatprep.subr.bf16.mxu0 %v2155
  %2320 = vmatpush1.bf16.msra.mxu0 %v2154
  %2321 = vmatprep.subr.bf16.mxu0 %v2157
  %2322 = vmatpush1.bf16.msra.mxu0 %v2156
  %2323 = vmatprep.mubr.bf16.mxu0 %v1207
  %2324 = vmatmul.mubr.bf16.gmra.mrb[0].mxu0 %v1206
  %v2325 = vpop.f32.mrb[0].mxu0
  %v2326 = vadd.f32 %v2285, %v2325
  %v2327 = vpop.f32.mrb[0].mxu0
  %v2328 = vadd.f32 %v2287, %v2327
  %v2329 = vpop.f32.mrb[0].mxu0
  %v2330 = vpop.f32.mrb[0].mxu0
  %2331 = vdwg.mxu0
  %2332 = vmatprep.subr.bf16.mxu0 %v2159
  %2333 = vmatpush1.bf16.msra.mxu0 %v2158
  %2334 = vmatprep.subr.bf16.mxu0 %v2161
  %2335 = vmatpush1.bf16.msra.mxu0 %v2160
  %2336 = vmatprep.subr.bf16.mxu0 %v2163
  %2337 = vmatpush1.bf16.msra.mxu0 %v2162
  %2338 = vmatprep.subr.bf16.mxu0 %v2165
  %2339 = vmatpush1.bf16.msra.mxu0 %v2164
  %2340 = vmatprep.subr.bf16.mxu0 %v2167
  %2341 = vmatpush1.bf16.msra.mxu0 %v2166
  %2342 = vmatprep.subr.bf16.mxu0 %v2248
  %2343 = vmatpush1.bf16.msra.mxu0 %v2245
  %2344 = vmatprep.subr.bf16.mxu0 0
  %2345 = vmatpush1.bf16.msra.mxu0 0
  %2346 = vmatprep.subr.bf16.mxu0 0
  %2347 = vmatpush1.bf16.msra.mxu0 0
  %2348 = vmatprep.subr.bf16.mxu0 0
  %2349 = vmatpush1.bf16.msra.mxu0 0
  %2350 = vmatprep.subr.bf16.mxu0 0
  %2351 = vmatpush1.bf16.msra.mxu0 0
  %2352 = vmatprep.subr.bf16.mxu0 0
  %2353 = vmatpush1.bf16.msra.mxu0 0
  %2354 = vmatprep.subr.bf16.mxu0 0
  %2355 = vmatpush1.bf16.msra.mxu0 0
  %2356 = vmatprep.subr.bf16.mxu0 0
  %2357 = vmatpush1.bf16.msra.mxu0 0
  %2358 = vmatprep.subr.bf16.mxu0 0
  %2359 = vmatpush1.bf16.msra.mxu0 0
  %2360 = vmatprep.subr.bf16.mxu0 0
  %2361 = vmatpush1.bf16.msra.mxu0 0
  %2362 = vmatprep.subr.bf16.mxu0 0
  %2363 = vmatpush1.bf16.msra.mxu0 0
  %2364 = vmatprep.mubr.bf16.mxu0 0
  %2365 = vmatmul.mubr.bf16.gmra.mrb[0].mxu0 %v1661
  %v2366 = vpop.f32.mrb[0].mxu0
  %v2367 = vadd.f32 %v2326, %v2366
  %v2368 = vpop.f32.mrb[0].mxu0
  %v2369 = vadd.f32 %v2328, %v2368
  %v2370 = vpop.f32.mrb[0].mxu0
  %v2371 = vpop.f32.mrb[0].mxu0
  %2372 = vdwg.mxu0
  %v2373 = vmax.f32 %v1787, %v2367
  %v2374 = vmax.f32 %v1789, %v2369
  %s2375 = scalar_lea.vmem %s3, 1200
  %v2376 = vld [vmem:[%s2375] sm:$0xff]
  %v2377 = vld [vmem:[%s2375 + $0x8] sm:$0xff]
  %v2378 = vld [vmem:[%s2375 + $0x10] sm:$0xff]
  %v2379 = vld [vmem:[%s2375 + $0x18] sm:$0xff]
  %v2380 = vld [vmem:[%s2375 + $0x20] sm:$0xff]
  %v2381 = vld [vmem:[%s2375 + $0x28] sm:$0xff]
  %v2382 = vld [vmem:[%s2375 + $0x30] sm:$0xff]
  %v2383 = vld [vmem:[%s2375 + $0x38] sm:$0xff]
  %v2384 = vld [vmem:[%s2375 + $0x40] sm:$0xff]
  %v2385 = vld [vmem:[%s2375 + $0x48] sm:$0xff]
  %v2386 = vld [vmem:[%s2375 + $0x50] sm:$0xff]
  %v2387 = vld [vmem:[%s2375 + $0x58] sm:$0xff]
  %v2388 = vld [vmem:[%s2375 + $0x60] sm:$0xff]
  %v2389 = vld [vmem:[%s2375 + $0x68] sm:$0xff]
  %v2390 = vld [vmem:[%s2375 + $0x70] sm:$0xff]
  %v2391 = vld [vmem:[%s2375 + $0x78] sm:$0xff]
  %v2392 = vld [vmem:[%s2375 + $0x80] sm:$0xff]
  %v2393 = vld [vmem:[%s2375 + $0x88] sm:$0xff]
  %v2394 = vld [vmem:[%s2375 + $0x90] sm:$0xff]
  %v2395 = vld [vmem:[%s2375 + $0x98] sm:$0xff]
  %v2396 = vld [vmem:[%s2375 + $0xa0] sm:$0xff]
  %v2397 = vld [vmem:[%s2375 + $0xa8] sm:$0xff]
  %v2398 = vld [vmem:[%s2375 + $0xb0] sm:$0xff]
  %v2399 = vld [vmem:[%s2375 + $0xb8] sm:$0xff]
  %v2400 = vld [vmem:[%s2375 + $0xc0] sm:$0xff]
  %v2401 = vld [vmem:[%s2375 + $0xc8] sm:$0xff]
  %v2402 = vld [vmem:[%s2375 + $0xd0] sm:$0xff]
  %v2403 = vld [vmem:[%s2375 + $0xd8] sm:$0xff]
  %v2404 = vld [vmem:[%s2375 + $0xe0] sm:$0xff]
  %v2405 = vld [vmem:[%s2375 + $0xe8] sm:$0xff]
  %v2406 = vld [vmem:[%s2375 + $0xf0] sm:$0xff]
  %v2407 = vld [vmem:[%s2375 + $0xf8] sm:$0xff]
  %v2408 = vld [vmem:[%s2375 + $0x100] sm:$0xff]
  %v2409 = vld [vmem:[%s2375 + $0x108] sm:$0xff]
  %v2410 = vld [vmem:[%s2375 + $0x110] sm:$0xff]
  %v2411 = vld [vmem:[%s2375 + $0x118] sm:$0xff]
  %v2412 = vld [vmem:[%s2375 + $0x120] sm:$0xff]
  %v2413 = vld [vmem:[%s2375 + $0x128] sm:$0xff]
  %v2414 = vld [vmem:[%s2375 + $0x130] sm:$0xff]
  %v2415 = vld [vmem:[%s2375 + $0x138] sm:$0xff]
  %v2416 = vld [vmem:[%s2375 + $0x140] sm:$0xff]
  %v2417 = vld [vmem:[%s2375 + $0x148] sm:$0xff]
  %v2418 = vld [vmem:[%s2375 + $0x150] sm:$0xff]
  %v2419 = vld [vmem:[%s2375 + $0x158] sm:$0xff]
  %v2420 = vld [vmem:[%s2375 + $0x160] sm:$0xff]
  %v2421 = vld [vmem:[%s2375 + $0x168] sm:$0xff]
  %v2422 = vld [vmem:[%s2375 + $0x170] sm:$0xff]
  %v2423 = vld [vmem:[%s2375 + $0x178] sm:$0xff]
  %v2424 = vld [vmem:[%s2375 + $0x180] sm:$0xff]
  %v2425 = vld [vmem:[%s2375 + $0x188] sm:$0xff]
  %v2426 = vld [vmem:[%s2375 + $0x190] sm:$0xff]
  %v2427 = vld [vmem:[%s2375 + $0x198] sm:$0xff]
  %v2428 = vld [vmem:[%s2375 + $0x1a0] sm:$0xff]
  %v2429 = vld [vmem:[%s2375 + $0x1a8] sm:$0xff]
  %v2430 = vld [vmem:[%s2375 + $0x1b0] sm:$0xff]
  %v2431 = vld [vmem:[%s2375 + $0x1b8] sm:$0xff]
  %v2432 = vld [vmem:[%s2375 + $0x1c0] sm:$0xff]
  %v2433 = vld [vmem:[%s2375 + $0x1c8] sm:$0xff]
  %v2434 = vld [vmem:[%s2375 + $0x1d0] sm:$0xff]
  %v2435 = vld [vmem:[%s2375 + $0x1d8] sm:$0xff]
  %v2436 = vld [vmem:[%s2375 + $0x1e0] sm:$0xff]
  %v2437 = vld [vmem:[%s2375 + $0x1e8] sm:$0xff]
  %v2438 = vld [vmem:[%s2375 + $0x1f0] sm:$0xff]
  %v2439 = vld [vmem:[%s2375 + $0x1f8] sm:$0xff]
  %v2440 = vld [vmem:[%s2375 + $0x200] sm:$0xff]
  %v2441 = vld [vmem:[%s2375 + $0x208] sm:$0xff]
  %v2442 = vld [vmem:[%s2375 + $0x210] sm:$0xff]
  %v2443 = vld [vmem:[%s2375 + $0x218] sm:$0xff]
  %v2444 = vld [vmem:[%s2375 + $0x220] sm:$0xff]
  %v2445 = vld [vmem:[%s2375 + $0x228] sm:$0xff]
  %v2446 = vld [vmem:[%s2375 + $0x230] sm:$0xff]
  %v2447 = vld [vmem:[%s2375 + $0x238] sm:$0xff]
  %v2448 = vld [vmem:[%s2375 + $0x240] sm:$0xff]
  %v2449 = vld [vmem:[%s2375 + $0x248] sm:$0xff]
  %v2450 = vld [vmem:[%s2375 + $0x250] sm:$0xff]
  %v2526 = vunpack.c.l.b16 %v2376
  %v2527 = vunpack.c.h.b16 %v2376
  %v2528 = vunpack.c.l.b16 %v2377
  %v2529 = vunpack.c.h.b16 %v2377
  %v2530 = vunpack.c.l.b16 %v2378
  %v2531 = vunpack.c.h.b16 %v2378
  %v2532 = vunpack.c.l.b16 %v2379
  %v2533 = vunpack.c.h.b16 %v2379
  %v2534 = vunpack.c.l.b16 %v2380
  %v2535 = vunpack.c.h.b16 %v2380
  %v2536 = vunpack.c.l.b16 %v2381
  %v2537 = vunpack.c.h.b16 %v2381
  %v2538 = vunpack.c.l.b16 %v2382
  %v2539 = vunpack.c.h.b16 %v2382
  %v2540 = vunpack.c.l.b16 %v2383
  %v2541 = vunpack.c.h.b16 %v2383
  %v2542 = vunpack.c.l.b16 %v2384
  %v2543 = vunpack.c.h.b16 %v2384
  %v2544 = vunpack.c.l.b16 %v2385
  %v2545 = vunpack.c.h.b16 %v2385
  %v2546 = vunpack.c.l.b16 %v2386
  %v2547 = vunpack.c.h.b16 %v2386
  %v2548 = vunpack.c.l.b16 %v2387
  %v2549 = vunpack.c.h.b16 %v2387
  %v2550 = vunpack.c.l.b16 %v2388
  %v2551 = vunpack.c.h.b16 %v2388
  %v2552 = vunpack.c.l.b16 %v2389
  %v2553 = vunpack.c.h.b16 %v2389
  %v2554 = vunpack.c.l.b16 %v2390
  %v2555 = vunpack.c.h.b16 %v2390
  %v2556 = vunpack.c.l.b16 %v2391
  %v2557 = vunpack.c.h.b16 %v2391
  %v2558 = vunpack.c.l.b16 %v2392
  %v2559 = vunpack.c.h.b16 %v2392
  %v2560 = vunpack.c.l.b16 %v2393
  %v2561 = vunpack.c.h.b16 %v2393
  %v2562 = vunpack.c.l.b16 %v2394
  %v2563 = vunpack.c.h.b16 %v2394
  %v2564 = vunpack.c.l.b16 %v2395
  %v2565 = vunpack.c.h.b16 %v2395
  %v2566 = vunpack.c.l.b16 %v2396
  %v2567 = vunpack.c.h.b16 %v2396
  %v2568 = vunpack.c.l.b16 %v2397
  %v2569 = vunpack.c.h.b16 %v2397
  %v2570 = vunpack.c.l.b16 %v2398
  %v2571 = vunpack.c.h.b16 %v2398
  %v2572 = vunpack.c.l.b16 %v2399
  %v2573 = vunpack.c.h.b16 %v2399
  %v2574 = vunpack.c.l.b16 %v2400
  %v2575 = vunpack.c.h.b16 %v2400
  %v2576 = vunpack.c.l.b16 %v2401
  %v2577 = vunpack.c.h.b16 %v2401
  %v2578 = vunpack.c.l.b16 %v2402
  %v2579 = vunpack.c.h.b16 %v2402
  %v2580 = vunpack.c.l.b16 %v2403
  %v2581 = vunpack.c.h.b16 %v2403
  %v2582 = vunpack.c.l.b16 %v2404
  %v2583 = vunpack.c.h.b16 %v2404
  %v2584 = vunpack.c.l.b16 %v2405
  %v2585 = vunpack.c.h.b16 %v2405
  %v2586 = vunpack.c.l.b16 %v2406
  %v2587 = vunpack.c.h.b16 %v2406
  %v2588 = vunpack.c.l.b16 %v2407
  %v2589 = vunpack.c.h.b16 %v2407
  %v2590 = vunpack.c.l.b16 %v2408
  %v2591 = vunpack.c.h.b16 %v2408
  %v2592 = vunpack.c.l.b16 %v2409
  %v2593 = vunpack.c.h.b16 %v2409
  %v2594 = vunpack.c.l.b16 %v2410
  %v2595 = vunpack.c.h.b16 %v2410
  %v2596 = vunpack.c.l.b16 %v2411
  %v2597 = vunpack.c.h.b16 %v2411
  %v2598 = vunpack.c.l.b16 %v2412
  %v2599 = vunpack.c.h.b16 %v2412
  %v2600 = vunpack.c.l.b16 %v2413
  %v2601 = vunpack.c.h.b16 %v2413
  %v2602 = vunpack.c.l.b16 %v2414
  %v2603 = vunpack.c.h.b16 %v2414
  %v2604 = vunpack.c.l.b16 %v2415
  %v2605 = vunpack.c.h.b16 %v2415
  %v2606 = vunpack.c.l.b16 %v2416
  %v2607 = vunpack.c.h.b16 %v2416
  %v2608 = vunpack.c.l.b16 %v2417
  %v2609 = vunpack.c.h.b16 %v2417
  %v2610 = vunpack.c.l.b16 %v2418
  %v2611 = vunpack.c.h.b16 %v2418
  %v2612 = vunpack.c.l.b16 %v2419
  %v2613 = vunpack.c.h.b16 %v2419
  %v2614 = vunpack.c.l.b16 %v2420
  %v2615 = vunpack.c.h.b16 %v2420
  %v2616 = vunpack.c.l.b16 %v2421
  %v2617 = vunpack.c.h.b16 %v2421
  %v2618 = vunpack.c.l.b16 %v2422
  %v2619 = vunpack.c.h.b16 %v2422
  %v2620 = vunpack.c.l.b16 %v2423
  %v2621 = vunpack.c.h.b16 %v2423
  %v2622 = vunpack.c.l.b16 %v2424
  %v2623 = vunpack.c.h.b16 %v2424
  %v2624 = vunpack.c.l.b16 %v2425
  %v2625 = vunpack.c.h.b16 %v2425
  %v2626 = vunpack.c.l.b16 %v2426
  %v2627 = vunpack.c.h.b16 %v2426
  %v2628 = vunpack.c.l.b16 %v2427
  %v2629 = vunpack.c.h.b16 %v2427
  %v2630 = vunpack.c.l.b16 %v2428
  %v2631 = vunpack.c.h.b16 %v2428
  %v2632 = vunpack.c.l.b16 %v2429
  %v2633 = vunpack.c.h.b16 %v2429
  %v2634 = vunpack.c.l.b16 %v2430
  %v2635 = vunpack.c.h.b16 %v2430
  %v2636 = vunpack.c.l.b16 %v2431
  %v2637 = vunpack.c.h.b16 %v2431
  %v2638 = vunpack.c.l.b16 %v2432
  %v2639 = vunpack.c.h.b16 %v2432
  %v2640 = vunpack.c.l.b16 %v2433
  %v2641 = vunpack.c.h.b16 %v2433
  %v2642 = vunpack.c.l.b16 %v2434
  %v2643 = vunpack.c.h.b16 %v2434
  %v2644 = vunpack.c.l.b16 %v2435
  %v2645 = vunpack.c.h.b16 %v2435
  %v2646 = vunpack.c.l.b16 %v2436
  %v2647 = vunpack.c.h.b16 %v2436
  %v2648 = vunpack.c.l.b16 %v2437
  %v2649 = vunpack.c.h.b16 %v2437
  %v2650 = vunpack.c.l.b16 %v2438
  %v2651 = vunpack.c.h.b16 %v2438
  %v2652 = vunpack.c.l.b16 %v2439
  %v2653 = vunpack.c.h.b16 %v2439
  %v2654 = vunpack.c.l.b16 %v2440
  %v2655 = vunpack.c.h.b16 %v2440
  %v2656 = vunpack.c.l.b16 %v2441
  %v2657 = vunpack.c.h.b16 %v2441
  %v2658 = vunpack.c.l.b16 %v2442
  %v2659 = vunpack.c.h.b16 %v2442
  %v2660 = vunpack.c.l.b16 %v2443
  %v2661 = vunpack.c.h.b16 %v2443
  %v2662 = vunpack.c.l.b16 %v2444
  %v2663 = vunpack.c.h.b16 %v2444
  %v2664 = vunpack.c.l.b16 %v2445
  %v2665 = vunpack.c.h.b16 %v2445
  %v2666 = vunpack.c.l.b16 %v2446
  %v2667 = vunpack.c.h.b16 %v2446
  %v2668 = vunpack.c.l.b16 %v2447
  %v2669 = vunpack.c.h.b16 %v2447
  %v2670 = vunpack.c.l.b16 %v2448
  %v2671 = vunpack.c.h.b16 %v2448
  %v2672 = vunpack.c.l.b16 %v2449
  %v2673 = vunpack.c.h.b16 %v2449
  %v2674 = vunpack.c.l.b16 %v2450
  %v2675 = vunpack.c.h.b16 %v2450
  %v2676 = vpack.c.b16 %v2528, %v2526
  %v2677 = vpack.c.b16 %v2529, %v2527
  %v2678 = vpack.c.b16 %v2532, %v2530
  %v2679 = vpack.c.b16 %v2533, %v2531
  %v2680 = vpack.c.b16 %v2536, %v2534
  %v2681 = vpack.c.b16 %v2537, %v2535
  %v2682 = vpack.c.b16 %v2540, %v2538
  %v2683 = vpack.c.b16 %v2541, %v2539
  %v2684 = vpack.c.b16 %v2544, %v2542
  %v2685 = vpack.c.b16 %v2545, %v2543
  %v2686 = vpack.c.b16 %v2548, %v2546
  %v2687 = vpack.c.b16 %v2549, %v2547
  %v2688 = vpack.c.b16 %v2552, %v2550
  %v2689 = vpack.c.b16 %v2553, %v2551
  %v2690 = vpack.c.b16 %v2556, %v2554
  %v2691 = vpack.c.b16 %v2557, %v2555
  %v2692 = vpack.c.b16 %v2560, %v2558
  %v2693 = vpack.c.b16 %v2561, %v2559
  %v2694 = vpack.c.b16 %v2564, %v2562
  %v2695 = vpack.c.b16 %v2565, %v2563
  %v2696 = vpack.c.b16 %v2568, %v2566
  %v2697 = vpack.c.b16 %v2569, %v2567
  %v2698 = vpack.c.b16 %v2572, %v2570
  %v2699 = vpack.c.b16 %v2573, %v2571
  %v2700 = vpack.c.b16 %v2576, %v2574
  %v2701 = vpack.c.b16 %v2577, %v2575
  %v2702 = vpack.c.b16 %v2580, %v2578
  %v2703 = vpack.c.b16 %v2581, %v2579
  %v2704 = vpack.c.b16 %v2584, %v2582
  %v2705 = vpack.c.b16 %v2585, %v2583
  %v2706 = vpack.c.b16 %v2588, %v2586
  %v2707 = vpack.c.b16 %v2589, %v2587
  %v2708 = vpack.c.b16 %v2592, %v2590
  %v2709 = vpack.c.b16 %v2593, %v2591
  %v2710 = vpack.c.b16 %v2596, %v2594
  %v2711 = vpack.c.b16 %v2597, %v2595
  %v2712 = vpack.c.b16 %v2600, %v2598
  %v2713 = vpack.c.b16 %v2601, %v2599
  %v2714 = vpack.c.b16 %v2604, %v2602
  %v2715 = vpack.c.b16 %v2605, %v2603
  %v2716 = vpack.c.b16 %v2608, %v2606
  %v2717 = vpack.c.b16 %v2609, %v2607
  %v2718 = vpack.c.b16 %v2612, %v2610
  %v2719 = vpack.c.b16 %v2613, %v2611
  %v2720 = vpack.c.b16 %v2616, %v2614
  %v2721 = vpack.c.b16 %v2617, %v2615
  %v2722 = vpack.c.b16 %v2620, %v2618
  %v2723 = vpack.c.b16 %v2621, %v2619
  %v2724 = vpack.c.b16 %v2624, %v2622
  %v2725 = vpack.c.b16 %v2625, %v2623
  %v2726 = vpack.c.b16 %v2628, %v2626
  %v2727 = vpack.c.b16 %v2629, %v2627
  %v2728 = vpack.c.b16 %v2632, %v2630
  %v2729 = vpack.c.b16 %v2633, %v2631
  %v2730 = vpack.c.b16 %v2636, %v2634
  %v2731 = vpack.c.b16 %v2637, %v2635
  %v2732 = vpack.c.b16 %v2640, %v2638
  %v2733 = vpack.c.b16 %v2641, %v2639
  %v2734 = vpack.c.b16 %v2644, %v2642
  %v2735 = vpack.c.b16 %v2645, %v2643
  %v2736 = vpack.c.b16 %v2648, %v2646
  %v2737 = vpack.c.b16 %v2649, %v2647
  %v2738 = vpack.c.b16 %v2652, %v2650
  %v2739 = vpack.c.b16 %v2653, %v2651
  %v2740 = vpack.c.b16 %v2656, %v2654
  %v2741 = vpack.c.b16 %v2657, %v2655
  %v2742 = vpack.c.b16 %v2660, %v2658
  %v2743 = vpack.c.b16 %v2661, %v2659
  %v2744 = vpack.c.b16 %v2664, %v2662
  %v2745 = vpack.c.b16 %v2665, %v2663
  %v2746 = vpack.c.b16 %v2668, %v2666
  %v2747 = vpack.c.b16 %v2669, %v2667
  %v2748 = vpack.c.b16 %v2672, %v2670
  %v2749 = vpack.c.b16 %v2673, %v2671
  %v2750 = vpack.c.b16 %v2674, %v2674
  %v2751 = vpack.c.b16 %v2675, %v2675
  %v2827 = vsel %vm1663, %v2750, 0
  %v2830 = vsel %vm1663, %v2751, 0
  %2832 = vmatprep.subr.bf16.mxu0 %v2677
  %2833 = vmatpush1.bf16.msra.mxu0 %v2676
  %2834 = vmatprep.subr.bf16.mxu0 %v2679
  %2835 = vmatpush1.bf16.msra.mxu0 %v2678
  %2836 = vmatprep.subr.bf16.mxu0 %v2681
  %2837 = vmatpush1.bf16.msra.mxu0 %v2680
  %2838 = vmatprep.subr.bf16.mxu0 %v2683
  %2839 = vmatpush1.bf16.msra.mxu0 %v2682
  %2840 = vmatprep.subr.bf16.mxu0 %v2685
  %2841 = vmatpush1.bf16.msra.mxu0 %v2684
  %2842 = vmatprep.subr.bf16.mxu0 %v2687
  %2843 = vmatpush1.bf16.msra.mxu0 %v2686
  %2844 = vmatprep.subr.bf16.mxu0 %v2689
  %2845 = vmatpush1.bf16.msra.mxu0 %v2688
  %2846 = vmatprep.subr.bf16.mxu0 %v2691
  %2847 = vmatpush1.bf16.msra.mxu0 %v2690
  %2848 = vmatprep.subr.bf16.mxu0 %v2693
  %2849 = vmatpush1.bf16.msra.mxu0 %v2692
  %2850 = vmatprep.subr.bf16.mxu0 %v2695
  %2851 = vmatpush1.bf16.msra.mxu0 %v2694
  %2852 = vmatprep.subr.bf16.mxu0 %v2697
  %2853 = vmatpush1.bf16.msra.mxu0 %v2696
  %2854 = vmatprep.subr.bf16.mxu0 %v2699
  %2855 = vmatpush1.bf16.msra.mxu0 %v2698
  %2856 = vmatprep.subr.bf16.mxu0 %v2701
  %2857 = vmatpush1.bf16.msra.mxu0 %v2700
  %2858 = vmatprep.subr.bf16.mxu0 %v2703
  %2859 = vmatpush1.bf16.msra.mxu0 %v2702
  %2860 = vmatprep.subr.bf16.mxu0 %v2705
  %2861 = vmatpush1.bf16.msra.mxu0 %v2704
  %2862 = vmatprep.subr.bf16.mxu0 %v2707
  %2863 = vmatpush1.bf16.msra.mxu0 %v2706
  %2864 = vmatprep.mubr.bf16.mxu0 %v1205
  %2865 = vmatmul.mubr.bf16.gmra.mrb[0].mxu0 %v1204
  %v2866 = vpop.f32.mrb[0].mxu0
  %v2867 = vadd.f32 0.0, %v2866
  %v2868 = vpop.f32.mrb[0].mxu0
  %v2869 = vadd.f32 0.0, %v2868
  %v2870 = vpop.f32.mrb[0].mxu0
  %v2871 = vpop.f32.mrb[0].mxu0
  %2872 = vdwg.mxu0
  %2873 = vmatprep.subr.bf16.mxu0 %v2709
  %2874 = vmatpush1.bf16.msra.mxu0 %v2708
  %2875 = vmatprep.subr.bf16.mxu0 %v2711
  %2876 = vmatpush1.bf16.msra.mxu0 %v2710
  %2877 = vmatprep.subr.bf16.mxu0 %v2713
  %2878 = vmatpush1.bf16.msra.mxu0 %v2712
  %2879 = vmatprep.subr.bf16.mxu0 %v2715
  %2880 = vmatpush1.bf16.msra.mxu0 %v2714
  %2881 = vmatprep.subr.bf16.mxu0 %v2717
  %2882 = vmatpush1.bf16.msra.mxu0 %v2716
  %2883 = vmatprep.subr.bf16.mxu0 %v2719
  %2884 = vmatpush1.bf16.msra.mxu0 %v2718
  %2885 = vmatprep.subr.bf16.mxu0 %v2721
  %2886 = vmatpush1.bf16.msra.mxu0 %v2720
  %2887 = vmatprep.subr.bf16.mxu0 %v2723
  %2888 = vmatpush1.bf16.msra.mxu0 %v2722
  %2889 = vmatprep.subr.bf16.mxu0 %v2725
  %2890 = vmatpush1.bf16.msra.mxu0 %v2724
  %2891 = vmatprep.subr.bf16.mxu0 %v2727
  %2892 = vmatpush1.bf16.msra.mxu0 %v2726
  %2893 = vmatprep.subr.bf16.mxu0 %v2729
  %2894 = vmatpush1.bf16.msra.mxu0 %v2728
  %2895 = vmatprep.subr.bf16.mxu0 %v2731
  %2896 = vmatpush1.bf16.msra.mxu0 %v2730
  %2897 = vmatprep.subr.bf16.mxu0 %v2733
  %2898 = vmatpush1.bf16.msra.mxu0 %v2732
  %2899 = vmatprep.subr.bf16.mxu0 %v2735
  %2900 = vmatpush1.bf16.msra.mxu0 %v2734
  %2901 = vmatprep.subr.bf16.mxu0 %v2737
  %2902 = vmatpush1.bf16.msra.mxu0 %v2736
  %2903 = vmatprep.subr.bf16.mxu0 %v2739
  %2904 = vmatpush1.bf16.msra.mxu0 %v2738
  %2905 = vmatprep.mubr.bf16.mxu0 %v1207
  %2906 = vmatmul.mubr.bf16.gmra.mrb[0].mxu0 %v1206
  %v2907 = vpop.f32.mrb[0].mxu0
  %v2908 = vadd.f32 %v2867, %v2907
  %v2909 = vpop.f32.mrb[0].mxu0
  %v2910 = vadd.f32 %v2869, %v2909
  %v2911 = vpop.f32.mrb[0].mxu0
  %v2912 = vpop.f32.mrb[0].mxu0
  %2913 = vdwg.mxu0
  %2914 = vmatprep.subr.bf16.mxu0 %v2741
  %2915 = vmatpush1.bf16.msra.mxu0 %v2740
  %2916 = vmatprep.subr.bf16.mxu0 %v2743
  %2917 = vmatpush1.bf16.msra.mxu0 %v2742
  %2918 = vmatprep.subr.bf16.mxu0 %v2745
  %2919 = vmatpush1.bf16.msra.mxu0 %v2744
  %2920 = vmatprep.subr.bf16.mxu0 %v2747
  %2921 = vmatpush1.bf16.msra.mxu0 %v2746
  %2922 = vmatprep.subr.bf16.mxu0 %v2749
  %2923 = vmatpush1.bf16.msra.mxu0 %v2748
  %2924 = vmatprep.subr.bf16.mxu0 %v2830
  %2925 = vmatpush1.bf16.msra.mxu0 %v2827
  %2926 = vmatprep.subr.bf16.mxu0 0
  %2927 = vmatpush1.bf16.msra.mxu0 0
  %2928 = vmatprep.subr.bf16.mxu0 0
  %2929 = vmatpush1.bf16.msra.mxu0 0
  %2930 = vmatprep.subr.bf16.mxu0 0
  %2931 = vmatpush1.bf16.msra.mxu0 0
  %2932 = vmatprep.subr.bf16.mxu0 0
  %2933 = vmatpush1.bf16.msra.mxu0 0
  %2934 = vmatprep.subr.bf16.mxu0 0
  %2935 = vmatpush1.bf16.msra.mxu0 0
  %2936 = vmatprep.subr.bf16.mxu0 0
  %2937 = vmatpush1.bf16.msra.mxu0 0
  %2938 = vmatprep.subr.bf16.mxu0 0
  %2939 = vmatpush1.bf16.msra.mxu0 0
  %2940 = vmatprep.subr.bf16.mxu0 0
  %2941 = vmatpush1.bf16.msra.mxu0 0
  %2942 = vmatprep.subr.bf16.mxu0 0
  %2943 = vmatpush1.bf16.msra.mxu0 0
  %2944 = vmatprep.subr.bf16.mxu0 0
  %2945 = vmatpush1.bf16.msra.mxu0 0
  %2946 = vmatprep.mubr.bf16.mxu0 0
  %2947 = vmatmul.mubr.bf16.gmra.mrb[0].mxu0 %v1661
  %v2948 = vpop.f32.mrb[0].mxu0
  %v2949 = vadd.f32 %v2908, %v2948
  %v2950 = vpop.f32.mrb[0].mxu0
  %v2951 = vadd.f32 %v2910, %v2950
  %v2952 = vpop.f32.mrb[0].mxu0
  %v2953 = vpop.f32.mrb[0].mxu0
  %2954 = vdwg.mxu0
  %v2955 = vmax.f32 %v2373, %v2949
  %v2956 = vmax.f32 %v2374, %v2951
  %s2957 = scalar_lea.vmem %s3, 1800
  %v2958 = vld [vmem:[%s2957] sm:$0xff]
  %v2959 = vld [vmem:[%s2957 + $0x8] sm:$0xff]
  %v2960 = vld [vmem:[%s2957 + $0x10] sm:$0xff]
  %v2961 = vld [vmem:[%s2957 + $0x18] sm:$0xff]
  %v2962 = vld [vmem:[%s2957 + $0x20] sm:$0xff]
  %v2963 = vld [vmem:[%s2957 + $0x28] sm:$0xff]
  %v2964 = vld [vmem:[%s2957 + $0x30] sm:$0xff]
  %v2965 = vld [vmem:[%s2957 + $0x38] sm:$0xff]
  %v2966 = vld [vmem:[%s2957 + $0x40] sm:$0xff]
  %v2967 = vld [vmem:[%s2957 + $0x48] sm:$0xff]
  %v2968 = vld [vmem:[%s2957 + $0x50] sm:$0xff]
  %v2969 = vld [vmem:[%s2957 + $0x58] sm:$0xff]
  %v2970 = vld [vmem:[%s2957 + $0x60] sm:$0xff]
  %v2971 = vld [vmem:[%s2957 + $0x68] sm:$0xff]
  %v2972 = vld [vmem:[%s2957 + $0x70] sm:$0xff]
  %v2973 = vld [vmem:[%s2957 + $0x78] sm:$0xff]
  %v2974 = vld [vmem:[%s2957 + $0x80] sm:$0xff]
  %v2975 = vld [vmem:[%s2957 + $0x88] sm:$0xff]
  %v2976 = vld [vmem:[%s2957 + $0x90] sm:$0xff]
  %v2977 = vld [vmem:[%s2957 + $0x98] sm:$0xff]
  %v2978 = vld [vmem:[%s2957 + $0xa0] sm:$0xff]
  %v2979 = vld [vmem:[%s2957 + $0xa8] sm:$0xff]
  %v2980 = vld [vmem:[%s2957 + $0xb0] sm:$0xff]
  %v2981 = vld [vmem:[%s2957 + $0xb8] sm:$0xff]
  %v2982 = vld [vmem:[%s2957 + $0xc0] sm:$0xff]
  %v2983 = vld [vmem:[%s2957 + $0xc8] sm:$0xff]
  %v2984 = vld [vmem:[%s2957 + $0xd0] sm:$0xff]
  %v2985 = vld [vmem:[%s2957 + $0xd8] sm:$0xff]
  %v2986 = vld [vmem:[%s2957 + $0xe0] sm:$0xff]
  %v2987 = vld [vmem:[%s2957 + $0xe8] sm:$0xff]
  %v2988 = vld [vmem:[%s2957 + $0xf0] sm:$0xff]
  %v2989 = vld [vmem:[%s2957 + $0xf8] sm:$0xff]
  %v2990 = vld [vmem:[%s2957 + $0x100] sm:$0xff]
  %v2991 = vld [vmem:[%s2957 + $0x108] sm:$0xff]
  %v2992 = vld [vmem:[%s2957 + $0x110] sm:$0xff]
  %v2993 = vld [vmem:[%s2957 + $0x118] sm:$0xff]
  %v2994 = vld [vmem:[%s2957 + $0x120] sm:$0xff]
  %v2995 = vld [vmem:[%s2957 + $0x128] sm:$0xff]
  %v2996 = vld [vmem:[%s2957 + $0x130] sm:$0xff]
  %v2997 = vld [vmem:[%s2957 + $0x138] sm:$0xff]
  %v2998 = vld [vmem:[%s2957 + $0x140] sm:$0xff]
  %v2999 = vld [vmem:[%s2957 + $0x148] sm:$0xff]
  %v3000 = vld [vmem:[%s2957 + $0x150] sm:$0xff]
  %v3001 = vld [vmem:[%s2957 + $0x158] sm:$0xff]
  %v3002 = vld [vmem:[%s2957 + $0x160] sm:$0xff]
  %v3003 = vld [vmem:[%s2957 + $0x168] sm:$0xff]
  %v3004 = vld [vmem:[%s2957 + $0x170] sm:$0xff]
  %v3005 = vld [vmem:[%s2957 + $0x178] sm:$0xff]
  %v3006 = vld [vmem:[%s2957 + $0x180] sm:$0xff]
  %v3007 = vld [vmem:[%s2957 + $0x188] sm:$0xff]
  %v3008 = vld [vmem:[%s2957 + $0x190] sm:$0xff]
  %v3009 = vld [vmem:[%s2957 + $0x198] sm:$0xff]
  %v3010 = vld [vmem:[%s2957 + $0x1a0] sm:$0xff]
  %v3011 = vld [vmem:[%s2957 + $0x1a8] sm:$0xff]
  %v3012 = vld [vmem:[%s2957 + $0x1b0] sm:$0xff]
  %v3013 = vld [vmem:[%s2957 + $0x1b8] sm:$0xff]
  %v3014 = vld [vmem:[%s2957 + $0x1c0] sm:$0xff]
  %v3015 = vld [vmem:[%s2957 + $0x1c8] sm:$0xff]
  %v3016 = vld [vmem:[%s2957 + $0x1d0] sm:$0xff]
  %v3017 = vld [vmem:[%s2957 + $0x1d8] sm:$0xff]
  %v3018 = vld [vmem:[%s2957 + $0x1e0] sm:$0xff]
  %v3019 = vld [vmem:[%s2957 + $0x1e8] sm:$0xff]
  %v3020 = vld [vmem:[%s2957 + $0x1f0] sm:$0xff]
  %v3021 = vld [vmem:[%s2957 + $0x1f8] sm:$0xff]
  %v3022 = vld [vmem:[%s2957 + $0x200] sm:$0xff]
  %v3023 = vld [vmem:[%s2957 + $0x208] sm:$0xff]
  %v3024 = vld [vmem:[%s2957 + $0x210] sm:$0xff]
  %v3025 = vld [vmem:[%s2957 + $0x218] sm:$0xff]
  %v3026 = vld [vmem:[%s2957 + $0x220] sm:$0xff]
  %v3027 = vld [vmem:[%s2957 + $0x228] sm:$0xff]
  %v3028 = vld [vmem:[%s2957 + $0x230] sm:$0xff]
  %v3029 = vld [vmem:[%s2957 + $0x238] sm:$0xff]
  %v3030 = vld [vmem:[%s2957 + $0x240] sm:$0xff]
  %v3031 = vld [vmem:[%s2957 + $0x248] sm:$0xff]
  %v3032 = vld [vmem:[%s2957 + $0x250] sm:$0xff]
  %v3108 = vunpack.c.l.b16 %v2958
  %v3109 = vunpack.c.h.b16 %v2958
  %v3110 = vunpack.c.l.b16 %v2959
  %v3111 = vunpack.c.h.b16 %v2959
  %v3112 = vunpack.c.l.b16 %v2960
  %v3113 = vunpack.c.h.b16 %v2960
  %v3114 = vunpack.c.l.b16 %v2961
  %v3115 = vunpack.c.h.b16 %v2961
  %v3116 = vunpack.c.l.b16 %v2962
  %v3117 = vunpack.c.h.b16 %v2962
  %v3118 = vunpack.c.l.b16 %v2963
  %v3119 = vunpack.c.h.b16 %v2963
  %v3120 = vunpack.c.l.b16 %v2964
  %v3121 = vunpack.c.h.b16 %v2964
  %v3122 = vunpack.c.l.b16 %v2965
  %v3123 = vunpack.c.h.b16 %v2965
  %v3124 = vunpack.c.l.b16 %v2966
  %v3125 = vunpack.c.h.b16 %v2966
  %v3126 = vunpack.c.l.b16 %v2967
  %v3127 = vunpack.c.h.b16 %v2967
  %v3128 = vunpack.c.l.b16 %v2968
  %v3129 = vunpack.c.h.b16 %v2968
  %v3130 = vunpack.c.l.b16 %v2969
  %v3131 = vunpack.c.h.b16 %v2969
  %v3132 = vunpack.c.l.b16 %v2970
  %v3133 = vunpack.c.h.b16 %v2970
  %v3134 = vunpack.c.l.b16 %v2971
  %v3135 = vunpack.c.h.b16 %v2971
  %v3136 = vunpack.c.l.b16 %v2972
  %v3137 = vunpack.c.h.b16 %v2972
  %v3138 = vunpack.c.l.b16 %v2973
  %v3139 = vunpack.c.h.b16 %v2973
  %v3140 = vunpack.c.l.b16 %v2974
  %v3141 = vunpack.c.h.b16 %v2974
  %v3142 = vunpack.c.l.b16 %v2975
  %v3143 = vunpack.c.h.b16 %v2975
  %v3144 = vunpack.c.l.b16 %v2976
  %v3145 = vunpack.c.h.b16 %v2976
  %v3146 = vunpack.c.l.b16 %v2977
  %v3147 = vunpack.c.h.b16 %v2977
  %v3148 = vunpack.c.l.b16 %v2978
  %v3149 = vunpack.c.h.b16 %v2978
  %v3150 = vunpack.c.l.b16 %v2979
  %v3151 = vunpack.c.h.b16 %v2979
  %v3152 = vunpack.c.l.b16 %v2980
  %v3153 = vunpack.c.h.b16 %v2980
  %v3154 = vunpack.c.l.b16 %v2981
  %v3155 = vunpack.c.h.b16 %v2981
  %v3156 = vunpack.c.l.b16 %v2982
  %v3157 = vunpack.c.h.b16 %v2982
  %v3158 = vunpack.c.l.b16 %v2983
  %v3159 = vunpack.c.h.b16 %v2983
  %v3160 = vunpack.c.l.b16 %v2984
  %v3161 = vunpack.c.h.b16 %v2984
  %v3162 = vunpack.c.l.b16 %v2985
  %v3163 = vunpack.c.h.b16 %v2985
  %v3164 = vunpack.c.l.b16 %v2986
  %v3165 = vunpack.c.h.b16 %v2986
  %v3166 = vunpack.c.l.b16 %v2987
  %v3167 = vunpack.c.h.b16 %v2987
  %v3168 = vunpack.c.l.b16 %v2988
  %v3169 = vunpack.c.h.b16 %v2988
  %v3170 = vunpack.c.l.b16 %v2989
  %v3171 = vunpack.c.h.b16 %v2989
  %v3172 = vunpack.c.l.b16 %v2990
  %v3173 = vunpack.c.h.b16 %v2990
  %v3174 = vunpack.c.l.b16 %v2991
  %v3175 = vunpack.c.h.b16 %v2991
  %v3176 = vunpack.c.l.b16 %v2992
  %v3177 = vunpack.c.h.b16 %v2992
  %v3178 = vunpack.c.l.b16 %v2993
  %v3179 = vunpack.c.h.b16 %v2993
  %v3180 = vunpack.c.l.b16 %v2994
  %v3181 = vunpack.c.h.b16 %v2994
  %v3182 = vunpack.c.l.b16 %v2995
  %v3183 = vunpack.c.h.b16 %v2995
  %v3184 = vunpack.c.l.b16 %v2996
  %v3185 = vunpack.c.h.b16 %v2996
  %v3186 = vunpack.c.l.b16 %v2997
  %v3187 = vunpack.c.h.b16 %v2997
  %v3188 = vunpack.c.l.b16 %v2998
  %v3189 = vunpack.c.h.b16 %v2998
  %v3190 = vunpack.c.l.b16 %v2999
  %v3191 = vunpack.c.h.b16 %v2999
  %v3192 = vunpack.c.l.b16 %v3000
  %v3193 = vunpack.c.h.b16 %v3000
  %v3194 = vunpack.c.l.b16 %v3001
  %v3195 = vunpack.c.h.b16 %v3001
  %v3196 = vunpack.c.l.b16 %v3002
  %v3197 = vunpack.c.h.b16 %v3002
  %v3198 = vunpack.c.l.b16 %v3003
  %v3199 = vunpack.c.h.b16 %v3003
  %v3200 = vunpack.c.l.b16 %v3004
  %v3201 = vunpack.c.h.b16 %v3004
  %v3202 = vunpack.c.l.b16 %v3005
  %v3203 = vunpack.c.h.b16 %v3005
  %v3204 = vunpack.c.l.b16 %v3006
  %v3205 = vunpack.c.h.b16 %v3006
  %v3206 = vunpack.c.l.b16 %v3007
  %v3207 = vunpack.c.h.b16 %v3007
  %v3208 = vunpack.c.l.b16 %v3008
  %v3209 = vunpack.c.h.b16 %v3008
  %v3210 = vunpack.c.l.b16 %v3009
  %v3211 = vunpack.c.h.b16 %v3009
  %v3212 = vunpack.c.l.b16 %v3010
  %v3213 = vunpack.c.h.b16 %v3010
  %v3214 = vunpack.c.l.b16 %v3011
  %v3215 = vunpack.c.h.b16 %v3011
  %v3216 = vunpack.c.l.b16 %v3012
  %v3217 = vunpack.c.h.b16 %v3012
  %v3218 = vunpack.c.l.b16 %v3013
  %v3219 = vunpack.c.h.b16 %v3013
  %v3220 = vunpack.c.l.b16 %v3014
  %v3221 = vunpack.c.h.b16 %v3014
  %v3222 = vunpack.c.l.b16 %v3015
  %v3223 = vunpack.c.h.b16 %v3015
  %v3224 = vunpack.c.l.b16 %v3016
  %v3225 = vunpack.c.h.b16 %v3016
  %v3226 = vunpack.c.l.b16 %v3017
  %v3227 = vunpack.c.h.b16 %v3017
  %v3228 = vunpack.c.l.b16 %v3018
  %v3229 = vunpack.c.h.b16 %v3018
  %v3230 = vunpack.c.l.b16 %v3019
  %v3231 = vunpack.c.h.b16 %v3019
  %v3232 = vunpack.c.l.b16 %v3020
  %v3233 = vunpack.c.h.b16 %v3020
  %v3234 = vunpack.c.l.b16 %v3021
  %v3235 = vunpack.c.h.b16 %v3021
  %v3236 = vunpack.c.l.b16 %v3022
  %v3237 = vunpack.c.h.b16 %v3022
  %v3238 = vunpack.c.l.b16 %v3023
  %v3239 = vunpack.c.h.b16 %v3023
  %v3240 = vunpack.c.l.b16 %v3024
  %v3241 = vunpack.c.h.b16 %v3024
  %v3242 = vunpack.c.l.b16 %v3025
  %v3243 = vunpack.c.h.b16 %v3025
  %v3244 = vunpack.c.l.b16 %v3026
  %v3245 = vunpack.c.h.b16 %v3026
  %v3246 = vunpack.c.l.b16 %v3027
  %v3247 = vunpack.c.h.b16 %v3027
  %v3248 = vunpack.c.l.b16 %v3028
  %v3249 = vunpack.c.h.b16 %v3028
  %v3250 = vunpack.c.l.b16 %v3029
  %v3251 = vunpack.c.h.b16 %v3029
  %v3252 = vunpack.c.l.b16 %v3030
  %v3253 = vunpack.c.h.b16 %v3030
  %v3254 = vunpack.c.l.b16 %v3031
  %v3255 = vunpack.c.h.b16 %v3031
  %v3256 = vunpack.c.l.b16 %v3032
  %v3257 = vunpack.c.h.b16 %v3032
  %v3258 = vpack.c.b16 %v3110, %v3108
  %v3259 = vpack.c.b16 %v3111, %v3109
  %v3260 = vpack.c.b16 %v3114, %v3112
  %v3261 = vpack.c.b16 %v3115, %v3113
  %v3262 = vpack.c.b16 %v3118, %v3116
  %v3263 = vpack.c.b16 %v3119, %v3117
  %v3264 = vpack.c.b16 %v3122, %v3120
  %v3265 = vpack.c.b16 %v3123, %v3121
  %v3266 = vpack.c.b16 %v3126, %v3124
  %v3267 = vpack.c.b16 %v3127, %v3125
  %v3268 = vpack.c.b16 %v3130, %v3128
  %v3269 = vpack.c.b16 %v3131, %v3129
  %v3270 = vpack.c.b16 %v3134, %v3132
  %v3271 = vpack.c.b16 %v3135, %v3133
  %v3272 = vpack.c.b16 %v3138, %v3136
  %v3273 = vpack.c.b16 %v3139, %v3137
  %v3274 = vpack.c.b16 %v3142, %v3140
  %v3275 = vpack.c.b16 %v3143, %v3141
  %v3276 = vpack.c.b16 %v3146, %v3144
  %v3277 = vpack.c.b16 %v3147, %v3145
  %v3278 = vpack.c.b16 %v3150, %v3148
  %v3279 = vpack.c.b16 %v3151, %v3149
  %v3280 = vpack.c.b16 %v3154, %v3152
  %v3281 = vpack.c.b16 %v3155, %v3153
  %v3282 = vpack.c.b16 %v3158, %v3156
  %v3283 = vpack.c.b16 %v3159, %v3157
  %v3284 = vpack.c.b16 %v3162, %v3160
  %v3285 = vpack.c.b16 %v3163, %v3161
  %v3286 = vpack.c.b16 %v3166, %v3164
  %v3287 = vpack.c.b16 %v3167, %v3165
  %v3288 = vpack.c.b16 %v3170, %v3168
  %v3289 = vpack.c.b16 %v3171, %v3169
  %v3290 = vpack.c.b16 %v3174, %v3172
  %v3291 = vpack.c.b16 %v3175, %v3173
  %v3292 = vpack.c.b16 %v3178, %v3176
  %v3293 = vpack.c.b16 %v3179, %v3177
  %v3294 = vpack.c.b16 %v3182, %v3180
  %v3295 = vpack.c.b16 %v3183, %v3181
  %v3296 = vpack.c.b16 %v3186, %v3184
  %v3297 = vpack.c.b16 %v3187, %v3185
  %v3298 = vpack.c.b16 %v3190, %v3188
  %v3299 = vpack.c.b16 %v3191, %v3189
  %v3300 = vpack.c.b16 %v3194, %v3192
  %v3301 = vpack.c.b16 %v3195, %v3193
  %v3302 = vpack.c.b16 %v3198, %v3196
  %v3303 = vpack.c.b16 %v3199, %v3197
  %v3304 = vpack.c.b16 %v3202, %v3200
  %v3305 = vpack.c.b16 %v3203, %v3201
  %v3306 = vpack.c.b16 %v3206, %v3204
  %v3307 = vpack.c.b16 %v3207, %v3205
  %v3308 = vpack.c.b16 %v3210, %v3208
  %v3309 = vpack.c.b16 %v3211, %v3209
  %v3310 = vpack.c.b16 %v3214, %v3212
  %v3311 = vpack.c.b16 %v3215, %v3213
  %v3312 = vpack.c.b16 %v3218, %v3216
  %v3313 = vpack.c.b16 %v3219, %v3217
  %v3314 = vpack.c.b16 %v3222, %v3220
  %v3315 = vpack.c.b16 %v3223, %v3221
  %v3316 = vpack.c.b16 %v3226, %v3224
  %v3317 = vpack.c.b16 %v3227, %v3225
  %v3318 = vpack.c.b16 %v3230, %v3228
  %v3319 = vpack.c.b16 %v3231, %v3229
  %v3320 = vpack.c.b16 %v3234, %v3232
  %v3321 = vpack.c.b16 %v3235, %v3233
  %v3322 = vpack.c.b16 %v3238, %v3236
  %v3323 = vpack.c.b16 %v3239, %v3237
  %v3324 = vpack.c.b16 %v3242, %v3240
  %v3325 = vpack.c.b16 %v3243, %v3241
  %v3326 = vpack.c.b16 %v3246, %v3244
  %v3327 = vpack.c.b16 %v3247, %v3245
  %v3328 = vpack.c.b16 %v3250, %v3248
  %v3329 = vpack.c.b16 %v3251, %v3249
  %v3330 = vpack.c.b16 %v3254, %v3252
  %v3331 = vpack.c.b16 %v3255, %v3253
  %v3332 = vpack.c.b16 %v3256, %v3256
  %v3333 = vpack.c.b16 %v3257, %v3257
  %v3409 = vsel %vm1663, %v3332, 0
  %v3412 = vsel %vm1663, %v3333, 0
  %3414 = vmatprep.subr.bf16.mxu0 %v3259
  %3415 = vmatpush1.bf16.msra.mxu0 %v3258
  %3416 = vmatprep.subr.bf16.mxu0 %v3261
  %3417 = vmatpush1.bf16.msra.mxu0 %v3260
  %3418 = vmatprep.subr.bf16.mxu0 %v3263
  %3419 = vmatpush1.bf16.msra.mxu0 %v3262
  %3420 = vmatprep.subr.bf16.mxu0 %v3265
  %3421 = vmatpush1.bf16.msra.mxu0 %v3264
  %3422 = vmatprep.subr.bf16.mxu0 %v3267
  %3423 = vmatpush1.bf16.msra.mxu0 %v3266
  %3424 = vmatprep.subr.bf16.mxu0 %v3269
  %3425 = vmatpush1.bf16.msra.mxu0 %v3268
  %3426 = vmatprep.subr.bf16.mxu0 %v3271
  %3427 = vmatpush1.bf16.msra.mxu0 %v3270
  %3428 = vmatprep.subr.bf16.mxu0 %v3273
  %3429 = vmatpush1.bf16.msra.mxu0 %v3272
  %3430 = vmatprep.subr.bf16.mxu0 %v3275
  %3431 = vmatpush1.bf16.msra.mxu0 %v3274
  %3432 = vmatprep.subr.bf16.mxu0 %v3277
  %3433 = vmatpush1.bf16.msra.mxu0 %v3276
  %3434 = vmatprep.subr.bf16.mxu0 %v3279
  %3435 = vmatpush1.bf16.msra.mxu0 %v3278
  %3436 = vmatprep.subr.bf16.mxu0 %v3281
  %3437 = vmatpush1.bf16.msra.mxu0 %v3280
  %3438 = vmatprep.subr.bf16.mxu0 %v3283
  %3439 = vmatpush1.bf16.msra.mxu0 %v3282
  %3440 = vmatprep.subr.bf16.mxu0 %v3285
  %3441 = vmatpush1.bf16.msra.mxu0 %v3284
  %3442 = vmatprep.subr.bf16.mxu0 %v3287
  %3443 = vmatpush1.bf16.msra.mxu0 %v3286
  %3444 = vmatprep.subr.bf16.mxu0 %v3289
  %3445 = vmatpush1.bf16.msra.mxu0 %v3288
  %3446 = vmatprep.mubr.bf16.mxu0 %v1205
  %3447 = vmatmul.mubr.bf16.gmra.mrb[0].mxu0 %v1204
  %v3448 = vpop.f32.mrb[0].mxu0
  %v3449 = vadd.f32 0.0, %v3448
  %v3450 = vpop.f32.mrb[0].mxu0
  %v3451 = vadd.f32 0.0, %v3450
  %v3452 = vpop.f32.mrb[0].mxu0
  %v3453 = vpop.f32.mrb[0].mxu0
  %3454 = vdwg.mxu0
  %3455 = vmatprep.subr.bf16.mxu0 %v3291
  %3456 = vmatpush1.bf16.msra.mxu0 %v3290
  %3457 = vmatprep.subr.bf16.mxu0 %v3293
  %3458 = vmatpush1.bf16.msra.mxu0 %v3292
  %3459 = vmatprep.subr.bf16.mxu0 %v3295
  %3460 = vmatpush1.bf16.msra.mxu0 %v3294
  %3461 = vmatprep.subr.bf16.mxu0 %v3297
  %3462 = vmatpush1.bf16.msra.mxu0 %v3296
  %3463 = vmatprep.subr.bf16.mxu0 %v3299
  %3464 = vmatpush1.bf16.msra.mxu0 %v3298
  %3465 = vmatprep.subr.bf16.mxu0 %v3301
  %3466 = vmatpush1.bf16.msra.mxu0 %v3300
  %3467 = vmatprep.subr.bf16.mxu0 %v3303
  %3468 = vmatpush1.bf16.msra.mxu0 %v3302
  %3469 = vmatprep.subr.bf16.mxu0 %v3305
  %3470 = vmatpush1.bf16.msra.mxu0 %v3304
  %3471 = vmatprep.subr.bf16.mxu0 %v3307
  %3472 = vmatpush1.bf16.msra.mxu0 %v3306
  %3473 = vmatprep.subr.bf16.mxu0 %v3309
  %3474 = vmatpush1.bf16.msra.mxu0 %v3308
  %3475 = vmatprep.subr.bf16.mxu0 %v3311
  %3476 = vmatpush1.bf16.msra.mxu0 %v3310
  %3477 = vmatprep.subr.bf16.mxu0 %v3313
  %3478 = vmatpush1.bf16.msra.mxu0 %v3312
  %3479 = vmatprep.subr.bf16.mxu0 %v3315
  %3480 = vmatpush1.bf16.msra.mxu0 %v3314
  %3481 = vmatprep.subr.bf16.mxu0 %v3317
  %3482 = vmatpush1.bf16.msra.mxu0 %v3316
  %3483 = vmatprep.subr.bf16.mxu0 %v3319
  %3484 = vmatpush1.bf16.msra.mxu0 %v3318
  %3485 = vmatprep.subr.bf16.mxu0 %v3321
  %3486 = vmatpush1.bf16.msra.mxu0 %v3320
  %3487 = vmatprep.mubr.bf16.mxu0 %v1207
  %3488 = vmatmul.mubr.bf16.gmra.mrb[0].mxu0 %v1206
  %v3489 = vpop.f32.mrb[0].mxu0
  %v3490 = vadd.f32 %v3449, %v3489
  %v3491 = vpop.f32.mrb[0].mxu0
  %v3492 = vadd.f32 %v3451, %v3491
  %v3493 = vpop.f32.mrb[0].mxu0
  %v3494 = vpop.f32.mrb[0].mxu0
  %3495 = vdwg.mxu0
  %3496 = vmatprep.subr.bf16.mxu0 %v3323
  %3497 = vmatpush1.bf16.msra.mxu0 %v3322
  %3498 = vmatprep.subr.bf16.mxu0 %v3325
  %3499 = vmatpush1.bf16.msra.mxu0 %v3324
  %3500 = vmatprep.subr.bf16.mxu0 %v3327
  %3501 = vmatpush1.bf16.msra.mxu0 %v3326
  %3502 = vmatprep.subr.bf16.mxu0 %v3329
  %3503 = vmatpush1.bf16.msra.mxu0 %v3328
  %3504 = vmatprep.subr.bf16.mxu0 %v3331
  %3505 = vmatpush1.bf16.msra.mxu0 %v3330
  %3506 = vmatprep.subr.bf16.mxu0 %v3412
  %3507 = vmatpush1.bf16.msra.mxu0 %v3409
  %3508 = vmatprep.subr.bf16.mxu0 0
  %3509 = vmatpush1.bf16.msra.mxu0 0
  %3510 = vmatprep.subr.bf16.mxu0 0
  %3511 = vmatpush1.bf16.msra.mxu0 0
  %3512 = vmatprep.subr.bf16.mxu0 0
  %3513 = vmatpush1.bf16.msra.mxu0 0
  %3514 = vmatprep.subr.bf16.mxu0 0
  %3515 = vmatpush1.bf16.msra.mxu0 0
  %3516 = vmatprep.subr.bf16.mxu0 0
  %3517 = vmatpush1.bf16.msra.mxu0 0
  %3518 = vmatprep.subr.bf16.mxu0 0
  %3519 = vmatpush1.bf16.msra.mxu0 0
  %3520 = vmatprep.subr.bf16.mxu0 0
  %3521 = vmatpush1.bf16.msra.mxu0 0
  %3522 = vmatprep.subr.bf16.mxu0 0
  %3523 = vmatpush1.bf16.msra.mxu0 0
  %3524 = vmatprep.subr.bf16.mxu0 0
  %3525 = vmatpush1.bf16.msra.mxu0 0
  %3526 = vmatprep.subr.bf16.mxu0 0
  %3527 = vmatpush1.bf16.msra.mxu0 0
  %3528 = vmatprep.mubr.bf16.mxu0 0
  %3529 = vmatmul.mubr.bf16.gmra.mrb[0].mxu0 %v1661
  %v3530 = vpop.f32.mrb[0].mxu0
  %v3531 = vadd.f32 %v3490, %v3530
  %v3532 = vpop.f32.mrb[0].mxu0
  %v3533 = vadd.f32 %v3492, %v3532
  %v3534 = vpop.f32.mrb[0].mxu0
  %v3535 = vpop.f32.mrb[0].mxu0
  %3536 = vdwg.mxu0
  %v3537 = vmax.f32 %v2955, %v3531
  %v3538 = vmax.f32 %v2956, %v3533
  %v3539 = vpack.c.bf16 %v3537, %v3537
  %v3540 = vpack.c.bf16 %v3538, %v3538
  %v3541 = vld [vmem:[%s4] sm:$0xff]
  %v3542 = vld [vmem:[%s4 + $0x8] sm:$0xff]
  %v3543 = vld [vmem:[%s4 + $0x10] sm:$0xff]
  %v3544 = vld [vmem:[%s4 + $0x18] sm:$0xff]
  %v3545 = vld [vmem:[%s4 + $0x20] sm:$0xff]
  %v3546 = vld [vmem:[%s4 + $0x28] sm:$0xff]
  %v3547 = vld [vmem:[%s4 + $0x30] sm:$0xff]
  %v3548 = vld [vmem:[%s4 + $0x38] sm:$0xff]
  %v3549 = vld [vmem:[%s4 + $0x40] sm:$0xff]
  %v3550 = vld [vmem:[%s4 + $0x48] sm:$0xff]
  %v3551 = vld [vmem:[%s4 + $0x50] sm:$0xff]
  %v3552 = vld [vmem:[%s4 + $0x58] sm:$0xff]
  %v3553 = vld [vmem:[%s4 + $0x60] sm:$0xff]
  %v3554 = vld [vmem:[%s4 + $0x68] sm:$0xff]
  %v3555 = vld [vmem:[%s4 + $0x70] sm:$0xff]
  %v3556 = vld [vmem:[%s4 + $0x78] sm:$0xff]
  %v3557 = vld [vmem:[%s4 + $0x80] sm:$0xff]
  %v3558 = vld [vmem:[%s4 + $0x88] sm:$0xff]
  %v3559 = vld [vmem:[%s4 + $0x90] sm:$0x77]
  %v3560 = vld [vmem:[%s5] sm:$0x3]
  %v3562 = vlaneseq
  %v3563 = vshrl.u32 %v3562, 7
  %v3564 = vsub.s32 0, %v3563
  %v3565 = vrot.slane %v3560, %v3564
  %v3566 = vlaneseq
  %v3567 = vshrl.u32 %v3566, 7
  %v3568 = vsub.s32 1, %v3567
  %v3569 = vrot.slane %v3560, %v3568
  %v3591 = vunpack.c.l.b16 %v3541
  %v3592 = vunpack.c.h.b16 %v3541
  %v3593 = vunpack.c.l.b16 %v3542
  %v3594 = vunpack.c.h.b16 %v3542
  %v3595 = vunpack.c.l.b16 %v3543
  %v3596 = vunpack.c.h.b16 %v3543
  %v3597 = vunpack.c.l.b16 %v3544
  %v3598 = vunpack.c.h.b16 %v3544
  %v3599 = vunpack.c.l.b16 %v3545
  %v3600 = vunpack.c.h.b16 %v3545
  %v3601 = vunpack.c.l.b16 %v3546
  %v3602 = vunpack.c.h.b16 %v3546
  %v3603 = vunpack.c.l.b16 %v3547
  %v3604 = vunpack.c.h.b16 %v3547
  %v3605 = vunpack.c.l.b16 %v3548
  %v3606 = vunpack.c.h.b16 %v3548
  %v3607 = vunpack.c.l.b16 %v3549
  %v3608 = vunpack.c.h.b16 %v3549
  %v3609 = vunpack.c.l.b16 %v3550
  %v3610 = vunpack.c.h.b16 %v3550
  %v3611 = vunpack.c.l.b16 %v3551
  %v3612 = vunpack.c.h.b16 %v3551
  %v3613 = vunpack.c.l.b16 %v3552
  %v3614 = vunpack.c.h.b16 %v3552
  %v3615 = vunpack.c.l.b16 %v3553
  %v3616 = vunpack.c.h.b16 %v3553
  %v3617 = vunpack.c.l.b16 %v3554
  %v3618 = vunpack.c.h.b16 %v3554
  %v3619 = vunpack.c.l.b16 %v3555
  %v3620 = vunpack.c.h.b16 %v3555
  %v3621 = vunpack.c.l.b16 %v3556
  %v3622 = vunpack.c.h.b16 %v3556
  %v3623 = vunpack.c.l.b16 %v3557
  %v3624 = vunpack.c.h.b16 %v3557
  %v3625 = vunpack.c.l.b16 %v3558
  %v3626 = vunpack.c.h.b16 %v3558
  %v3627 = vunpack.c.l.b16 %v3559
  %v3628 = vunpack.c.h.b16 %v3559
  %v3629 = vpack.c.b16 %v3593, %v3591
  %v3630 = vpack.c.b16 %v3594, %v3592
  %v3631 = vpack.c.b16 %v3597, %v3595
  %v3632 = vpack.c.b16 %v3598, %v3596
  %v3633 = vpack.c.b16 %v3601, %v3599
  %v3634 = vpack.c.b16 %v3602, %v3600
  %v3635 = vpack.c.b16 %v3605, %v3603
  %v3636 = vpack.c.b16 %v3606, %v3604
  %v3637 = vpack.c.b16 %v3609, %v3607
  %v3638 = vpack.c.b16 %v3610, %v3608
  %v3639 = vpack.c.b16 %v3613, %v3611
  %v3640 = vpack.c.b16 %v3614, %v3612
  %v3641 = vpack.c.b16 %v3617, %v3615
  %v3642 = vpack.c.b16 %v3618, %v3616
  %v3643 = vpack.c.b16 %v3621, %v3619
  %v3644 = vpack.c.b16 %v3622, %v3620
  %v3645 = vpack.c.b16 %v3625, %v3623
  %v3646 = vpack.c.b16 %v3626, %v3624
  %v3647 = vpack.c.b16 %v3627, %v3627
  %v3648 = vpack.c.b16 %v3628, %v3628
  %vm3667 = vcmask 179200
  %v3669 = vsel %vm3667, %v3540, 0
  %vm3671 = vcmask 1042432
  %v3673 = vsel %vm3671, %v3647, 0
  %v3676 = vsel %vm3671, %v3648, 0
  %3678 = vmatprep.subr.bf16.mxu0 %v3630
  %3679 = vmatpush1.bf16.msra.mxu0 %v3629
  %3680 = vmatprep.subr.bf16.mxu0 %v3632
  %3681 = vmatpush1.bf16.msra.mxu0 %v3631
  %3682 = vmatprep.subr.bf16.mxu0 %v3634
  %3683 = vmatpush1.bf16.msra.mxu0 %v3633
  %3684 = vmatprep.subr.bf16.mxu0 %v3636
  %3685 = vmatpush1.bf16.msra.mxu0 %v3635
  %3686 = vmatprep.subr.bf16.mxu0 %v3638
  %3687 = vmatpush1.bf16.msra.mxu0 %v3637
  %3688 = vmatprep.subr.bf16.mxu0 %v3640
  %3689 = vmatpush1.bf16.msra.mxu0 %v3639
  %3690 = vmatprep.subr.bf16.mxu0 %v3642
  %3691 = vmatpush1.bf16.msra.mxu0 %v3641
  %3692 = vmatprep.subr.bf16.mxu0 %v3644
  %3693 = vmatpush1.bf16.msra.mxu0 %v3643
  %3694 = vmatprep.subr.bf16.mxu0 %v3646
  %3695 = vmatpush1.bf16.msra.mxu0 %v3645
  %3696 = vmatprep.subr.bf16.mxu0 %v3676
  %3697 = vmatpush1.bf16.msra.mxu0 %v3673
  %3698 = vmatprep.subr.bf16.mxu0 0
  %3699 = vmatpush1.bf16.msra.mxu0 0
  %3700 = vmatprep.subr.bf16.mxu0 0
  %3701 = vmatpush1.bf16.msra.mxu0 0
  %3702 = vmatprep.subr.bf16.mxu0 0
  %3703 = vmatpush1.bf16.msra.mxu0 0
  %3704 = vmatprep.subr.bf16.mxu0 0
  %3705 = vmatpush1.bf16.msra.mxu0 0
  %3706 = vmatprep.subr.bf16.mxu0 0
  %3707 = vmatpush1.bf16.msra.mxu0 0
  %3708 = vmatprep.subr.bf16.mxu0 0
  %3709 = vmatpush1.bf16.msra.mxu0 0
  %3710 = vmatprep.mubr.bf16.mxu0 %v3669
  %3711 = vmatmul.mubr.bf16.gmra.mrb[0].mxu0 %v3539
  %v3712 = vpop.f32.mrb[0].mxu0
  %v3713 = vadd.f32 %v3565, %v3712
  %v3714 = vpop.f32.mrb[0].mxu0
  %v3715 = vadd.f32 %v3569, %v3714
  %v3716 = vpop.f32.mrb[0].mxu0
  %v3717 = vpop.f32.mrb[0].mxu0
  %3718 = vdwg.mxu0
  %v3719 = vmax.f32 %v3713, 0.0
  %v3720 = vmax.f32 %v3715, 0.0
  %v3721 = vpack.c.bf16 %v3719, %v3719
  %v3722 = vpack.c.bf16 %v3720, %v3720
  %v3723 = vld [vmem:[%s6] sm:$0xf]
  %v3724 = vld [vmem:[%s6 + $0x4] sm:$0xf]
  %v3725 = vld [vmem:[%s6 + $0x8] sm:$0xf]
  %v3726 = vld [vmem:[%s6 + $0xc] sm:$0xf]
  %v3727 = vld [vmem:[%s6 + $0x10] sm:$0xf]
  %v3728 = vld [vmem:[%s6 + $0x14] sm:$0xf]
  %v3729 = vld [vmem:[%s6 + $0x18] sm:$0xf]
  %v3730 = vld [vmem:[%s6 + $0x1c] sm:$0xf]
  %v3731 = vld [vmem:[%s6 + $0x20] sm:$0xf]
  %v3732 = vld [vmem:[%s6 + $0x24] sm:$0xf]
  %v3733 = vld [vmem:[%s6 + $0x28] sm:$0xf]
  %v3734 = vld [vmem:[%s6 + $0x2c] sm:$0xf]
  %v3735 = vld [vmem:[%s6 + $0x30] sm:$0xf]
  %v3736 = vld [vmem:[%s6 + $0x34] sm:$0xf]
  %v3737 = vld [vmem:[%s6 + $0x38] sm:$0xf]
  %v3738 = vld [vmem:[%s6 + $0x3c] sm:$0xf]
  %v3739 = vld [vmem:[%s6 + $0x40] sm:$0xf]
  %v3740 = vld [vmem:[%s6 + $0x44] sm:$0xf]
  %v3759 = vunpack.c.l.b16 %v3723
  %v3760 = vunpack.c.l.b16 %v3724
  %v3761 = vunpack.c.l.b16 %v3725
  %v3762 = vunpack.c.l.b16 %v3726
  %v3763 = vunpack.c.l.b16 %v3727
  %v3764 = vunpack.c.l.b16 %v3728
  %v3765 = vunpack.c.l.b16 %v3729
  %v3766 = vunpack.c.l.b16 %v3730
  %v3767 = vunpack.c.l.b16 %v3731
  %v3768 = vunpack.c.l.b16 %v3732
  %v3769 = vunpack.c.l.b16 %v3733
  %v3770 = vunpack.c.l.b16 %v3734
  %v3771 = vunpack.c.l.b16 %v3735
  %v3772 = vunpack.c.l.b16 %v3736
  %v3773 = vunpack.c.l.b16 %v3737
  %v3774 = vunpack.c.l.b16 %v3738
  %v3775 = vunpack.c.l.b16 %v3739
  %v3776 = vunpack.c.l.b16 %v3740
  %v3777 = vpack.c.b16 %v3760, %v3759
  %v3778 = vpack.c.b16 %v3762, %v3761
  %v3779 = vpack.c.b16 %v3764, %v3763
  %v3780 = vpack.c.b16 %v3766, %v3765
  %v3781 = vpack.c.b16 %v3768, %v3767
  %v3782 = vpack.c.b16 %v3770, %v3769
  %v3783 = vpack.c.b16 %v3772, %v3771
  %v3784 = vpack.c.b16 %v3774, %v3773
  %v3785 = vpack.c.b16 %v3776, %v3775
  %vm3795 = vcmask 130048
  %v3797 = vsel %vm3795, %v3722, 0
  %3799 = vmatprep.subr.bf16.mxu0 0
  %3800 = vmatpush1.bf16.msra.mxu0 %v3777
  %3801 = vmatprep.subr.bf16.mxu0 0
  %3802 = vmatpush1.bf16.msra.mxu0 %v3778
  %3803 = vmatprep.subr.bf16.mxu0 0
  %3804 = vmatpush1.bf16.msra.mxu0 %v3779
  %3805 = vmatprep.subr.bf16.mxu0 0
  %3806 = vmatpush1.bf16.msra.mxu0 %v3780
  %3807 = vmatprep.subr.bf16.mxu0 0
  %3808 = vmatpush1.bf16.msra.mxu0 %v3781
  %3809 = vmatprep.subr.bf16.mxu0 0
  %3810 = vmatpush1.bf16.msra.mxu0 %v3782
  %3811 = vmatprep.subr.bf16.mxu0 0
  %3812 = vmatpush1.bf16.msra.mxu0 %v3783
  %3813 = vmatprep.subr.bf16.mxu0 0
  %3814 = vmatpush1.bf16.msra.mxu0 %v3784
  %3815 = vmatprep.subr.bf16.mxu0 0
  %3816 = vmatpush1.bf16.msra.mxu0 %v3785
  %3817 = vmatprep.subr.bf16.mxu0 0
  %3818 = vmatpush1.bf16.msra.mxu0 0
  %3819 = vmatprep.subr.bf16.mxu0 0
  %3820 = vmatpush1.bf16.msra.mxu0 0
  %3821 = vmatprep.subr.bf16.mxu0 0
  %3822 = vmatpush1.bf16.msra.mxu0 0
  %3823 = vmatprep.subr.bf16.mxu0 0
  %3824 = vmatpush1.bf16.msra.mxu0 0
  %3825 = vmatprep.subr.bf16.mxu0 0
  %3826 = vmatpush1.bf16.msra.mxu0 0
  %3827 = vmatprep.subr.bf16.mxu0 0
  %3828 = vmatpush1.bf16.msra.mxu0 0
  %3829 = vmatprep.subr.bf16.mxu0 0
  %3830 = vmatpush1.bf16.msra.mxu0 0
  %3831 = vmatprep.mubr.bf16.mxu0 %v3797
  %3832 = vmatmul.mubr.bf16.gmra.mrb[0].mxu0 %v3721
  %v3833 = vpop.f32.mrb[0].mxu0
  %v3834 = vadd.f32 0.0, %v3833
  %v3835 = vpop.f32.mrb[0].mxu0
  %v3836 = vpop.f32.mrb[0].mxu0
  %v3837 = vpop.f32.mrb[0].mxu0
  %3838 = vdwg.mxu0
  %s3839 = scalar_lea.vmem %s6, 72
  %v3840 = vld [vmem:[%s3839] sm:$0xf]
  %v3841 = vld [vmem:[%s3839 + $0x4] sm:$0xf]
  %v3842 = vld [vmem:[%s3839 + $0x8] sm:$0xf]
  %v3843 = vld [vmem:[%s3839 + $0xc] sm:$0xf]
  %v3844 = vld [vmem:[%s3839 + $0x10] sm:$0xf]
  %v3845 = vld [vmem:[%s3839 + $0x14] sm:$0xf]
  %v3846 = vld [vmem:[%s3839 + $0x18] sm:$0xf]
  %v3847 = vld [vmem:[%s3839 + $0x1c] sm:$0xf]
  %v3848 = vld [vmem:[%s3839 + $0x20] sm:$0xf]
  %v3849 = vld [vmem:[%s3839 + $0x24] sm:$0xf]
  %v3850 = vld [vmem:[%s3839 + $0x28] sm:$0xf]
  %v3851 = vld [vmem:[%s3839 + $0x2c] sm:$0xf]
  %v3852 = vld [vmem:[%s3839 + $0x30] sm:$0xf]
  %v3853 = vld [vmem:[%s3839 + $0x34] sm:$0xf]
  %v3854 = vld [vmem:[%s3839 + $0x38] sm:$0xf]
  %v3855 = vld [vmem:[%s3839 + $0x3c] sm:$0xf]
  %v3856 = vld [vmem:[%s3839 + $0x40] sm:$0xf]
  %v3857 = vld [vmem:[%s3839 + $0x44] sm:$0xf]
  %v3876 = vunpack.c.l.b16 %v3840
  %v3877 = vunpack.c.l.b16 %v3841
  %v3878 = vunpack.c.l.b16 %v3842
  %v3879 = vunpack.c.l.b16 %v3843
  %v3880 = vunpack.c.l.b16 %v3844
  %v3881 = vunpack.c.l.b16 %v3845
  %v3882 = vunpack.c.l.b16 %v3846
  %v3883 = vunpack.c.l.b16 %v3847
  %v3884 = vunpack.c.l.b16 %v3848
  %v3885 = vunpack.c.l.b16 %v3849
  %v3886 = vunpack.c.l.b16 %v3850
  %v3887 = vunpack.c.l.b16 %v3851
  %v3888 = vunpack.c.l.b16 %v3852
  %v3889 = vunpack.c.l.b16 %v3853
  %v3890 = vunpack.c.l.b16 %v3854
  %v3891 = vunpack.c.l.b16 %v3855
  %v3892 = vunpack.c.l.b16 %v3856
  %v3893 = vunpack.c.l.b16 %v3857
  %v3894 = vpack.c.b16 %v3877, %v3876
  %v3895 = vpack.c.b16 %v3879, %v3878
  %v3896 = vpack.c.b16 %v3881, %v3880
  %v3897 = vpack.c.b16 %v3883, %v3882
  %v3898 = vpack.c.b16 %v3885, %v3884
  %v3899 = vpack.c.b16 %v3887, %v3886
  %v3900 = vpack.c.b16 %v3889, %v3888
  %v3901 = vpack.c.b16 %v3891, %v3890
  %v3902 = vpack.c.b16 %v3893, %v3892
  %3912 = vmatprep.subr.bf16.mxu0 0
  %3913 = vmatpush1.bf16.msra.mxu0 %v3894
  %3914 = vmatprep.subr.bf16.mxu0 0
  %3915 = vmatpush1.bf16.msra.mxu0 %v3895
  %3916 = vmatprep.subr.bf16.mxu0 0
  %3917 = vmatpush1.bf16.msra.mxu0 %v3896
  %3918 = vmatprep.subr.bf16.mxu0 0
  %3919 = vmatpush1.bf16.msra.mxu0 %v3897
  %3920 = vmatprep.subr.bf16.mxu0 0
  %3921 = vmatpush1.bf16.msra.mxu0 %v3898
  %3922 = vmatprep.subr.bf16.mxu0 0
  %3923 = vmatpush1.bf16.msra.mxu0 %v3899
  %3924 = vmatprep.subr.bf16.mxu0 0
  %3925 = vmatpush1.bf16.msra.mxu0 %v3900
  %3926 = vmatprep.subr.bf16.mxu0 0
  %3927 = vmatpush1.bf16.msra.mxu0 %v3901
  %3928 = vmatprep.subr.bf16.mxu0 0
  %3929 = vmatpush1.bf16.msra.mxu0 %v3902
  %3930 = vmatprep.subr.bf16.mxu0 0
  %3931 = vmatpush1.bf16.msra.mxu0 0
  %3932 = vmatprep.subr.bf16.mxu0 0
  %3933 = vmatpush1.bf16.msra.mxu0 0
  %3934 = vmatprep.subr.bf16.mxu0 0
  %3935 = vmatpush1.bf16.msra.mxu0 0
  %3936 = vmatprep.subr.bf16.mxu0 0
  %3937 = vmatpush1.bf16.msra.mxu0 0
  %3938 = vmatprep.subr.bf16.mxu0 0
  %3939 = vmatpush1.bf16.msra.mxu0 0
  %3940 = vmatprep.subr.bf16.mxu0 0
  %3941 = vmatpush1.bf16.msra.mxu0 0
  %3942 = vmatprep.subr.bf16.mxu0 0
  %3943 = vmatpush1.bf16.msra.mxu0 0
  %3944 = vmatprep.mubr.bf16.mxu0 %v3797
  %3945 = vmatmul.mubr.bf16.gmra.mrb[0].mxu0 %v3721
  %v3946 = vpop.f32.mrb[0].mxu0
  %v3947 = vadd.f32 0.0, %v3946
  %v3948 = vpop.f32.mrb[0].mxu0
  %v3949 = vpop.f32.mrb[0].mxu0
  %v3950 = vpop.f32.mrb[0].mxu0
  %3951 = vdwg.mxu0
  %v3952 = vmax.f32 %v3834, %v3947
  %s3953 = scalar_lea.vmem %s6, 144
  %v3954 = vld [vmem:[%s3953] sm:$0xf]
  %v3955 = vld [vmem:[%s3953 + $0x4] sm:$0xf]
  %v3956 = vld [vmem:[%s3953 + $0x8] sm:$0xf]
  %v3957 = vld [vmem:[%s3953 + $0xc] sm:$0xf]
  %v3958 = vld [vmem:[%s3953 + $0x10] sm:$0xf]
  %v3959 = vld [vmem:[%s3953 + $0x14] sm:$0xf]
  %v3960 = vld [vmem:[%s3953 + $0x18] sm:$0xf]
  %v3961 = vld [vmem:[%s3953 + $0x1c] sm:$0xf]
  %v3962 = vld [vmem:[%s3953 + $0x20] sm:$0xf]
  %v3963 = vld [vmem:[%s3953 + $0x24] sm:$0xf]
  %v3964 = vld [vmem:[%s3953 + $0x28] sm:$0xf]
  %v3965 = vld [vmem:[%s3953 + $0x2c] sm:$0xf]
  %v3966 = vld [vmem:[%s3953 + $0x30] sm:$0xf]
  %v3967 = vld [vmem:[%s3953 + $0x34] sm:$0xf]
  %v3968 = vld [vmem:[%s3953 + $0x38] sm:$0xf]
  %v3969 = vld [vmem:[%s3953 + $0x3c] sm:$0xf]
  %v3970 = vld [vmem:[%s3953 + $0x40] sm:$0xf]
  %v3971 = vld [vmem:[%s3953 + $0x44] sm:$0xf]
  %v3990 = vunpack.c.l.b16 %v3954
  %v3991 = vunpack.c.l.b16 %v3955
  %v3992 = vunpack.c.l.b16 %v3956
  %v3993 = vunpack.c.l.b16 %v3957
  %v3994 = vunpack.c.l.b16 %v3958
  %v3995 = vunpack.c.l.b16 %v3959
  %v3996 = vunpack.c.l.b16 %v3960
  %v3997 = vunpack.c.l.b16 %v3961
  %v3998 = vunpack.c.l.b16 %v3962
  %v3999 = vunpack.c.l.b16 %v3963
  %v4000 = vunpack.c.l.b16 %v3964
  %v4001 = vunpack.c.l.b16 %v3965
  %v4002 = vunpack.c.l.b16 %v3966
  %v4003 = vunpack.c.l.b16 %v3967
  %v4004 = vunpack.c.l.b16 %v3968
  %v4005 = vunpack.c.l.b16 %v3969
  %v4006 = vunpack.c.l.b16 %v3970
  %v4007 = vunpack.c.l.b16 %v3971
  %v4008 = vpack.c.b16 %v3991, %v3990
  %v4009 = vpack.c.b16 %v3993, %v3992
  %v4010 = vpack.c.b16 %v3995, %v3994
  %v4011 = vpack.c.b16 %v3997, %v3996
  %v4012 = vpack.c.b16 %v3999, %v3998
  %v4013 = vpack.c.b16 %v4001, %v4000
  %v4014 = vpack.c.b16 %v4003, %v4002
  %v4015 = vpack.c.b16 %v4005, %v4004
  %v4016 = vpack.c.b16 %v4007, %v4006
  %4026 = vmatprep.subr.bf16.mxu0 0
  %4027 = vmatpush1.bf16.msra.mxu0 %v4008
  %4028 = vmatprep.subr.bf16.mxu0 0
  %4029 = vmatpush1.bf16.msra.mxu0 %v4009
  %4030 = vmatprep.subr.bf16.mxu0 0
  %4031 = vmatpush1.bf16.msra.mxu0 %v4010
  %4032 = vmatprep.subr.bf16.mxu0 0
  %4033 = vmatpush1.bf16.msra.mxu0 %v4011
  %4034 = vmatprep.subr.bf16.mxu0 0
  %4035 = vmatpush1.bf16.msra.mxu0 %v4012
  %4036 = vmatprep.subr.bf16.mxu0 0
  %4037 = vmatpush1.bf16.msra.mxu0 %v4013
  %4038 = vmatprep.subr.bf16.mxu0 0
  %4039 = vmatpush1.bf16.msra.mxu0 %v4014
  %4040 = vmatprep.subr.bf16.mxu0 0
  %4041 = vmatpush1.bf16.msra.mxu0 %v4015
  %4042 = vmatprep.subr.bf16.mxu0 0
  %4043 = vmatpush1.bf16.msra.mxu0 %v4016
  %4044 = vmatprep.subr.bf16.mxu0 0
  %4045 = vmatpush1.bf16.msra.mxu0 0
  %4046 = vmatprep.subr.bf16.mxu0 0
  %4047 = vmatpush1.bf16.msra.mxu0 0
  %4048 = vmatprep.subr.bf16.mxu0 0
  %4049 = vmatpush1.bf16.msra.mxu0 0
  %4050 = vmatprep.subr.bf16.mxu0 0
  %4051 = vmatpush1.bf16.msra.mxu0 0
  %4052 = vmatprep.subr.bf16.mxu0 0
  %4053 = vmatpush1.bf16.msra.mxu0 0
  %4054 = vmatprep.subr.bf16.mxu0 0
  %4055 = vmatpush1.bf16.msra.mxu0 0
  %4056 = vmatprep.subr.bf16.mxu0 0
  %4057 = vmatpush1.bf16.msra.mxu0 0
  %4058 = vmatprep.mubr.bf16.mxu0 %v3797
  %4059 = vmatmul.mubr.bf16.gmra.mrb[0].mxu0 %v3721
  %v4060 = vpop.f32.mrb[0].mxu0
  %v4061 = vadd.f32 0.0, %v4060
  %v4062 = vpop.f32.mrb[0].mxu0
  %v4063 = vpop.f32.mrb[0].mxu0
  %v4064 = vpop.f32.mrb[0].mxu0
  %4065 = vdwg.mxu0
  %v4066 = vmax.f32 %v3952, %v4061
  %s4067 = scalar_lea.vmem %s6, 216
  %v4068 = vld [vmem:[%s4067] sm:$0xf]
  %v4069 = vld [vmem:[%s4067 + $0x4] sm:$0xf]
  %v4070 = vld [vmem:[%s4067 + $0x8] sm:$0xf]
  %v4071 = vld [vmem:[%s4067 + $0xc] sm:$0xf]
  %v4072 = vld [vmem:[%s4067 + $0x10] sm:$0xf]
  %v4073 = vld [vmem:[%s4067 + $0x14] sm:$0xf]
  %v4074 = vld [vmem:[%s4067 + $0x18] sm:$0xf]
  %v4075 = vld [vmem:[%s4067 + $0x1c] sm:$0xf]
  %v4076 = vld [vmem:[%s4067 + $0x20] sm:$0xf]
  %v4077 = vld [vmem:[%s4067 + $0x24] sm:$0xf]
  %v4078 = vld [vmem:[%s4067 + $0x28] sm:$0xf]
  %v4079 = vld [vmem:[%s4067 + $0x2c] sm:$0xf]
  %v4080 = vld [vmem:[%s4067 + $0x30] sm:$0xf]
  %v4081 = vld [vmem:[%s4067 + $0x34] sm:$0xf]
  %v4082 = vld [vmem:[%s4067 + $0x38] sm:$0xf]
  %v4083 = vld [vmem:[%s4067 + $0x3c] sm:$0xf]
  %v4084 = vld [vmem:[%s4067 + $0x40] sm:$0xf]
  %v4085 = vld [vmem:[%s4067 + $0x44] sm:$0xf]
  %v4104 = vunpack.c.l.b16 %v4068
  %v4105 = vunpack.c.l.b16 %v4069
  %v4106 = vunpack.c.l.b16 %v4070
  %v4107 = vunpack.c.l.b16 %v4071
  %v4108 = vunpack.c.l.b16 %v4072
  %v4109 = vunpack.c.l.b16 %v4073
  %v4110 = vunpack.c.l.b16 %v4074
  %v4111 = vunpack.c.l.b16 %v4075
  %v4112 = vunpack.c.l.b16 %v4076
  %v4113 = vunpack.c.l.b16 %v4077
  %v4114 = vunpack.c.l.b16 %v4078
  %v4115 = vunpack.c.l.b16 %v4079
  %v4116 = vunpack.c.l.b16 %v4080
  %v4117 = vunpack.c.l.b16 %v4081
  %v4118 = vunpack.c.l.b16 %v4082
  %v4119 = vunpack.c.l.b16 %v4083
  %v4120 = vunpack.c.l.b16 %v4084
  %v4121 = vunpack.c.l.b16 %v4085
  %v4122 = vpack.c.b16 %v4105, %v4104
  %v4123 = vpack.c.b16 %v4107, %v4106
  %v4124 = vpack.c.b16 %v4109, %v4108
  %v4125 = vpack.c.b16 %v4111, %v4110
  %v4126 = vpack.c.b16 %v4113, %v4112
  %v4127 = vpack.c.b16 %v4115, %v4114
  %v4128 = vpack.c.b16 %v4117, %v4116
  %v4129 = vpack.c.b16 %v4119, %v4118
  %v4130 = vpack.c.b16 %v4121, %v4120
  %4140 = vmatprep.subr.bf16.mxu0 0
  %4141 = vmatpush1.bf16.msra.mxu0 %v4122
  %4142 = vmatprep.subr.bf16.mxu0 0
  %4143 = vmatpush1.bf16.msra.mxu0 %v4123
  %4144 = vmatprep.subr.bf16.mxu0 0
  %4145 = vmatpush1.bf16.msra.mxu0 %v4124
  %4146 = vmatprep.subr.bf16.mxu0 0
  %4147 = vmatpush1.bf16.msra.mxu0 %v4125
  %4148 = vmatprep.subr.bf16.mxu0 0
  %4149 = vmatpush1.bf16.msra.mxu0 %v4126
  %4150 = vmatprep.subr.bf16.mxu0 0
  %4151 = vmatpush1.bf16.msra.mxu0 %v4127
  %4152 = vmatprep.subr.bf16.mxu0 0
  %4153 = vmatpush1.bf16.msra.mxu0 %v4128
  %4154 = vmatprep.subr.bf16.mxu0 0
  %4155 = vmatpush1.bf16.msra.mxu0 %v4129
  %4156 = vmatprep.subr.bf16.mxu0 0
  %4157 = vmatpush1.bf16.msra.mxu0 %v4130
  %4158 = vmatprep.subr.bf16.mxu0 0
  %4159 = vmatpush1.bf16.msra.mxu0 0
  %4160 = vmatprep.subr.bf16.mxu0 0
  %4161 = vmatpush1.bf16.msra.mxu0 0
  %4162 = vmatprep.subr.bf16.mxu0 0
  %4163 = vmatpush1.bf16.msra.mxu0 0
  %4164 = vmatprep.subr.bf16.mxu0 0
  %4165 = vmatpush1.bf16.msra.mxu0 0
  %4166 = vmatprep.subr.bf16.mxu0 0
  %4167 = vmatpush1.bf16.msra.mxu0 0
  %4168 = vmatprep.subr.bf16.mxu0 0
  %4169 = vmatpush1.bf16.msra.mxu0 0
  %4170 = vmatprep.subr.bf16.mxu0 0
  %4171 = vmatpush1.bf16.msra.mxu0 0
  %4172 = vmatprep.mubr.bf16.mxu0 %v3797
  %4173 = vmatmul.mubr.bf16.gmra.mrb[0].mxu0 %v3721
  %v4174 = vpop.f32.mrb[0].mxu0
  %v4175 = vadd.f32 0.0, %v4174
  %v4176 = vpop.f32.mrb[0].mxu0
  %v4177 = vpop.f32.mrb[0].mxu0
  %v4178 = vpop.f32.mrb[0].mxu0
  %4179 = vdwg.mxu0
  %v4180 = vmax.f32 %v4066, %v4175
  %v4181 = vpack.c.bf16 %v4180, %v4180
  %v4182 = vld [vmem:[%s7] sm:$0xf]
  %v4183 = vld [vmem:[%s7 + $0x4] sm:$0xf]
  %v4184 = vld [vmem:[%s8] sm:$0x1]
  %v4186 = vlaneseq
  %v4187 = vshrl.u32 %v4186, 7
  %v4188 = vsub.s32 0, %v4187
  %v4189 = vrot.slane %v4184, %v4188
  %v4193 = vunpack.c.l.b16 %v4182
  %v4194 = vunpack.c.l.b16 %v4183
  %v4195 = vpack.c.b16 %v4194, %v4193
  %v4198 = vsel %vm3795, %v4181, 0
  %4200 = vmatprep.subr.bf16.mxu0 0
  %4201 = vmatpush1.bf16.msra.mxu0 %v4195
  %4202 = vmatprep.subr.bf16.mxu0 0
  %4203 = vmatpush1.bf16.msra.mxu0 0
  %4204 = vmatprep.subr.bf16.mxu0 0
  %4205 = vmatpush1.bf16.msra.mxu0 0
  %4206 = vmatprep.subr.bf16.mxu0 0
  %4207 = vmatpush1.bf16.msra.mxu0 0
  %4208 = vmatprep.subr.bf16.mxu0 0
  %4209 = vmatpush1.bf16.msra.mxu0 0
  %4210 = vmatprep.subr.bf16.mxu0 0
  %4211 = vmatpush1.bf16.msra.mxu0 0
  %4212 = vmatprep.subr.bf16.mxu0 0
  %4213 = vmatpush1.bf16.msra.mxu0 0
  %4214 = vmatprep.subr.bf16.mxu0 0
  %4215 = vmatpush1.bf16.msra.mxu0 0
  %4216 = vmatprep.subr.bf16.mxu0 0
  %4217 = vmatpush1.bf16.msra.mxu0 0
  %4218 = vmatprep.subr.bf16.mxu0 0
  %4219 = vmatpush1.bf16.msra.mxu0 0
  %4220 = vmatprep.subr.bf16.mxu0 0
  %4221 = vmatpush1.bf16.msra.mxu0 0
  %4222 = vmatprep.subr.bf16.mxu0 0
  %4223 = vmatpush1.bf16.msra.mxu0 0
  %4224 = vmatprep.subr.bf16.mxu0 0
  %4225 = vmatpush1.bf16.msra.mxu0 0
  %4226 = vmatprep.subr.bf16.mxu0 0
  %4227 = vmatpush1.bf16.msra.mxu0 0
  %4228 = vmatprep.subr.bf16.mxu0 0
  %4229 = vmatpush1.bf16.msra.mxu0 0
  %4230 = vmatprep.subr.bf16.mxu0 0
  %4231 = vmatpush1.bf16.msra.mxu0 0
  %4232 = vmatprep.mubr.bf16.mxu0 0
  %4233 = vmatmul.mubr.bf16.gmra.mrb[0].mxu0 %v4198
  %v4234 = vpop.f32.mrb[0].mxu0
  %v4235 = vadd.f32 %v4189, %v4234
  %v4236 = vpop.f32.mrb[0].mxu0
  %v4237 = vpop.f32.mrb[0].mxu0
  %v4238 = vpop.f32.mrb[0].mxu0
  %4239 = vdwg.mxu0
  %v4240 = vmax.f32 %v4235, 0.0
  %v4241 = vpack.c.bf16 %v4240, %v4240
  %v4242 = vld [vmem:[%s9] sm:$0xf]
  %v4243 = vld [vmem:[%s9 + $0x4] sm:$0xf]
  %v4244 = vld [vmem:[%s9 + $0x8] sm:$0xf]
  %v4245 = vld [vmem:[%s9 + $0xc] sm:$0xf]
  %v4246 = vld [vmem:[%s9 + $0x10] sm:$0xf]
  %v4247 = vld [vmem:[%s9 + $0x14] sm:$0xf]
  %v4248 = vld [vmem:[%s9 + $0x18] sm:$0xf]
  %v4249 = vld [vmem:[%s9 + $0x1c] sm:$0xf]
  %v4250 = vld [vmem:[%s9 + $0x20] sm:$0xf]
  %v4251 = vld [vmem:[%s9 + $0x24] sm:$0xf]
  %v4252 = vld [vmem:[%s9 + $0x28] sm:$0xf]
  %v4253 = vld [vmem:[%s9 + $0x2c] sm:$0xf]
  %v4254 = vld [vmem:[%s9 + $0x30] sm:$0xf]
  %v4255 = vld [vmem:[%s9 + $0x34] sm:$0xf]
  %v4256 = vld [vmem:[%s9 + $0x38] sm:$0xf]
  %v4257 = vld [vmem:[%s10] sm:$0x1]
  %v4259 = vlaneseq
  %v4260 = vshrl.u32 %v4259, 7
  %v4261 = vsub.s32 0, %v4260
  %v4262 = vrot.slane %v4257, %v4261
  %v4279 = vunpack.c.l.b16 %v4242
  %v4280 = vunpack.c.l.b16 %v4243
  %v4281 = vunpack.c.l.b16 %v4244
  %v4282 = vunpack.c.l.b16 %v4245
  %v4283 = vunpack.c.l.b16 %v4246
  %v4284 = vunpack.c.l.b16 %v4247
  %v4285 = vunpack.c.l.b16 %v4248
  %v4286 = vunpack.c.l.b16 %v4249
  %v4287 = vunpack.c.l.b16 %v4250
  %v4288 = vunpack.c.l.b16 %v4251
  %v4289 = vunpack.c.l.b16 %v4252
  %v4290 = vunpack.c.l.b16 %v4253
  %v4291 = vunpack.c.l.b16 %v4254
  %v4292 = vunpack.c.l.b16 %v4255
  %v4293 = vunpack.c.l.b16 %v4256
  %v4294 = vpack.c.b16 %v4280, %v4279
  %v4295 = vpack.c.b16 %v4282, %v4281
  %v4296 = vpack.c.b16 %v4284, %v4283
  %v4297 = vpack.c.b16 %v4286, %v4285
  %v4298 = vpack.c.b16 %v4288, %v4287
  %v4299 = vpack.c.b16 %v4290, %v4289
  %v4300 = vpack.c.b16 %v4292, %v4291
  %v4301 = vpack.c.b16 %v4293, %v4293
  %vm4309 = vcmask 982016
  %v4311 = vsel %vm4309, %v4241, 0
  %v4314 = vsel %vm1663, %v4301, 0
  %4316 = vmatprep.subr.bf16.mxu0 0
  %4317 = vmatpush1.bf16.msra.mxu0 %v4294
  %4318 = vmatprep.subr.bf16.mxu0 0
  %4319 = vmatpush1.bf16.msra.mxu0 %v4295
  %4320 = vmatprep.subr.bf16.mxu0 0
  %4321 = vmatpush1.bf16.msra.mxu0 %v4296
  %4322 = vmatprep.subr.bf16.mxu0 0
  %4323 = vmatpush1.bf16.msra.mxu0 %v4297
  %4324 = vmatprep.subr.bf16.mxu0 0
  %4325 = vmatpush1.bf16.msra.mxu0 %v4298
  %4326 = vmatprep.subr.bf16.mxu0 0
  %4327 = vmatpush1.bf16.msra.mxu0 %v4299
  %4328 = vmatprep.subr.bf16.mxu0 0
  %4329 = vmatpush1.bf16.msra.mxu0 %v4300
  %4330 = vmatprep.subr.bf16.mxu0 0
  %4331 = vmatpush1.bf16.msra.mxu0 %v4314
  %4332 = vmatprep.subr.bf16.mxu0 0
  %4333 = vmatpush1.bf16.msra.mxu0 0
  %4334 = vmatprep.subr.bf16.mxu0 0
  %4335 = vmatpush1.bf16.msra.mxu0 0
  %4336 = vmatprep.subr.bf16.mxu0 0
  %4337 = vmatpush1.bf16.msra.mxu0 0
  %4338 = vmatprep.subr.bf16.mxu0 0
  %4339 = vmatpush1.bf16.msra.mxu0 0
  %4340 = vmatprep.subr.bf16.mxu0 0
  %4341 = vmatpush1.bf16.msra.mxu0 0
  %4342 = vmatprep.subr.bf16.mxu0 0
  %4343 = vmatpush1.bf16.msra.mxu0 0
  %4344 = vmatprep.subr.bf16.mxu0 0
  %4345 = vmatpush1.bf16.msra.mxu0 0
  %4346 = vmatprep.subr.bf16.mxu0 0
  %4347 = vmatpush1.bf16.msra.mxu0 0
  %4348 = vmatprep.mubr.bf16.mxu0 0
  %4349 = vmatmul.mubr.bf16.gmra.mrb[0].mxu0 %v4311
  %v4350 = vpop.f32.mrb[0].mxu0
  %v4351 = vadd.f32 %v4262, %v4350
  %v4352 = vpop.f32.mrb[0].mxu0
  %v4353 = vpop.f32.mrb[0].mxu0
  %v4354 = vpop.f32.mrb[0].mxu0
  %4355 = vdwg.mxu0
  %v4356 = vmax.f32 %v4351, 0.0
  %v4357 = vpack.c.bf16 %v4356, %v4356
  %v4358 = vld [vmem:[%s11] sm:$0xf]
  %v4359 = vld [vmem:[%s11 + $0x4] sm:$0xf]
  %v4360 = vld [vmem:[%s11 + $0x8] sm:$0xf]
  %v4361 = vld [vmem:[%s11 + $0xc] sm:$0xf]
  %v4362 = vld [vmem:[%s11 + $0x10] sm:$0xf]
  %v4363 = vld [vmem:[%s11 + $0x14] sm:$0xf]
  %v4364 = vld [vmem:[%s11 + $0x18] sm:$0xf]
  %v4365 = vld [vmem:[%s11 + $0x1c] sm:$0xf]
  %v4366 = vld [vmem:[%s11 + $0x20] sm:$0xf]
  %v4367 = vld [vmem:[%s11 + $0x24] sm:$0xf]
  %v4368 = vld [vmem:[%s11 + $0x28] sm:$0x3]
  %v4369 = vld [vmem:[%s12] sm:$0x1]
  %v4371 = vlaneseq
  %v4372 = vshrl.u32 %v4371, 7
  %v4373 = vsub.s32 0, %v4372
  %v4374 = vrot.slane %v4369, %v4373
  %v4387 = vunpack.c.l.b16 %v4358
  %v4388 = vunpack.c.l.b16 %v4359
  %v4389 = vunpack.c.l.b16 %v4360
  %v4390 = vunpack.c.l.b16 %v4361
  %v4391 = vunpack.c.l.b16 %v4362
  %v4392 = vunpack.c.l.b16 %v4363
  %v4393 = vunpack.c.l.b16 %v4364
  %v4394 = vunpack.c.l.b16 %v4365
  %v4395 = vunpack.c.l.b16 %v4366
  %v4396 = vunpack.c.l.b16 %v4367
  %v4397 = vunpack.c.l.b16 %v4368
  %v4398 = vpack.c.b16 %v4388, %v4387
  %v4399 = vpack.c.b16 %v4390, %v4389
  %v4400 = vpack.c.b16 %v4392, %v4391
  %v4401 = vpack.c.b16 %v4394, %v4393
  %v4402 = vpack.c.b16 %v4396, %v4395
  %v4403 = vpack.c.b16 %v4397, %v4397
  %vm4409 = vcmask 687104
  %v4411 = vsel %vm4409, %v4357, 0
  %vm4413 = vcmask 1041408
  %v4415 = vsel %vm4413, %v4403, 0
  %4417 = vmatprep.subr.bf16.mxu0 0
  %4418 = vmatpush1.bf16.msra.mxu0 %v4398
  %4419 = vmatprep.subr.bf16.mxu0 0
  %4420 = vmatpush1.bf16.msra.mxu0 %v4399
  %4421 = vmatprep.subr.bf16.mxu0 0
  %4422 = vmatpush1.bf16.msra.mxu0 %v4400
  %4423 = vmatprep.subr.bf16.mxu0 0
  %4424 = vmatpush1.bf16.msra.mxu0 %v4401
  %4425 = vmatprep.subr.bf16.mxu0 0
  %4426 = vmatpush1.bf16.msra.mxu0 %v4402
  %4427 = vmatprep.subr.bf16.mxu0 0
  %4428 = vmatpush1.bf16.msra.mxu0 %v4415
  %4429 = vmatprep.subr.bf16.mxu0 0
  %4430 = vmatpush1.bf16.msra.mxu0 0
  %4431 = vmatprep.subr.bf16.mxu0 0
  %4432 = vmatpush1.bf16.msra.mxu0 0
  %4433 = vmatprep.subr.bf16.mxu0 0
  %4434 = vmatpush1.bf16.msra.mxu0 0
  %4435 = vmatprep.subr.bf16.mxu0 0
  %4436 = vmatpush1.bf16.msra.mxu0 0
  %4437 = vmatprep.subr.bf16.mxu0 0
  %4438 = vmatpush1.bf16.msra.mxu0 0
  %4439 = vmatprep.subr.bf16.mxu0 0
  %4440 = vmatpush1.bf16.msra.mxu0 0
  %4441 = vmatprep.subr.bf16.mxu0 0
  %4442 = vmatpush1.bf16.msra.mxu0 0
  %4443 = vmatprep.subr.bf16.mxu0 0
  %4444 = vmatpush1.bf16.msra.mxu0 0
  %4445 = vmatprep.subr.bf16.mxu0 0
  %4446 = vmatpush1.bf16.msra.mxu0 0
  %4447 = vmatprep.subr.bf16.mxu0 0
  %4448 = vmatpush1.bf16.msra.mxu0 0
  %4449 = vmatprep.mubr.bf16.mxu0 0
  %4450 = vmatmul.mubr.bf16.gmra.mrb[0].mxu0 %v4411
  %v4451 = vpop.f32.mrb[0].mxu0
  %v4452 = vadd.f32 %v4374, %v4451
  %v4453 = vpop.f32.mrb[0].mxu0
  %v4454 = vpop.f32.mrb[0].mxu0
  %v4455 = vpop.f32.mrb[0].mxu0
  %4456 = vdwg.mxu0
  %4457 = vst [vmem:[%s13] sm:$0xff] %v4452
  // Predicated region
  $region54: #{backbone_forward.1} parent=0 // pred_check
    _
  $region55: #{backbone_forward.1} parent=0 // pred_check_branch
    %4459 = sbr.rel (0) target = $region57
  $region56: #{backbone_forward.1} parent=0 // pred_region
    _
  $region57: #{backbone_forward.1} parent=0 // pred_fallthru
    _
  // Predicated region
  $region58: #{backbone_forward.1} parent=0 // pred_check
    _
  $region59: #{backbone_forward.1} parent=0 // pred_check_branch
    %4461 = sbr.rel (0) target = $region61
  $region60: #{backbone_forward.1} parent=0 // pred_region
    _
  $region61: #{backbone_forward.1} parent=0 // pred_fallthru
    _

</llo_original>
